<compile_context>
chip_gen: v6e
topology: v6e:2x2x1
jax: 0.10.0
libtpu: 0.0.40
codegen_flags: <defaults>
</compile_context>

<pallas_src>
import functools

import jax
import jax.numpy as jnp
from jax.experimental import pallas as pl
from jax.experimental.pallas import tpu as pltpu


_VMEM_LIMIT = 32 * 1024 * 1024  # safe scoped-VMEM budget on v5e / v6e / v7x


# ---------------------------------------------------------------------------
# Kernel 1: Conv3d(k=3, p=1, no bias) + per-tile BN partial statistics.
# ---------------------------------------------------------------------------
def conv3d_stats_kernel(x0_ref, x1_ref, x2_ref, w_ref, o_ref, stats_ref):
    """One (n, d) grid step = one output depth slice.

    x{kd}_ref : [1, 1, H+2, (W+2)*Cin]  padded input depth slice d+kd (folded W,C)
    w_ref     : [9, (W+2)*Cin, W*Cout]  block-banded weights, index = 3*kd + kh
    o_ref     : [1, 1, H, W*Cout]       conv output (folded, lane-dense)
    stats_ref : [1, 1, 2, W*Cout]       per-tile [sum, sum_sq] partials
    """
    H = o_ref.shape[2]
    acc = jnp.zeros(o_ref.shape[2:], jnp.float32)               # [H, W*Cout]
    for kd, x_ref in enumerate((x0_ref, x1_ref, x2_ref)):
        for kh in range(3):
            lhs = x_ref[0, 0, kh:kh + H, :]                     # [H, (W+2)*Cin]
            acc = acc + jnp.dot(lhs, w_ref[3 * kd + kh],
                                preferred_element_type=jnp.float32)
    o_ref[0, 0] = acc
    stats_ref[0, 0] = jnp.concatenate(
        [jnp.sum(acc, axis=0, keepdims=True),
         jnp.sum(acc * acc, axis=0, keepdims=True)], axis=0)    # [2, W*Cout]


# ---------------------------------------------------------------------------
# Kernel 2a: BN affine + ReLU, writing the zero-padded input of the next conv.
# ---------------------------------------------------------------------------
def bn_relu_pad_kernel(x_ref, s_ref, b_ref, o_ref, *, C):
    """x_ref: [1,1,H,W*C]; s/b: [1,W*C]; o_ref: [1,1,H+2,(W+2)*C] (padded)."""
    H = x_ref.shape[2]
    WC = x_ref.shape[3]
    dp = pl.program_id(1)
    o_ref[...] = jnp.zeros_like(o_ref)          # halo (and will be overwritten inside)

    @pl.when((dp > 0) & (dp < pl.num_programs(1) - 1))
    def _():
        y = jnp.maximum(x_ref[0, 0] * s_ref[...] + b_ref[...], 0.0)   # [H, W*C]
        o_ref[0, 0, 1:H + 1, C:C + WC] = y


# ---------------------------------------------------------------------------
# Kernel 2b: BN affine + ReLU (final block, unpadded output).
# ---------------------------------------------------------------------------
def bn_relu_kernel(x_ref, s_ref, b_ref, o_ref):
    o_ref[0, 0] = jnp.maximum(x_ref[0, 0] * s_ref[...] + b_ref[...], 0.0)


# ---------------------------------------------------------------------------
# Wrappers / glue.
# ---------------------------------------------------------------------------
def build_banded_weights(w_oidhw, W):
    """[Cout, Cin, 3, 3, 3] -> [9, (W+2)*Cin, W*Cout] block-banded matrices.

    band[3*kd+kh][(w+kw)*Cin + c, w*Cout + o] = w[o, c, kd, kh, kw]; zero elsewhere.
    """
    Cout, Cin = w_oidhw.shape[0], w_oidhw.shape[1]
    Wp = W + 2
    bands = []
    for kd in range(3):
        for kh in range(3):
            b = jnp.zeros((Wp * Cin, W * Cout), w_oidhw.dtype)
            for kw in range(3):
                shift_mat = jnp.eye(Wp, W, k=-kw, dtype=w_oidhw.dtype)  # [w+kw, w]=1
                tap = jnp.transpose(w_oidhw[:, :, kd, kh, kw])          # [Cin, Cout]
                b = b + jnp.kron(shift_mat, tap)
            bands.append(b)
    return jnp.stack(bands, axis=0)


def conv3d_stats_call(x_pad_f, w_oidhw):
    """x_pad_f: [N, D+2, H+2, (W+2)*Cin] zero-padded, W/C-folded input."""
    N, Dp, Hp, WpC = x_pad_f.shape
    Cout, Cin = w_oidhw.shape[0], w_oidhw.shape[1]
    Wp = WpC // Cin
    D, H, W = Dp - 2, Hp - 2, Wp - 2
    w_band = build_banded_weights(w_oidhw, W)                   # [9, Wp*Cin, W*Cout]

    def x_spec(kd):
        return pl.BlockSpec((1, 1, Hp, WpC),
                            lambda n, d, kd=kd: (n, d + kd, 0, 0))

    conv_out, stats = pl.pallas_call(
        conv3d_stats_kernel,
        grid=(N, D),
        in_specs=[x_spec(0), x_spec(1), x_spec(2),
                  pl.BlockSpec((9, Wp * Cin, W * Cout), lambda n, d: (0, 0, 0))],
        out_specs=(
            pl.BlockSpec((1, 1, H, W * Cout), lambda n, d: (n, d, 0, 0)),
            pl.BlockSpec((1, 1, 2, W * Cout), lambda n, d: (n, d, 0, 0)),
        ),
        out_shape=(
            jax.ShapeDtypeStruct((N, D, H, W * Cout), jnp.float32),
            jax.ShapeDtypeStruct((N, D, 2, W * Cout), jnp.float32),
        ),
        compiler_params=pltpu.CompilerParams(
            dimension_semantics=("parallel", "parallel"),
            vmem_limit_bytes=_VMEM_LIMIT),
    )(x_pad_f, x_pad_f, x_pad_f, w_band)
    return conv_out, stats


def bn_scale_shift(stats, gamma, beta, count, W, eps):
    """Fold per-tile [sum, sum_sq] into training-mode BN scale/shift per channel."""
    C = gamma.shape[0]
    tot = jnp.sum(stats, axis=(0, 1)).reshape(2, W, C).sum(axis=1)     # [2, C]
    mean = tot[0] / count
    var = jnp.maximum(tot[1] / count - mean * mean, 0.0)               # biased variance
    scale = gamma * jax.lax.rsqrt(var + eps)
    shift = beta - mean * scale
    return scale, shift


def bn_relu_pad_call(conv_out, scale, shift):
    N, D, H, WC = conv_out.shape
    C = scale.shape[0]
    W = WC // C
    Dp, Hp, WpC = D + 2, H + 2, WC + 2 * C
    s_wc = jnp.tile(scale, W).reshape(1, WC)
    b_wc = jnp.tile(shift, W).reshape(1, WC)
    kernel = functools.partial(bn_relu_pad_kernel, C=C)
    return pl.pallas_call(
        kernel,
        grid=(N, Dp),
        in_specs=[
            pl.BlockSpec((1, 1, H, WC),
                         lambda n, dp: (n, jnp.minimum(jnp.maximum(dp - 1, 0), D - 1),
                                        0, 0)),
            pl.BlockSpec((1, WC), lambda n, dp: (0, 0)),
            pl.BlockSpec((1, WC), lambda n, dp: (0, 0)),
        ],
        out_specs=pl.BlockSpec((1, 1, Hp, WpC), lambda n, dp: (n, dp, 0, 0)),
        out_shape=jax.ShapeDtypeStruct((N, Dp, Hp, WpC), conv_out.dtype),
        compiler_params=pltpu.CompilerParams(
            dimension_semantics=("parallel", "parallel"),
            vmem_limit_bytes=_VMEM_LIMIT),
    )(conv_out, s_wc, b_wc)


def bn_relu_call(conv_out, scale, shift):
    N, D, H, WC = conv_out.shape
    W = WC // scale.shape[0]
    s_wc = jnp.tile(scale, W).reshape(1, WC)
    b_wc = jnp.tile(shift, W).reshape(1, WC)
    return pl.pallas_call(
        bn_relu_kernel,
        grid=(N, D),
        in_specs=[pl.BlockSpec((1, 1, H, WC), lambda n, d: (n, d, 0, 0)),
                  pl.BlockSpec((1, WC), lambda n, d: (0, 0)),
                  pl.BlockSpec((1, WC), lambda n, d: (0, 0))],
        out_specs=pl.BlockSpec((1, 1, H, WC), lambda n, d: (n, d, 0, 0)),
        out_shape=jax.ShapeDtypeStruct((N, D, H, WC), conv_out.dtype),
        compiler_params=pltpu.CompilerParams(
            dimension_semantics=("parallel", "parallel"),
            vmem_limit_bytes=_VMEM_LIMIT),
    )(conv_out, s_wc, b_wc)


def conv_bn_relu_block(x_pad_f, w, gamma, beta, eps, *, pad_output):
    """One Conv3d(k3,p1) -> BN(train) -> ReLU block on folded padded input."""
    N, Dp, Hp, WpC = x_pad_f.shape
    Cin = w.shape[1]
    D, H, W = Dp - 2, Hp - 2, WpC // Cin - 2
    conv_out, stats = conv3d_stats_call(x_pad_f, w)
    scale, shift = bn_scale_shift(stats, gamma, beta, N * D * H * W, W, eps)
    if pad_output:
        return bn_relu_pad_call(conv_out, scale, shift)   # padded input for next conv
    return bn_relu_call(conv_out, scale, shift)


def double_conv3d(x_ncdhw, params, eps=1e-5):
    """Forward of DoubleConv3d.  Input/output are PyTorch NCDHW float32.

    Note: the Conv3d biases (params['b1'], params['b2']) are intentionally not
    used — under training-mode BatchNorm they cancel exactly.
    """
    N, Cin, D, H, W = x_ncdhw.shape
    Cout = params["w2"].shape[0]

    # NCDHW -> NDHWC, fold (W, C) into lanes and zero-pad (padding=1); folded
    # W-padding == padding the last dim by Cin on each side.
    x_f = jnp.transpose(x_ncdhw, (0, 2, 3, 4, 1)).reshape(N, D, H, W * Cin)
    x_pad = jnp.pad(x_f, ((0, 0), (1, 1), (1, 1), (Cin, Cin)))

    h_pad = conv_bn_relu_block(x_pad, params["w1"], params["g1"], params["be1"],
                               eps, pad_output=True)
    y = conv_bn_relu_block(h_pad, params["w2"], params["g2"], params["be2"],
                           eps, pad_output=False)                 # [N, D, H, W*Cout]

    y = y.reshape(N, D, H, W, Cout)
    return jnp.transpose(y, (0, 4, 1, 2, 3))                      # NDHWC -> NCDHW


# ---------------------------------------------------------------------------
# Test harness.
# ---------------------------------------------------------------------------
def make_params(key, in_channels, out_channels, mid_channels=None):
    if not mid_channels:
        mid_channels = out_channels
    ks = jax.random.split(key, 8)
    s1 = 1.0 / jnp.sqrt(in_channels * 27.0)
    s2 = 1.0 / jnp.sqrt(mid_channels * 27.0)
    return {
        "w1": jax.random.normal(ks[0], (mid_channels, in_channels, 3, 3, 3),
                                jnp.float32) * s1,
        "b1": jax.random.normal(ks[1], (mid_channels,), jnp.float32) * s1,
        "g1": 1.0 + 0.1 * jax.random.normal(ks[2], (mid_channels,), jnp.float32),
        "be1": 0.1 * jax.random.normal(ks[3], (mid_channels,), jnp.float32),
        "w2": jax.random.normal(ks[4], (out_channels, mid_channels, 3, 3, 3),
                                jnp.float32) * s2,
        "b2": jax.random.normal(ks[5], (out_channels,), jnp.float32) * s2,
        "g2": 1.0 + 0.1 * jax.random.normal(ks[6], (out_channels,), jnp.float32),
        "be2": 0.1 * jax.random.normal(ks[7], (out_channels,), jnp.float32),
    }


def reference_double_conv3d(x_ncdhw, params, eps=1e-5):
    """Pure-JAX reference mirroring PyTorch semantics (training-mode BN, with bias)."""
    def block(x, w, b, g, be):
        y = jax.lax.conv_general_dilated(
            x, w, window_strides=(1, 1, 1), padding="SAME",
            dimension_numbers=("NCDHW", "OIDHW", "NCDHW"))
        y = y + b[None, :, None, None, None]
        mean = jnp.mean(y, axis=(0, 2, 3, 4), keepdims=True)
        var = jnp.mean((y - mean) ** 2, axis=(0, 2, 3, 4), keepdims=True)
        y = (y - mean) * jax.lax.rsqrt(var + eps)
        y = y * g[None, :, None, None, None] + be[None, :, None, None, None]
        return jnp.maximum(y, 0.0)

    y = block(x_ncdhw, params["w1"], params["b1"], params["g1"], params["be1"])
    y = block(y, params["w2"], params["b2"], params["g2"], params["be2"])
    return y


if __name__ == "__main__":
    key = jax.random.PRNGKey(0)
    k_x, k_p = jax.random.split(key)

    # Small shapes: batch=2, in_channels=3, out_channels=8, spatial 8x8x8 (NCDHW).
    N, Cin, Cout, D, H, W = 2, 3, 8, 8, 8, 8
    x = jax.random.normal(k_x, (N, Cin, D, H, W), jnp.float32)
    params = make_params(k_p, Cin, Cout)

    fwd = jax.jit(double_conv3d)
    out = jax.block_until_ready(fwd(x, params))
    assert out.shape == (N, Cout, D, H, W), out.shape

    ref = jax.block_until_ready(reference_double_conv3d(x, params))
    err = float(jnp.max(jnp.abs(out - ref)))
    if err > 1e-3:
        raise AssertionError(f"mismatch vs reference: max abs err {err}")

    print("KERNEL_OK")
</pallas_src>

<mosaic_0001>
module attributes {stable_mosaic.version = 11 : i64} {
  func.func @conv3d_stats_kernel(%arg0: i32, %arg1: i32, %arg2: memref<1x1x10x30xf32, #tpu.memory_space<vmem>>, %arg3: memref<1x1x10x30xf32, #tpu.memory_space<vmem>>, %arg4: memref<1x1x10x30xf32, #tpu.memory_space<vmem>>, %arg5: memref<9x30x64xf32, #tpu.memory_space<vmem>>, %arg6: memref<1x1x8x64xf32, #tpu.memory_space<vmem>>, %arg7: memref<1x1x2x64xf32, #tpu.memory_space<vmem>>) attributes {dimension_semantics = [#tpu.dimension_semantics<parallel>, #tpu.dimension_semantics<parallel>], iteration_bounds = array<i64: 2, 8>, scalar_prefetch = 0 : i64, scratch_operands = 0 : i64, tpu.core_type = #tpu.core_type<tc>, window_params = [{transform_indices = @transform_0, window_bounds = array<i64: 1, 1, 10, 30>}, {transform_indices = @transform_1, window_bounds = array<i64: 1, 1, 10, 30>}, {transform_indices = @transform_2, window_bounds = array<i64: 1, 1, 10, 30>}, {pipeline_mode = #tpu.pipeline_mode<synchronous>, transform_indices = @transform_3, window_bounds = array<i64: 9, 30, 64>}, {transform_indices = @transform_4, window_bounds = array<i64: 1, 1, 8, 64>}, {transform_indices = @transform_5, window_bounds = array<i64: 1, 1, 2, 64>}]} {
    %cst = arith.constant 0.000000e+00 : f32
    %0 = vector.broadcast %cst : f32 to vector<8x64xf32>
    %c0 = arith.constant 0 : index
    %c0_0 = arith.constant 0 : index
    %c0_1 = arith.constant 0 : index
    %c0_2 = arith.constant 0 : index
    %1 = vector.load %arg2[%c0, %c0_0, %c0_1, %c0_2] : memref<1x1x10x30xf32, #tpu.memory_space<vmem>>, vector<1x1x8x30xf32>
    %2 = vector.shape_cast %1 : vector<1x1x8x30xf32> to vector<8x30xf32>
    %c0_3 = arith.constant 0 : index
    %c0_4 = arith.constant 0 : index
    %c0_5 = arith.constant 0 : index
    %3 = vector.load %arg5[%c0_3, %c0_4, %c0_5] : memref<9x30x64xf32, #tpu.memory_space<vmem>>, vector<1x30x64xf32>
    %4 = vector.shape_cast %3 : vector<1x30x64xf32> to vector<30x64xf32>
    %cst_6 = arith.constant dense<0.000000e+00> : vector<8x64xf32>
    %5 = tpu.matmul %2, %4, %cst_6 {dimension_numbers = #tpu.dot_dimension_numbers<[1], [0], [0], [1], [0, 0, 1, 1], [], []>} : vector<8x30xf32>, vector<30x64xf32>, vector<8x64xf32> -> vector<8x64xf32>
    %6 = arith.addf %0, %5 : vector<8x64xf32>
    %c0_7 = arith.constant 0 : index
    %c0_8 = arith.constant 0 : index
    %c1 = arith.constant 1 : index
    %c0_9 = arith.constant 0 : index
    %7 = vector.load %arg2[%c0_7, %c0_8, %c1, %c0_9] : memref<1x1x10x30xf32, #tpu.memory_space<vmem>>, vector<1x1x8x30xf32>
    %8 = vector.shape_cast %7 : vector<1x1x8x30xf32> to vector<8x30xf32>
    %c1_10 = arith.constant 1 : index
    %c0_11 = arith.constant 0 : index
    %c0_12 = arith.constant 0 : index
    %9 = vector.load %arg5[%c1_10, %c0_11, %c0_12] : memref<9x30x64xf32, #tpu.memory_space<vmem>>, vector<1x30x64xf32>
    %10 = vector.shape_cast %9 : vector<1x30x64xf32> to vector<30x64xf32>
    %cst_13 = arith.constant dense<0.000000e+00> : vector<8x64xf32>
    %11 = tpu.matmul %8, %10, %cst_13 {dimension_numbers = #tpu.dot_dimension_numbers<[1], [0], [0], [1], [0, 0, 1, 1], [], []>} : vector<8x30xf32>, vector<30x64xf32>, vector<8x64xf32> -> vector<8x64xf32>
    %12 = arith.addf %6, %11 : vector<8x64xf32>
    %c0_14 = arith.constant 0 : index
    %c0_15 = arith.constant 0 : index
    %c2 = arith.constant 2 : index
    %c0_16 = arith.constant 0 : index
    %13 = vector.load %arg2[%c0_14, %c0_15, %c2, %c0_16] : memref<1x1x10x30xf32, #tpu.memory_space<vmem>>, vector<1x1x8x30xf32>
    %14 = vector.shape_cast %13 : vector<1x1x8x30xf32> to vector<8x30xf32>
    %c2_17 = arith.constant 2 : index
    %c0_18 = arith.constant 0 : index
    %c0_19 = arith.constant 0 : index
    %15 = vector.load %arg5[%c2_17, %c0_18, %c0_19] : memref<9x30x64xf32, #tpu.memory_space<vmem>>, vector<1x30x64xf32>
    %16 = vector.shape_cast %15 : vector<1x30x64xf32> to vector<30x64xf32>
    %cst_20 = arith.constant dense<0.000000e+00> : vector<8x64xf32>
    %17 = tpu.matmul %14, %16, %cst_20 {dimension_numbers = #tpu.dot_dimension_numbers<[1], [0], [0], [1], [0, 0, 1, 1], [], []>} : vector<8x30xf32>, vector<30x64xf32>, vector<8x64xf32> -> vector<8x64xf32>
    %18 = arith.addf %12, %17 : vector<8x64xf32>
    %c0_21 = arith.constant 0 : index
    %c0_22 = arith.constant 0 : index
    %c0_23 = arith.constant 0 : index
    %c0_24 = arith.constant 0 : index
    %19 = vector.load %arg3[%c0_21, %c0_22, %c0_23, %c0_24] : memref<1x1x10x30xf32, #tpu.memory_space<vmem>>, vector<1x1x8x30xf32>
    %20 = vector.shape_cast %19 : vector<1x1x8x30xf32> to vector<8x30xf32>
    %c3 = arith.constant 3 : index
    %c0_25 = arith.constant 0 : index
    %c0_26 = arith.constant 0 : index
    %21 = vector.load %arg5[%c3, %c0_25, %c0_26] : memref<9x30x64xf32, #tpu.memory_space<vmem>>, vector<1x30x64xf32>
    %22 = vector.shape_cast %21 : vector<1x30x64xf32> to vector<30x64xf32>
    %cst_27 = arith.constant dense<0.000000e+00> : vector<8x64xf32>
    %23 = tpu.matmul %20, %22, %cst_27 {dimension_numbers = #tpu.dot_dimension_numbers<[1], [0], [0], [1], [0, 0, 1, 1], [], []>} : vector<8x30xf32>, vector<30x64xf32>, vector<8x64xf32> -> vector<8x64xf32>
    %24 = arith.addf %18, %23 : vector<8x64xf32>
    %c0_28 = arith.constant 0 : index
    %c0_29 = arith.constant 0 : index
    %c1_30 = arith.constant 1 : index
    %c0_31 = arith.constant 0 : index
    %25 = vector.load %arg3[%c0_28, %c0_29, %c1_30, %c0_31] : memref<1x1x10x30xf32, #tpu.memory_space<vmem>>, vector<1x1x8x30xf32>
    %26 = vector.shape_cast %25 : vector<1x1x8x30xf32> to vector<8x30xf32>
    %c4 = arith.constant 4 : index
    %c0_32 = arith.constant 0 : index
    %c0_33 = arith.constant 0 : index
    %27 = vector.load %arg5[%c4, %c0_32, %c0_33] : memref<9x30x64xf32, #tpu.memory_space<vmem>>, vector<1x30x64xf32>
    %28 = vector.shape_cast %27 : vector<1x30x64xf32> to vector<30x64xf32>
    %cst_34 = arith.constant dense<0.000000e+00> : vector<8x64xf32>
    %29 = tpu.matmul %26, %28, %cst_34 {dimension_numbers = #tpu.dot_dimension_numbers<[1], [0], [0], [1], [0, 0, 1, 1], [], []>} : vector<8x30xf32>, vector<30x64xf32>, vector<8x64xf32> -> vector<8x64xf32>
    %30 = arith.addf %24, %29 : vector<8x64xf32>
    %c0_35 = arith.constant 0 : index
    %c0_36 = arith.constant 0 : index
    %c2_37 = arith.constant 2 : index
    %c0_38 = arith.constant 0 : index
    %31 = vector.load %arg3[%c0_35, %c0_36, %c2_37, %c0_38] : memref<1x1x10x30xf32, #tpu.memory_space<vmem>>, vector<1x1x8x30xf32>
    %32 = vector.shape_cast %31 : vector<1x1x8x30xf32> to vector<8x30xf32>
    %c5 = arith.constant 5 : index
    %c0_39 = arith.constant 0 : index
    %c0_40 = arith.constant 0 : index
    %33 = vector.load %arg5[%c5, %c0_39, %c0_40] : memref<9x30x64xf32, #tpu.memory_space<vmem>>, vector<1x30x64xf32>
    %34 = vector.shape_cast %33 : vector<1x30x64xf32> to vector<30x64xf32>
    %cst_41 = arith.constant dense<0.000000e+00> : vector<8x64xf32>
    %35 = tpu.matmul %32, %34, %cst_41 {dimension_numbers = #tpu.dot_dimension_numbers<[1], [0], [0], [1], [0, 0, 1, 1], [], []>} : vector<8x30xf32>, vector<30x64xf32>, vector<8x64xf32> -> vector<8x64xf32>
    %36 = arith.addf %30, %35 : vector<8x64xf32>
    %c0_42 = arith.constant 0 : index
    %c0_43 = arith.constant 0 : index
    %c0_44 = arith.constant 0 : index
    %c0_45 = arith.constant 0 : index
    %37 = vector.load %arg4[%c0_42, %c0_43, %c0_44, %c0_45] : memref<1x1x10x30xf32, #tpu.memory_space<vmem>>, vector<1x1x8x30xf32>
    %38 = vector.shape_cast %37 : vector<1x1x8x30xf32> to vector<8x30xf32>
    %c6 = arith.constant 6 : index
    %c0_46 = arith.constant 0 : index
    %c0_47 = arith.constant 0 : index
    %39 = vector.load %arg5[%c6, %c0_46, %c0_47] : memref<9x30x64xf32, #tpu.memory_space<vmem>>, vector<1x30x64xf32>
    %40 = vector.shape_cast %39 : vector<1x30x64xf32> to vector<30x64xf32>
    %cst_48 = arith.constant dense<0.000000e+00> : vector<8x64xf32>
    %41 = tpu.matmul %38, %40, %cst_48 {dimension_numbers = #tpu.dot_dimension_numbers<[1], [0], [0], [1], [0, 0, 1, 1], [], []>} : vector<8x30xf32>, vector<30x64xf32>, vector<8x64xf32> -> vector<8x64xf32>
    %42 = arith.addf %36, %41 : vector<8x64xf32>
    %c0_49 = arith.constant 0 : index
    %c0_50 = arith.constant 0 : index
    %c1_51 = arith.constant 1 : index
    %c0_52 = arith.constant 0 : index
    %43 = vector.load %arg4[%c0_49, %c0_50, %c1_51, %c0_52] : memref<1x1x10x30xf32, #tpu.memory_space<vmem>>, vector<1x1x8x30xf32>
    %44 = vector.shape_cast %43 : vector<1x1x8x30xf32> to vector<8x30xf32>
    %c7 = arith.constant 7 : index
    %c0_53 = arith.constant 0 : index
    %c0_54 = arith.constant 0 : index
    %45 = vector.load %arg5[%c7, %c0_53, %c0_54] : memref<9x30x64xf32, #tpu.memory_space<vmem>>, vector<1x30x64xf32>
    %46 = vector.shape_cast %45 : vector<1x30x64xf32> to vector<30x64xf32>
    %cst_55 = arith.constant dense<0.000000e+00> : vector<8x64xf32>
    %47 = tpu.matmul %44, %46, %cst_55 {dimension_numbers = #tpu.dot_dimension_numbers<[1], [0], [0], [1], [0, 0, 1, 1], [], []>} : vector<8x30xf32>, vector<30x64xf32>, vector<8x64xf32> -> vector<8x64xf32>
    %48 = arith.addf %42, %47 : vector<8x64xf32>
    %c0_56 = arith.constant 0 : index
    %c0_57 = arith.constant 0 : index
    %c2_58 = arith.constant 2 : index
    %c0_59 = arith.constant 0 : index
    %49 = vector.load %arg4[%c0_56, %c0_57, %c2_58, %c0_59] : memref<1x1x10x30xf32, #tpu.memory_space<vmem>>, vector<1x1x8x30xf32>
    %50 = vector.shape_cast %49 : vector<1x1x8x30xf32> to vector<8x30xf32>
    %c8 = arith.constant 8 : index
    %c0_60 = arith.constant 0 : index
    %c0_61 = arith.constant 0 : index
    %51 = vector.load %arg5[%c8, %c0_60, %c0_61] : memref<9x30x64xf32, #tpu.memory_space<vmem>>, vector<1x30x64xf32>
    %52 = vector.shape_cast %51 : vector<1x30x64xf32> to vector<30x64xf32>
    %cst_62 = arith.constant dense<0.000000e+00> : vector<8x64xf32>
    %53 = tpu.matmul %50, %52, %cst_62 {dimension_numbers = #tpu.dot_dimension_numbers<[1], [0], [0], [1], [0, 0, 1, 1], [], []>} : vector<8x30xf32>, vector<30x64xf32>, vector<8x64xf32> -> vector<8x64xf32>
    %54 = arith.addf %48, %53 : vector<8x64xf32>
    %c0_63 = arith.constant 0 : index
    %c0_64 = arith.constant 0 : index
    %c0_65 = arith.constant 0 : index
    %c0_66 = arith.constant 0 : index
    %55 = vector.load %arg6[%c0_63, %c0_64, %c0_65, %c0_66] : memref<1x1x8x64xf32, #tpu.memory_space<vmem>>, vector<1x1x8x64xf32>
    %56 = vector.shape_cast %55 : vector<1x1x8x64xf32> to vector<8x64xf32>
    %57 = vector.shape_cast %54 : vector<8x64xf32> to vector<1x1x8x64xf32>
    tpu.vector_store %arg6[%c0_63, %c0_64, %c0_65, %c0_66], %57 {strides = array<i32>} : memref<1x1x8x64xf32, #tpu.memory_space<vmem>>, vector<1x1x8x64xf32>,
    %cst_67 = arith.constant dense<0.000000e+00> : vector<64xf32>
    %58 = vector.multi_reduction <add>, %54, %cst_67 [0] : vector<8x64xf32> to vector<64xf32>
    %59 = vector.shape_cast %58 : vector<64xf32> to vector<1x64xf32>
    %60 = arith.mulf %54, %54 : vector<8x64xf32>
    %cst_68 = arith.constant dense<0.000000e+00> : vector<64xf32>
    %61 = vector.multi_reduction <add>, %60, %cst_68 [0] : vector<8x64xf32> to vector<64xf32>
    %62 = vector.shape_cast %61 : vector<64xf32> to vector<1x64xf32>
    %63 = tpu.concatenate %59, %62 in 0 : vector<1x64xf32>, vector<1x64xf32> -> vector<2x64xf32>
    %c0_69 = arith.constant 0 : index
    %c0_70 = arith.constant 0 : index
    %c0_71 = arith.constant 0 : index
    %c0_72 = arith.constant 0 : index
    %64 = vector.load %arg7[%c0_69, %c0_70, %c0_71, %c0_72] : memref<1x1x2x64xf32, #tpu.memory_space<vmem>>, vector<1x1x2x64xf32>
    %65 = vector.shape_cast %64 : vector<1x1x2x64xf32> to vector<2x64xf32>
    %66 = vector.shape_cast %63 : vector<2x64xf32> to vector<1x1x2x64xf32>
    tpu.vector_store %arg7[%c0_69, %c0_70, %c0_71, %c0_72], %66 {strides = array<i32>} : memref<1x1x2x64xf32, #tpu.memory_space<vmem>>, vector<1x1x2x64xf32>,
    return
  }
  func.func @transform_0(%arg0: i32, %arg1: i32) -> (i32, i32, i32, i32) {
    %c0_i32 = arith.constant 0 : i32
    %0 = arith.addi %arg1, %c0_i32 : i32
    %c0_i32_0 = arith.constant 0 : i32
    %c0_i32_1 = arith.constant 0 : i32
    %c0_i32_2 = arith.constant 0 : i32
    return %arg0, %0, %c0_i32_0, %c0_i32_1 : i32, i32, i32, i32
  }
  func.func @transform_1(%arg0: i32, %arg1: i32) -> (i32, i32, i32, i32) {
    %c1_i32 = arith.constant 1 : i32
    %0 = arith.addi %arg1, %c1_i32 : i32
    %c0_i32 = arith.constant 0 : i32
    %c0_i32_0 = arith.constant 0 : i32
    %c0_i32_1 = arith.constant 0 : i32
    return %arg0, %0, %c0_i32, %c0_i32_0 : i32, i32, i32, i32
  }
  func.func @transform_2(%arg0: i32, %arg1: i32) -> (i32, i32, i32, i32) {
    %c2_i32 = arith.constant 2 : i32
    %0 = arith.addi %arg1, %c2_i32 : i32
    %c0_i32 = arith.constant 0 : i32
    %c0_i32_0 = arith.constant 0 : i32
    %c0_i32_1 = arith.constant 0 : i32
    return %arg0, %0, %c0_i32, %c0_i32_0 : i32, i32, i32, i32
  }
  func.func @transform_3(%arg0: i32, %arg1: i32) -> (i32, i32, i32) {
    %c0_i32 = arith.constant 0 : i32
    %c0_i32_0 = arith.constant 0 : i32
    %c0_i32_1 = arith.constant 0 : i32
    %c0_i32_2 = arith.constant 0 : i32
    return %c0_i32, %c0_i32_0, %c0_i32_1 : i32, i32, i32
  }
  func.func @transform_4(%arg0: i32, %arg1: i32) -> (i32, i32, i32, i32) {
    %c0_i32 = arith.constant 0 : i32
    %c0_i32_0 = arith.constant 0 : i32
    %c0_i32_1 = arith.constant 0 : i32
    return %arg0, %arg1, %c0_i32, %c0_i32_0 : i32, i32, i32, i32
  }
  func.func @transform_5(%arg0: i32, %arg1: i32) -> (i32, i32, i32, i32) {
    %c0_i32 = arith.constant 0 : i32
    %c0_i32_0 = arith.constant 0 : i32
    %c0_i32_1 = arith.constant 0 : i32
    return %arg0, %arg1, %c0_i32, %c0_i32_0 : i32, i32, i32, i32
  }
}

module attributes {stable_mosaic.version = 11 : i64} {
  func.func @bn_relu_pad_kernel(%arg0: i32, %arg1: i32, %arg2: memref<1x1x8x64xf32, #tpu.memory_space<vmem>>, %arg3: memref<1x64xf32, #tpu.memory_space<vmem>>, %arg4: memref<1x64xf32, #tpu.memory_space<vmem>>, %arg5: memref<1x1x10x80xf32, #tpu.memory_space<vmem>>) attributes {dimension_semantics = [#tpu.dimension_semantics<parallel>, #tpu.dimension_semantics<parallel>], iteration_bounds = array<i64: 2, 10>, scalar_prefetch = 0 : i64, scratch_operands = 0 : i64, tpu.core_type = #tpu.core_type<tc>, window_params = [{transform_indices = @transform_0, window_bounds = array<i64: 1, 1, 8, 64>}, {pipeline_mode = #tpu.pipeline_mode<synchronous>, transform_indices = @transform_1, window_bounds = array<i64: 1, 64>}, {pipeline_mode = #tpu.pipeline_mode<synchronous>, transform_indices = @transform_2, window_bounds = array<i64: 1, 64>}, {transform_indices = @transform_3, window_bounds = array<i64: 1, 1, 10, 80>}]} {
    %cst = arith.constant 0.000000e+00 : f32
    %0 = vector.broadcast %cst : f32 to vector<1x1x10x80xf32>
    %c0 = arith.constant 0 : index
    %c0_0 = arith.constant 0 : index
    %c0_1 = arith.constant 0 : index
    %c0_2 = arith.constant 0 : index
    %1 = vector.load %arg5[%c0, %c0_0, %c0_1, %c0_2] : memref<1x1x10x80xf32, #tpu.memory_space<vmem>>, vector<1x1x10x80xf32>
    tpu.vector_store %arg5[%c0, %c0_0, %c0_1, %c0_2], %0 {strides = array<i32>} : memref<1x1x10x80xf32, #tpu.memory_space<vmem>>, vector<1x1x10x80xf32>,
    %c0_i32 = arith.constant 0 : i32
    %2 = arith.cmpi sgt, %arg1, %c0_i32 : i32
    %c9_i32 = arith.constant 9 : i32
    %3 = arith.cmpi slt, %arg1, %c9_i32 : i32
    %4 = arith.andi %2, %3 : i1
    %5 = arith.extui %4 : i1 to i32
    %c0_i32_3 = arith.constant 0 : i32
    %6 = arith.cmpi ne, %5, %c0_i32_3 : i32
    scf.if %6 {
      %c0_4 = arith.constant 0 : index
      %c0_5 = arith.constant 0 : index
      %c0_6 = arith.constant 0 : index
      %c0_7 = arith.constant 0 : index
      %7 = vector.load %arg2[%c0_4, %c0_5, %c0_6, %c0_7] : memref<1x1x8x64xf32, #tpu.memory_space<vmem>>, vector<1x1x8x64xf32>
      %8 = vector.shape_cast %7 : vector<1x1x8x64xf32> to vector<8x64xf32>
      %c0_8 = arith.constant 0 : index
      %c0_9 = arith.constant 0 : index
      %9 = vector.load %arg3[%c0_8, %c0_9] : memref<1x64xf32, #tpu.memory_space<vmem>>, vector<1x64xf32>
      %10 = vector.broadcast %9 : vector<1x64xf32> to vector<8x64xf32>
      %11 = arith.mulf %8, %10 : vector<8x64xf32>
      %c0_10 = arith.constant 0 : index
      %c0_11 = arith.constant 0 : index
      %12 = vector.load %arg4[%c0_10, %c0_11] : memref<1x64xf32, #tpu.memory_space<vmem>>, vector<1x64xf32>
      %13 = vector.broadcast %12 : vector<1x64xf32> to vector<8x64xf32>
      %14 = arith.addf %11, %13 : vector<8x64xf32>
      %cst_12 = arith.constant 0.000000e+00 : f32
      %15 = vector.broadcast %cst_12 : f32 to vector<8x64xf32>
      %16 = arith.maximumf %14, %15 : vector<8x64xf32>
      %c0_13 = arith.constant 0 : index
      %c0_14 = arith.constant 0 : index
      %c1 = arith.constant 1 : index
      %c8 = arith.constant 8 : index
      %17 = vector.load %arg5[%c0_13, %c0_14, %c1, %c8] : memref<1x1x10x80xf32, #tpu.memory_space<vmem>>, vector<1x1x8x64xf32>
      %18 = vector.shape_cast %17 : vector<1x1x8x64xf32> to vector<8x64xf32>
      %19 = vector.shape_cast %16 : vector<8x64xf32> to vector<1x1x8x64xf32>
      tpu.vector_store %arg5[%c0_13, %c0_14, %c1, %c8], %19 {strides = array<i32>} : memref<1x1x10x80xf32, #tpu.memory_space<vmem>>, vector<1x1x8x64xf32>,
    } else {
    }
    return
  }
  func.func @transform_0(%arg0: i32, %arg1: i32) -> (i32, i32, i32, i32) {
    %c1_i32 = arith.constant 1 : i32
    %0 = arith.subi %arg1, %c1_i32 : i32
    %c0_i32 = arith.constant 0 : i32
    %1 = arith.maxsi %0, %c0_i32 : i32
    %c7_i32 = arith.constant 7 : i32
    %2 = arith.minsi %1, %c7_i32 : i32
    %c0_i32_0 = arith.constant 0 : i32
    %c0_i32_1 = arith.constant 0 : i32
    %c0_i32_2 = arith.constant 0 : i32
    return %arg0, %2, %c0_i32_0, %c0_i32_1 : i32, i32, i32, i32
  }
  func.func @transform_1(%arg0: i32, %arg1: i32) -> (i32, i32) {
    %c0_i32 = arith.constant 0 : i32
    %c0_i32_0 = arith.constant 0 : i32
    %c0_i32_1 = arith.constant 0 : i32
    return %c0_i32, %c0_i32_0 : i32, i32
  }
  func.func @transform_2(%arg0: i32, %arg1: i32) -> (i32, i32) {
    %c0_i32 = arith.constant 0 : i32
    %c0_i32_0 = arith.constant 0 : i32
    %c0_i32_1 = arith.constant 0 : i32
    return %c0_i32, %c0_i32_0 : i32, i32
  }
  func.func @transform_3(%arg0: i32, %arg1: i32) -> (i32, i32, i32, i32) {
    %c0_i32 = arith.constant 0 : i32
    %c0_i32_0 = arith.constant 0 : i32
    %c0_i32_1 = arith.constant 0 : i32
    return %arg0, %arg1, %c0_i32, %c0_i32_0 : i32, i32, i32, i32
  }
}

module attributes {stable_mosaic.version = 11 : i64} {
  func.func @conv3d_stats_kernel(%arg0: i32, %arg1: i32, %arg2: memref<1x1x10x80xf32, #tpu.memory_space<vmem>>, %arg3: memref<1x1x10x80xf32, #tpu.memory_space<vmem>>, %arg4: memref<1x1x10x80xf32, #tpu.memory_space<vmem>>, %arg5: memref<9x80x64xf32, #tpu.memory_space<vmem>>, %arg6: memref<1x1x8x64xf32, #tpu.memory_space<vmem>>, %arg7: memref<1x1x2x64xf32, #tpu.memory_space<vmem>>) attributes {dimension_semantics = [#tpu.dimension_semantics<parallel>, #tpu.dimension_semantics<parallel>], iteration_bounds = array<i64: 2, 8>, scalar_prefetch = 0 : i64, scratch_operands = 0 : i64, tpu.core_type = #tpu.core_type<tc>, window_params = [{transform_indices = @transform_0, window_bounds = array<i64: 1, 1, 10, 80>}, {transform_indices = @transform_1, window_bounds = array<i64: 1, 1, 10, 80>}, {transform_indices = @transform_2, window_bounds = array<i64: 1, 1, 10, 80>}, {pipeline_mode = #tpu.pipeline_mode<synchronous>, transform_indices = @transform_3, window_bounds = array<i64: 9, 80, 64>}, {transform_indices = @transform_4, window_bounds = array<i64: 1, 1, 8, 64>}, {transform_indices = @transform_5, window_bounds = array<i64: 1, 1, 2, 64>}]} {
    %cst = arith.constant 0.000000e+00 : f32
    %0 = vector.broadcast %cst : f32 to vector<8x64xf32>
    %c0 = arith.constant 0 : index
    %c0_0 = arith.constant 0 : index
    %c0_1 = arith.constant 0 : index
    %c0_2 = arith.constant 0 : index
    %1 = vector.load %arg2[%c0, %c0_0, %c0_1, %c0_2] : memref<1x1x10x80xf32, #tpu.memory_space<vmem>>, vector<1x1x8x80xf32>
    %2 = vector.shape_cast %1 : vector<1x1x8x80xf32> to vector<8x80xf32>
    %c0_3 = arith.constant 0 : index
    %c0_4 = arith.constant 0 : index
    %c0_5 = arith.constant 0 : index
    %3 = vector.load %arg5[%c0_3, %c0_4, %c0_5] : memref<9x80x64xf32, #tpu.memory_space<vmem>>, vector<1x80x64xf32>
    %4 = vector.shape_cast %3 : vector<1x80x64xf32> to vector<80x64xf32>
    %cst_6 = arith.constant dense<0.000000e+00> : vector<8x64xf32>
    %5 = tpu.matmul %2, %4, %cst_6 {dimension_numbers = #tpu.dot_dimension_numbers<[1], [0], [0], [1], [0, 0, 1, 1], [], []>} : vector<8x80xf32>, vector<80x64xf32>, vector<8x64xf32> -> vector<8x64xf32>
    %6 = arith.addf %0, %5 : vector<8x64xf32>
    %c0_7 = arith.constant 0 : index
    %c0_8 = arith.constant 0 : index
    %c1 = arith.constant 1 : index
    %c0_9 = arith.constant 0 : index
    %7 = vector.load %arg2[%c0_7, %c0_8, %c1, %c0_9] : memref<1x1x10x80xf32, #tpu.memory_space<vmem>>, vector<1x1x8x80xf32>
    %8 = vector.shape_cast %7 : vector<1x1x8x80xf32> to vector<8x80xf32>
    %c1_10 = arith.constant 1 : index
    %c0_11 = arith.constant 0 : index
    %c0_12 = arith.constant 0 : index
    %9 = vector.load %arg5[%c1_10, %c0_11, %c0_12] : memref<9x80x64xf32, #tpu.memory_space<vmem>>, vector<1x80x64xf32>
    %10 = vector.shape_cast %9 : vector<1x80x64xf32> to vector<80x64xf32>
    %cst_13 = arith.constant dense<0.000000e+00> : vector<8x64xf32>
    %11 = tpu.matmul %8, %10, %cst_13 {dimension_numbers = #tpu.dot_dimension_numbers<[1], [0], [0], [1], [0, 0, 1, 1], [], []>} : vector<8x80xf32>, vector<80x64xf32>, vector<8x64xf32> -> vector<8x64xf32>
    %12 = arith.addf %6, %11 : vector<8x64xf32>
    %c0_14 = arith.constant 0 : index
    %c0_15 = arith.constant 0 : index
    %c2 = arith.constant 2 : index
    %c0_16 = arith.constant 0 : index
    %13 = vector.load %arg2[%c0_14, %c0_15, %c2, %c0_16] : memref<1x1x10x80xf32, #tpu.memory_space<vmem>>, vector<1x1x8x80xf32>
    %14 = vector.shape_cast %13 : vector<1x1x8x80xf32> to vector<8x80xf32>
    %c2_17 = arith.constant 2 : index
    %c0_18 = arith.constant 0 : index
    %c0_19 = arith.constant 0 : index
    %15 = vector.load %arg5[%c2_17, %c0_18, %c0_19] : memref<9x80x64xf32, #tpu.memory_space<vmem>>, vector<1x80x64xf32>
    %16 = vector.shape_cast %15 : vector<1x80x64xf32> to vector<80x64xf32>
    %cst_20 = arith.constant dense<0.000000e+00> : vector<8x64xf32>
    %17 = tpu.matmul %14, %16, %cst_20 {dimension_numbers = #tpu.dot_dimension_numbers<[1], [0], [0], [1], [0, 0, 1, 1], [], []>} : vector<8x80xf32>, vector<80x64xf32>, vector<8x64xf32> -> vector<8x64xf32>
    %18 = arith.addf %12, %17 : vector<8x64xf32>
    %c0_21 = arith.constant 0 : index
    %c0_22 = arith.constant 0 : index
    %c0_23 = arith.constant 0 : index
    %c0_24 = arith.constant 0 : index
    %19 = vector.load %arg3[%c0_21, %c0_22, %c0_23, %c0_24] : memref<1x1x10x80xf32, #tpu.memory_space<vmem>>, vector<1x1x8x80xf32>
    %20 = vector.shape_cast %19 : vector<1x1x8x80xf32> to vector<8x80xf32>
    %c3 = arith.constant 3 : index
    %c0_25 = arith.constant 0 : index
    %c0_26 = arith.constant 0 : index
    %21 = vector.load %arg5[%c3, %c0_25, %c0_26] : memref<9x80x64xf32, #tpu.memory_space<vmem>>, vector<1x80x64xf32>
    %22 = vector.shape_cast %21 : vector<1x80x64xf32> to vector<80x64xf32>
    %cst_27 = arith.constant dense<0.000000e+00> : vector<8x64xf32>
    %23 = tpu.matmul %20, %22, %cst_27 {dimension_numbers = #tpu.dot_dimension_numbers<[1], [0], [0], [1], [0, 0, 1, 1], [], []>} : vector<8x80xf32>, vector<80x64xf32>, vector<8x64xf32> -> vector<8x64xf32>
    %24 = arith.addf %18, %23 : vector<8x64xf32>
    %c0_28 = arith.constant 0 : index
    %c0_29 = arith.constant 0 : index
    %c1_30 = arith.constant 1 : index
    %c0_31 = arith.constant 0 : index
    %25 = vector.load %arg3[%c0_28, %c0_29, %c1_30, %c0_31] : memref<1x1x10x80xf32, #tpu.memory_space<vmem>>, vector<1x1x8x80xf32>
    %26 = vector.shape_cast %25 : vector<1x1x8x80xf32> to vector<8x80xf32>
    %c4 = arith.constant 4 : index
    %c0_32 = arith.constant 0 : index
    %c0_33 = arith.constant 0 : index
    %27 = vector.load %arg5[%c4, %c0_32, %c0_33] : memref<9x80x64xf32, #tpu.memory_space<vmem>>, vector<1x80x64xf32>
    %28 = vector.shape_cast %27 : vector<1x80x64xf32> to vector<80x64xf32>
    %cst_34 = arith.constant dense<0.000000e+00> : vector<8x64xf32>
    %29 = tpu.matmul %26, %28, %cst_34 {dimension_numbers = #tpu.dot_dimension_numbers<[1], [0], [0], [1], [0, 0, 1, 1], [], []>} : vector<8x80xf32>, vector<80x64xf32>, vector<8x64xf32> -> vector<8x64xf32>
    %30 = arith.addf %24, %29 : vector<8x64xf32>
    %c0_35 = arith.constant 0 : index
    %c0_36 = arith.constant 0 : index
    %c2_37 = arith.constant 2 : index
    %c0_38 = arith.constant 0 : index
    %31 = vector.load %arg3[%c0_35, %c0_36, %c2_37, %c0_38] : memref<1x1x10x80xf32, #tpu.memory_space<vmem>>, vector<1x1x8x80xf32>
    %32 = vector.shape_cast %31 : vector<1x1x8x80xf32> to vector<8x80xf32>
    %c5 = arith.constant 5 : index
    %c0_39 = arith.constant 0 : index
    %c0_40 = arith.constant 0 : index
    %33 = vector.load %arg5[%c5, %c0_39, %c0_40] : memref<9x80x64xf32, #tpu.memory_space<vmem>>, vector<1x80x64xf32>
    %34 = vector.shape_cast %33 : vector<1x80x64xf32> to vector<80x64xf32>
    %cst_41 = arith.constant dense<0.000000e+00> : vector<8x64xf32>
    %35 = tpu.matmul %32, %34, %cst_41 {dimension_numbers = #tpu.dot_dimension_numbers<[1], [0], [0], [1], [0, 0, 1, 1], [], []>} : vector<8x80xf32>, vector<80x64xf32>, vector<8x64xf32> -> vector<8x64xf32>
    %36 = arith.addf %30, %35 : vector<8x64xf32>
    %c0_42 = arith.constant 0 : index
    %c0_43 = arith.constant 0 : index
    %c0_44 = arith.constant 0 : index
    %c0_45 = arith.constant 0 : index
    %37 = vector.load %arg4[%c0_42, %c0_43, %c0_44, %c0_45] : memref<1x1x10x80xf32, #tpu.memory_space<vmem>>, vector<1x1x8x80xf32>
    %38 = vector.shape_cast %37 : vector<1x1x8x80xf32> to vector<8x80xf32>
    %c6 = arith.constant 6 : index
    %c0_46 = arith.constant 0 : index
    %c0_47 = arith.constant 0 : index
    %39 = vector.load %arg5[%c6, %c0_46, %c0_47] : memref<9x80x64xf32, #tpu.memory_space<vmem>>, vector<1x80x64xf32>
    %40 = vector.shape_cast %39 : vector<1x80x64xf32> to vector<80x64xf32>
    %cst_48 = arith.constant dense<0.000000e+00> : vector<8x64xf32>
    %41 = tpu.matmul %38, %40, %cst_48 {dimension_numbers = #tpu.dot_dimension_numbers<[1], [0], [0], [1], [0, 0, 1, 1], [], []>} : vector<8x80xf32>, vector<80x64xf32>, vector<8x64xf32> -> vector<8x64xf32>
    %42 = arith.addf %36, %41 : vector<8x64xf32>
    %c0_49 = arith.constant 0 : index
    %c0_50 = arith.constant 0 : index
    %c1_51 = arith.constant 1 : index
    %c0_52 = arith.constant 0 : index
    %43 = vector.load %arg4[%c0_49, %c0_50, %c1_51, %c0_52] : memref<1x1x10x80xf32, #tpu.memory_space<vmem>>, vector<1x1x8x80xf32>
    %44 = vector.shape_cast %43 : vector<1x1x8x80xf32> to vector<8x80xf32>
    %c7 = arith.constant 7 : index
    %c0_53 = arith.constant 0 : index
    %c0_54 = arith.constant 0 : index
    %45 = vector.load %arg5[%c7, %c0_53, %c0_54] : memref<9x80x64xf32, #tpu.memory_space<vmem>>, vector<1x80x64xf32>
    %46 = vector.shape_cast %45 : vector<1x80x64xf32> to vector<80x64xf32>
    %cst_55 = arith.constant dense<0.000000e+00> : vector<8x64xf32>
    %47 = tpu.matmul %44, %46, %cst_55 {dimension_numbers = #tpu.dot_dimension_numbers<[1], [0], [0], [1], [0, 0, 1, 1], [], []>} : vector<8x80xf32>, vector<80x64xf32>, vector<8x64xf32> -> vector<8x64xf32>
    %48 = arith.addf %42, %47 : vector<8x64xf32>
    %c0_56 = arith.constant 0 : index
    %c0_57 = arith.constant 0 : index
    %c2_58 = arith.constant 2 : index
    %c0_59 = arith.constant 0 : index
    %49 = vector.load %arg4[%c0_56, %c0_57, %c2_58, %c0_59] : memref<1x1x10x80xf32, #tpu.memory_space<vmem>>, vector<1x1x8x80xf32>
    %50 = vector.shape_cast %49 : vector<1x1x8x80xf32> to vector<8x80xf32>
    %c8 = arith.constant 8 : index
    %c0_60 = arith.constant 0 : index
    %c0_61 = arith.constant 0 : index
    %51 = vector.load %arg5[%c8, %c0_60, %c0_61] : memref<9x80x64xf32, #tpu.memory_space<vmem>>, vector<1x80x64xf32>
    %52 = vector.shape_cast %51 : vector<1x80x64xf32> to vector<80x64xf32>
    %cst_62 = arith.constant dense<0.000000e+00> : vector<8x64xf32>
    %53 = tpu.matmul %50, %52, %cst_62 {dimension_numbers = #tpu.dot_dimension_numbers<[1], [0], [0], [1], [0, 0, 1, 1], [], []>} : vector<8x80xf32>, vector<80x64xf32>, vector<8x64xf32> -> vector<8x64xf32>
    %54 = arith.addf %48, %53 : vector<8x64xf32>
    %c0_63 = arith.constant 0 : index
    %c0_64 = arith.constant 0 : index
    %c0_65 = arith.constant 0 : index
    %c0_66 = arith.constant 0 : index
    %55 = vector.load %arg6[%c0_63, %c0_64, %c0_65, %c0_66] : memref<1x1x8x64xf32, #tpu.memory_space<vmem>>, vector<1x1x8x64xf32>
    %56 = vector.shape_cast %55 : vector<1x1x8x64xf32> to vector<8x64xf32>
    %57 = vector.shape_cast %54 : vector<8x64xf32> to vector<1x1x8x64xf32>
    tpu.vector_store %arg6[%c0_63, %c0_64, %c0_65, %c0_66], %57 {strides = array<i32>} : memref<1x1x8x64xf32, #tpu.memory_space<vmem>>, vector<1x1x8x64xf32>,
    %cst_67 = arith.constant dense<0.000000e+00> : vector<64xf32>
    %58 = vector.multi_reduction <add>, %54, %cst_67 [0] : vector<8x64xf32> to vector<64xf32>
    %59 = vector.shape_cast %58 : vector<64xf32> to vector<1x64xf32>
    %60 = arith.mulf %54, %54 : vector<8x64xf32>
    %cst_68 = arith.constant dense<0.000000e+00> : vector<64xf32>
    %61 = vector.multi_reduction <add>, %60, %cst_68 [0] : vector<8x64xf32> to vector<64xf32>
    %62 = vector.shape_cast %61 : vector<64xf32> to vector<1x64xf32>
    %63 = tpu.concatenate %59, %62 in 0 : vector<1x64xf32>, vector<1x64xf32> -> vector<2x64xf32>
    %c0_69 = arith.constant 0 : index
    %c0_70 = arith.constant 0 : index
    %c0_71 = arith.constant 0 : index
    %c0_72 = arith.constant 0 : index
    %64 = vector.load %arg7[%c0_69, %c0_70, %c0_71, %c0_72] : memref<1x1x2x64xf32, #tpu.memory_space<vmem>>, vector<1x1x2x64xf32>
    %65 = vector.shape_cast %64 : vector<1x1x2x64xf32> to vector<2x64xf32>
    %66 = vector.shape_cast %63 : vector<2x64xf32> to vector<1x1x2x64xf32>
    tpu.vector_store %arg7[%c0_69, %c0_70, %c0_71, %c0_72], %66 {strides = array<i32>} : memref<1x1x2x64xf32, #tpu.memory_space<vmem>>, vector<1x1x2x64xf32>,
    return
  }
  func.func @transform_0(%arg0: i32, %arg1: i32) -> (i32, i32, i32, i32) {
    %c0_i32 = arith.constant 0 : i32
    %0 = arith.addi %arg1, %c0_i32 : i32
    %c0_i32_0 = arith.constant 0 : i32
    %c0_i32_1 = arith.constant 0 : i32
    %c0_i32_2 = arith.constant 0 : i32
    return %arg0, %0, %c0_i32_0, %c0_i32_1 : i32, i32, i32, i32
  }
  func.func @transform_1(%arg0: i32, %arg1: i32) -> (i32, i32, i32, i32) {
    %c1_i32 = arith.constant 1 : i32
    %0 = arith.addi %arg1, %c1_i32 : i32
    %c0_i32 = arith.constant 0 : i32
    %c0_i32_0 = arith.constant 0 : i32
    %c0_i32_1 = arith.constant 0 : i32
    return %arg0, %0, %c0_i32, %c0_i32_0 : i32, i32, i32, i32
  }
  func.func @transform_2(%arg0: i32, %arg1: i32) -> (i32, i32, i32, i32) {
    %c2_i32 = arith.constant 2 : i32
    %0 = arith.addi %arg1, %c2_i32 : i32
    %c0_i32 = arith.constant 0 : i32
    %c0_i32_0 = arith.constant 0 : i32
    %c0_i32_1 = arith.constant 0 : i32
    return %arg0, %0, %c0_i32, %c0_i32_0 : i32, i32, i32, i32
  }
  func.func @transform_3(%arg0: i32, %arg1: i32) -> (i32, i32, i32) {
    %c0_i32 = arith.constant 0 : i32
    %c0_i32_0 = arith.constant 0 : i32
    %c0_i32_1 = arith.constant 0 : i32
    %c0_i32_2 = arith.constant 0 : i32
    return %c0_i32, %c0_i32_0, %c0_i32_1 : i32, i32, i32
  }
  func.func @transform_4(%arg0: i32, %arg1: i32) -> (i32, i32, i32, i32) {
    %c0_i32 = arith.constant 0 : i32
    %c0_i32_0 = arith.constant 0 : i32
    %c0_i32_1 = arith.constant 0 : i32
    return %arg0, %arg1, %c0_i32, %c0_i32_0 : i32, i32, i32, i32
  }
  func.func @transform_5(%arg0: i32, %arg1: i32) -> (i32, i32, i32, i32) {
    %c0_i32 = arith.constant 0 : i32
    %c0_i32_0 = arith.constant 0 : i32
    %c0_i32_1 = arith.constant 0 : i32
    return %arg0, %arg1, %c0_i32, %c0_i32_0 : i32, i32, i32, i32
  }
}

module attributes {stable_mosaic.version = 11 : i64} {
  func.func @bn_relu_kernel(%arg0: i32, %arg1: i32, %arg2: memref<1x1x8x64xf32, #tpu.memory_space<vmem>>, %arg3: memref<1x64xf32, #tpu.memory_space<vmem>>, %arg4: memref<1x64xf32, #tpu.memory_space<vmem>>, %arg5: memref<1x1x8x64xf32, #tpu.memory_space<vmem>>) attributes {dimension_semantics = [#tpu.dimension_semantics<parallel>, #tpu.dimension_semantics<parallel>], iteration_bounds = array<i64: 2, 8>, scalar_prefetch = 0 : i64, scratch_operands = 0 : i64, tpu.core_type = #tpu.core_type<tc>, window_params = [{transform_indices = @transform_0, window_bounds = array<i64: 1, 1, 8, 64>}, {pipeline_mode = #tpu.pipeline_mode<synchronous>, transform_indices = @transform_1, window_bounds = array<i64: 1, 64>}, {pipeline_mode = #tpu.pipeline_mode<synchronous>, transform_indices = @transform_2, window_bounds = array<i64: 1, 64>}, {transform_indices = @transform_3, window_bounds = array<i64: 1, 1, 8, 64>}]} {
    %c0 = arith.constant 0 : index
    %c0_0 = arith.constant 0 : index
    %c0_1 = arith.constant 0 : index
    %c0_2 = arith.constant 0 : index
    %0 = vector.load %arg2[%c0, %c0_0, %c0_1, %c0_2] : memref<1x1x8x64xf32, #tpu.memory_space<vmem>>, vector<1x1x8x64xf32>
    %1 = vector.shape_cast %0 : vector<1x1x8x64xf32> to vector<8x64xf32>
    %c0_3 = arith.constant 0 : index
    %c0_4 = arith.constant 0 : index
    %2 = vector.load %arg3[%c0_3, %c0_4] : memref<1x64xf32, #tpu.memory_space<vmem>>, vector<1x64xf32>
    %3 = vector.broadcast %2 : vector<1x64xf32> to vector<8x64xf32>
    %4 = arith.mulf %1, %3 : vector<8x64xf32>
    %c0_5 = arith.constant 0 : index
    %c0_6 = arith.constant 0 : index
    %5 = vector.load %arg4[%c0_5, %c0_6] : memref<1x64xf32, #tpu.memory_space<vmem>>, vector<1x64xf32>
    %6 = vector.broadcast %5 : vector<1x64xf32> to vector<8x64xf32>
    %7 = arith.addf %4, %6 : vector<8x64xf32>
    %cst = arith.constant 0.000000e+00 : f32
    %8 = vector.broadcast %cst : f32 to vector<8x64xf32>
    %9 = arith.maximumf %7, %8 : vector<8x64xf32>
    %c0_7 = arith.constant 0 : index
    %c0_8 = arith.constant 0 : index
    %c0_9 = arith.constant 0 : index
    %c0_10 = arith.constant 0 : index
    %10 = vector.load %arg5[%c0_7, %c0_8, %c0_9, %c0_10] : memref<1x1x8x64xf32, #tpu.memory_space<vmem>>, vector<1x1x8x64xf32>
    %11 = vector.shape_cast %10 : vector<1x1x8x64xf32> to vector<8x64xf32>
    %12 = vector.shape_cast %9 : vector<8x64xf32> to vector<1x1x8x64xf32>
    tpu.vector_store %arg5[%c0_7, %c0_8, %c0_9, %c0_10], %12 {strides = array<i32>} : memref<1x1x8x64xf32, #tpu.memory_space<vmem>>, vector<1x1x8x64xf32>,
    return
  }
  func.func @transform_0(%arg0: i32, %arg1: i32) -> (i32, i32, i32, i32) {
    %c0_i32 = arith.constant 0 : i32
    %c0_i32_0 = arith.constant 0 : i32
    %c0_i32_1 = arith.constant 0 : i32
    return %arg0, %arg1, %c0_i32, %c0_i32_0 : i32, i32, i32, i32
  }
  func.func @transform_1(%arg0: i32, %arg1: i32) -> (i32, i32) {
    %c0_i32 = arith.constant 0 : i32
    %c0_i32_0 = arith.constant 0 : i32
    %c0_i32_1 = arith.constant 0 : i32
    return %c0_i32, %c0_i32_0 : i32, i32
  }
  func.func @transform_2(%arg0: i32, %arg1: i32) -> (i32, i32) {
    %c0_i32 = arith.constant 0 : i32
    %c0_i32_0 = arith.constant 0 : i32
    %c0_i32_1 = arith.constant 0 : i32
    return %c0_i32, %c0_i32_0 : i32, i32
  }
  func.func @transform_3(%arg0: i32, %arg1: i32) -> (i32, i32, i32, i32) {
    %c0_i32 = arith.constant 0 : i32
    %c0_i32_0 = arith.constant 0 : i32
    %c0_i32_1 = arith.constant 0 : i32
    return %arg0, %arg1, %c0_i32, %c0_i32_0 : i32, i32, i32, i32
  }
}

</mosaic_0001>

<llo_original>
// kernel: tile.28
$region0: #{tile.28}
  #allocation0 [shape = 's32[1]{0}', space=sflag, size = 0x4, scoped, tag = 'scoped memory for tile.28']
  %s0 = inlined_call_operand.vmem [shape: f32[8], index: 0, kind: input, shape index: {}]
  %s1 = inlined_call_operand.vmem [shape: f32[8,8], index: 1, kind: output, shape index: {}]
  // Predicated region
  $region2: #{tile.28} parent=0 // pred_check
    _
  $region3: #{tile.28} parent=0 // pred_check_branch
    %3 = sbr.rel (0) target = $region5
  $region4: #{tile.28} parent=0 // pred_region
    _
  $region5: #{tile.28} parent=0 // pred_fallthru
    _
  %v4 = vld [vmem:[%s0] ss:$0 sm:$0xff]
  %5 = vst [vmem:[%s1] sm:$0xff] %v4

// kernel: tile.29
$region0: #{tile.29}
  %s0 = inlined_call_operand.vmem [shape: f32[8,8], index: 0, kind: input, shape index: {}]
  %s1 = inlined_call_operand.vmem [shape: f32[1,64], index: 1, kind: output, shape index: {}]
  $region1: #{tile.29} parent=0
    #allocation0 [shape = 'u8[4096]{0}', space=vmem, size = 0x1000, scoped, tag = 'scoped mem for output reshape']
    %v2 = vld [vmem:[%s0] sm:$0x1]
    %vm3 = vcmask 64512
    %4 = vst.msk [vmem:[#allocation0] sm:$0x1] %vm3, %v2
    %s5 = scalar_lea.vmem %s0, 7
    %v6 = vld [vmem:[%s5] sm:$0x1]
    %7 = vrot.lane.b32.xlu0 %v6, 56
    %v8 = vpop.permute.xlu0 %7
    %vm9 = vcmask 523712
    %10 = vst.msk [vmem:[#allocation0] sm:$0x1] %vm9, %v8
    %s11 = scalar_lea.vmem %s0, 6
    %v12 = vld [vmem:[%s11] sm:$0x1]
    %13 = vrot.lane.b32.xlu0 %v12, 48
    %v14 = vpop.permute.xlu0 %13
    %vm15 = vcmask 458112
    %16 = vst.msk [vmem:[#allocation0] sm:$0x1] %vm15, %v14
    %s17 = scalar_lea.vmem %s0, 5
    %v18 = vld [vmem:[%s17] sm:$0x1]
    %19 = vrot.lane.b32.xlu0 %v18, 40
    %v20 = vpop.permute.xlu0 %19
    %vm21 = vcmask 392512
    %22 = vst.msk [vmem:[#allocation0] sm:$0x1] %vm21, %v20
    %s23 = scalar_lea.vmem %s0, 4
    %v24 = vld [vmem:[%s23] sm:$0x1]
    %25 = vrot.lane.b32.xlu0 %v24, 32
    %v26 = vpop.permute.xlu0 %25
    %vm27 = vcmask 326912
    %28 = vst.msk [vmem:[#allocation0] sm:$0x1] %vm27, %v26
    %s29 = scalar_lea.vmem %s0, 3
    %v30 = vld [vmem:[%s29] sm:$0x1]
    %31 = vrot.lane.b32.xlu0 %v30, 24
    %v32 = vpop.permute.xlu0 %31
    %vm33 = vcmask 261312
    %34 = vst.msk [vmem:[#allocation0] sm:$0x1] %vm33, %v32
    %s35 = scalar_lea.vmem %s0, 2
    %v36 = vld [vmem:[%s35] sm:$0x1]
    %37 = vrot.lane.b32.xlu0 %v36, 16
    %v38 = vpop.permute.xlu0 %37
    %vm39 = vcmask 195712
    %40 = vst.msk [vmem:[#allocation0] sm:$0x1] %vm39, %v38
    %s41 = scalar_lea.vmem %s0, 1
    %v42 = vld [vmem:[%s41] sm:$0x1]
    %43 = vrot.lane.b32.xlu0 %v42, 8
    %v44 = vpop.permute.xlu0 %43
    %vm45 = vcmask 130112
    %46 = vst.msk [vmem:[#allocation0] sm:$0x1] %vm45, %v44
    %s48 = sshll.u32 1, 1
    %s49 = ssub.s32 %s48, 1
    %v51 = vld [vmem:[#allocation0] sm:%s49]
    %s52 = sshll.u32 1, 1
    %s53 = ssub.s32 %s52, 1
    %54 = vst [vmem:[%s1] sm:%s53] %v51

// kernel: double_conv3d.5
$region0: #{double_conv3d.5}
  #allocation0 [shape = 'u32[]', space=smem, size = 0x4, offset = 0x4, fixed_abs, tag = 'smem constant byte address 0x4 - core index']
  #allocation1 [shape = 'u32[144,128]{1,0:T(1,128)}', space=vmem, size = 0x12000, scoped, tag = 'internal scratch']
  %s0 = inlined_call_operand.vmem [shape: f32[2,8,8,64], index: 0, kind: input, shape index: {}]
  %s1 = inlined_call_operand.vmem [shape: f32[1,64], index: 1, kind: input, shape index: {}]
  %s2 = inlined_call_operand.vmem [shape: f32[1,64], index: 2, kind: input, shape index: {}]
  %s3 = inlined_call_operand.vmem [shape: f32[2,10,10,80], index: 3, kind: output, shape index: {}]
  %s4 = sld [smem:[#allocation0]]
  $region49: #{double_conv3d.5} parent=0
    _
  %s6 = ssub.s32 1, %s4
  %s7 = scalar_select 0, %s6, %s4
  loop: start=0, step=1, limit=22
  $region2: #{double_conv3d.5} parent=0 // loop_pre_header
    _
  $region3: #{double_conv3d.5} parent=0 // loop_header
    %s9 = sphi 0, %s13
    %p10 = scmp.ge.s32.totalorder %s9, 22
    %s16 = sphi 0, %s28
    %s17 = sphi 0, %s24
    %s18 = sphi 0, %s16
    %s19 = sphi 0, %s17
    %s20 = sphi 0, %s18
    %s21 = sphi 0, %s19
    %s43 = sphi 0, %s45
    %s46 = sphi 0, %s43
    %s47 = sphi 0, %s46
    %s63 = sphi 0, %s47
    %s67 = sphi 0, %s67
    %s69 = sphi 0, %s67
    %s70 = sphi 0, %s69
    %s84 = sphi 0, %s70
    %s88 = sphi 0, %s88
    %s90 = sphi 0, %s88
    %s91 = sphi 0, %s90
    %s105 = sphi 0, %s91
    %s113 = sphi 0, %s115
    %s116 = sphi 0, %s113
    %s117 = sphi 0, %s116
    %s133 = sphi 0, %s117
  $region4: #{double_conv3d.5} parent=0 // loop_header_branch
    %12 = sbr.rel (%p10) target = $region8
  $region5: #{double_conv3d.5} parent=0 // loop_body
    %s14 = ssub.s32 %s9, 1
    %s15 = ssub.s32 %s9, 2
    %s22 = sadd.s32 1, %s17
    %p23 = scmp.ge.s32.totalorder %s22, 10
    %s24 = scalar_select %p23, 0, %s22
    %s25 = sadd.s32 1, %s16
    %s26 = scalar_select %p23, %s25, %s16
    %p27 = scmp.ge.s32.totalorder %s26, 2
    %s28 = scalar_select %p27, 0, %s26
    %s29 = ssub.s32 %s17, 1
    %p30 = scmp.gt.s32.totalorder %s29, 0
    %s31 = scalar_select %p30, %s29, 0
    %p32 = scmp.lt.s32.totalorder %s31, 7
    %s33 = scalar_select %p32, %s31, 7
    %s34 = ssub.s32 %s24, 1
    %p35 = scmp.gt.s32.totalorder %s34, 0
    %s36 = scalar_select %p35, %s34, 0
    %p37 = scmp.lt.s32.totalorder %s36, 7
    %s38 = scalar_select %p37, %s36, 7
    %s39 = ssub.s32 %s16, %s28
    %s40 = ssub.s32 %s33, %s38
    %s41 = sor.u32 %s39, %s40
    %p42 = scmp.eq.s32.totalorder %s41, 0
    %s44 = sadd.s32 %s43, 1
    %s45 = scalar_select %p42, %s43, %s44
    %p48 = pneg %p42
    %p49 = scmp.eq.s32.totalorder %s9, 19
    %p50 = por %p48, %p49
    %p51 = scmp.ne.s32.totalorder %s43, %s46
    %p52 = scmp.eq.s32.totalorder %s9, 0
    %p53 = por %p51, %p52
    %p54 = scmp.ne.s32.totalorder %s43, %s46
    %p55 = scmp.eq.s32.totalorder %s14, 19
    %p56 = por %p54, %p55
    %p57 = scmp.ne.s32.totalorder %s46, %s47
    %p58 = scmp.eq.s32.totalorder %s14, 0
    %p59 = por %p57, %p58
    %p60 = scmp.ne.s32.totalorder %s46, %s47
    %p61 = scmp.eq.s32.totalorder %s15, 19
    %p62 = por %p60, %p61
    %p64 = scmp.ne.s32.totalorder %s47, %s63
    %p65 = scmp.eq.s32.totalorder %s15, 0
    %p66 = por %p64, %p65
    %s68 = sadd.s32 %s67, 1
    %p71 = scmp.eq.s32.totalorder %s9, 19
    %p72 = scmp.ne.s32.totalorder %s67, %s69
    %p73 = scmp.eq.s32.totalorder %s9, 0
    %p74 = por %p72, %p73
    %p75 = scmp.ne.s32.totalorder %s67, %s69
    %p76 = scmp.eq.s32.totalorder %s14, 19
    %p77 = por %p75, %p76
    %p78 = scmp.ne.s32.totalorder %s69, %s70
    %p79 = scmp.eq.s32.totalorder %s14, 0
    %p80 = por %p78, %p79
    %p81 = scmp.ne.s32.totalorder %s69, %s70
    %p82 = scmp.eq.s32.totalorder %s15, 19
    %p83 = por %p81, %p82
    %p85 = scmp.ne.s32.totalorder %s70, %s84
    %p86 = scmp.eq.s32.totalorder %s15, 0
    %p87 = por %p85, %p86
    %s89 = sadd.s32 %s88, 1
    %p92 = scmp.eq.s32.totalorder %s9, 19
    %p93 = scmp.ne.s32.totalorder %s88, %s90
    %p94 = scmp.eq.s32.totalorder %s9, 0
    %p95 = por %p93, %p94
    %p96 = scmp.ne.s32.totalorder %s88, %s90
    %p97 = scmp.eq.s32.totalorder %s14, 19
    %p98 = por %p96, %p97
    %p99 = scmp.ne.s32.totalorder %s90, %s91
    %p100 = scmp.eq.s32.totalorder %s14, 0
    %p101 = por %p99, %p100
    %p102 = scmp.ne.s32.totalorder %s90, %s91
    %p103 = scmp.eq.s32.totalorder %s15, 19
    %p104 = por %p102, %p103
    %p106 = scmp.ne.s32.totalorder %s91, %s105
    %p107 = scmp.eq.s32.totalorder %s15, 0
    %p108 = por %p106, %p107
    %s109 = ssub.s32 %s16, %s28
    %s110 = ssub.s32 %s17, %s24
    %s111 = sor.u32 %s109, %s110
    %p112 = scmp.eq.s32.totalorder %s111, 0
    %s114 = sadd.s32 %s113, 1
    %s115 = scalar_select %p112, %s113, %s114
    %p118 = pneg %p112
    %p119 = scmp.eq.s32.totalorder %s9, 19
    %p120 = por %p118, %p119
    %p121 = scmp.ne.s32.totalorder %s113, %s116
    %p122 = scmp.eq.s32.totalorder %s9, 0
    %p123 = por %p121, %p122
    %p124 = scmp.ne.s32.totalorder %s113, %s116
    %p125 = scmp.eq.s32.totalorder %s14, 19
    %p126 = por %p124, %p125
    %p127 = scmp.ne.s32.totalorder %s116, %s117
    %p128 = scmp.eq.s32.totalorder %s14, 0
    %p129 = por %p127, %p128
    %p130 = scmp.ne.s32.totalorder %s116, %s117
    %p131 = scmp.eq.s32.totalorder %s15, 19
    %p132 = por %p130, %p131
    %p134 = scmp.ne.s32.totalorder %s117, %s133
    %p135 = scmp.eq.s32.totalorder %s15, 0
    %p136 = por %p134, %p135
    %p137 = scmp.le.s32.totalorder 1, %s9
    %p138 = scmp.lt.s32.totalorder %s9, 21
    %p139 = pnand %p137, %p138
    %p140 = pneg %p139
    // Predicated region
    $region9: #{double_conv3d.5} parent=5 // pred_check
      _
    $region10: #{double_conv3d.5} parent=5 // pred_check_branch
      %142 = sbr.rel (%p139) target = $region12
    $region11: #{double_conv3d.5} parent=5 // pred_region
      %s143 = ssub.s32 %s9, 1
      // Predicated region
      $region13: #{double_conv3d.5} parent=11 // pred_check
        %p144 = pneg %p80
      $region14: #{double_conv3d.5} parent=11 // pred_check_branch
        %146 = sbr.rel (%p144) target = $region16
      $region15: #{double_conv3d.5} parent=11 // pred_region
        _
      $region16: #{double_conv3d.5} parent=11 // pred_fallthru
        _
      // Predicated region
      $region17: #{double_conv3d.5} parent=11 // pred_check
        %p147 = pneg %p101
      $region18: #{double_conv3d.5} parent=11 // pred_check_branch
        %149 = sbr.rel (%p147) target = $region20
      $region19: #{double_conv3d.5} parent=11 // pred_region
        _
      $region20: #{double_conv3d.5} parent=11 // pred_fallthru
        _
    $region12: #{double_conv3d.5} parent=5 // pred_fallthru
      _
    %p150 = scmp.lt.s32.totalorder %s9, 20
    // Predicated region
    $region21: #{double_conv3d.5} parent=5 // pred_check
      %p151 = pneg %p150
    $region22: #{double_conv3d.5} parent=5 // pred_check_branch
      %153 = sbr.rel (%p151) target = $region24
    $region23: #{double_conv3d.5} parent=5 // pred_region
      // Predicated region
      $region25: #{double_conv3d.5} parent=23 // pred_check
        %p154 = pneg %p53
      $region26: #{double_conv3d.5} parent=23 // pred_check_branch
        %156 = sbr.rel (%p154) target = $region28
      $region27: #{double_conv3d.5} parent=23 // pred_region
        %s157 = ssub.s32 %s17, 1
        %p158 = scmp.gt.s32.totalorder %s157, 0
        %s159 = scalar_select %p158, %s157, 0
        %p160 = scmp.lt.s32.totalorder %s159, 7
        %s161 = scalar_select %p160, %s159, 7
        %p162 = scmp.lt.s32.totalorder %s16, 1
        %s163 = scalar_select %p162, %s16, 1
        %p164 = scmp.lt.s32.totalorder %s161, 7
        %s165 = scalar_select %p164, %s161, 7
        %s166 = smul.addr %s163, 8
        %s167 = sadd.s32 %s165, %s166
        %s168 = smul.addr %s167, 8
        %s169 = scalar_lea.vmem %s0, %s168
        %s170 = ssub.s32 %s17, 1
        %p171 = scmp.gt.s32.totalorder %s170, 0
        %s172 = scalar_select %p171, %s170, 0
        %p173 = scmp.lt.s32.totalorder %s172, 7
        %s174 = scalar_select %p173, %s172, 7
      $region28: #{double_conv3d.5} parent=23 // pred_fallthru
        _
    $region24: #{double_conv3d.5} parent=5 // pred_fallthru
      _
    %p175 = scmp.le.s32.totalorder 1, %s9
    %p176 = scmp.lt.s32.totalorder %s9, 21
    %p177 = pnand %p175, %p176
    %p178 = pneg %p177
    // Predicated region
    $region29: #{double_conv3d.5} parent=5 // pred_check
      _
    $region30: #{double_conv3d.5} parent=5 // pred_check_branch
      %180 = sbr.rel (%p177) target = $region32
    $region31: #{double_conv3d.5} parent=5 // pred_region
      %s181 = ssub.s32 %s9, 1
      %s182 = ssub.s32 %s19, 1
      %p183 = scmp.gt.s32.totalorder %s182, 0
      %s184 = scalar_select %p183, %s182, 0
      %p185 = scmp.lt.s32.totalorder %s184, 7
      %s186 = scalar_select %p185, %s184, 7
      %p187 = scmp.lt.s32.totalorder %s18, 1
      %s188 = scalar_select %p187, %s18, 1
      %p189 = scmp.lt.s32.totalorder %s186, 7
      %s190 = scalar_select %p189, %s186, 7
      %s191 = smul.addr %s188, 8
      %s192 = sadd.s32 %s190, %s191
      %s193 = smul.addr %s192, 8
      %s194 = scalar_lea.vmem %s0, %s193
      %p195 = pneg %p59
      %p196 = pneg %p56
      %p197 = pneg %p80
      %p198 = pneg %p77
      %p199 = pneg %p101
      %p200 = pneg %p98
      %p201 = pneg %p129
      %p202 = pneg %p126
      %p203 = scmp.lt.s32.totalorder %s18, 1
      %s204 = scalar_select %p203, %s18, 1
      %p205 = scmp.lt.s32.totalorder %s19, 9
      %s206 = scalar_select %p205, %s19, 9
      %s207 = smul.addr %s206, 2
      %s208 = smul.addr %s204, 20
      %s209 = sadd.s32 %s207, %s208
      %s210 = smul.addr %s209, 8
      %s211 = scalar_lea.vmem %s3, %s210
      %s212 = ssub.s32 %s19, 1
      %p213 = scmp.gt.s32.totalorder %s212, 0
      %s214 = scalar_select %p213, %s212, 0
      %p215 = scmp.lt.s32.totalorder %s214, 7
      %s216 = scalar_select %p215, %s214, 7
      %p217 = scmp.lt.s32.totalorder %s18, 1
      %s218 = scalar_select %p217, %s18, 1
      %p219 = scmp.lt.s32.totalorder %s216, 7
      %s220 = scalar_select %p219, %s216, 7
      %s221 = smul.addr %s218, 8
      %s222 = sadd.s32 %s220, %s221
      %s223 = smul.addr %s222, 8
      %s224 = scalar_lea.vmem %s0, %s223
      %s225 = ssub.s32 %s19, 1
      %p226 = scmp.gt.s32.totalorder %s225, 0
      %s227 = scalar_select %p226, %s225, 0
      %p228 = scmp.lt.s32.totalorder %s227, 7
      %s229 = scalar_select %p228, %s227, 7
      %p230 = scmp.lt.s32.totalorder %s18, 1
      %s231 = scalar_select %p230, %s18, 1
      %p232 = scmp.lt.s32.totalorder %s19, 9
      %s233 = scalar_select %p232, %s19, 9
      %s234 = smul.addr %s233, 2
      %s235 = smul.addr %s231, 20
      %s236 = sadd.s32 %s234, %s235
      %s237 = smul.addr %s236, 8
      %s238 = scalar_lea.vmem %s3, %s237
      %vm239 = vcmask 654336
      %240 = vst.msk [vmem:[%s238] sm:$0xff] %vm239, 0.0
      %vm241 = vcmask 648192
      %242 = vst.msk [vmem:[%s238 + $0x8] sm:$0x3] %vm241, 0.0
      %p243 = scmp.gt.s32.totalorder %s19, 0
      %p244 = scmp.lt.s32.totalorder %s19, 9
      %p245 = pnand %p243, %p244
      %p246 = pneg %p245
      // Predicated region
      $region33: #{double_conv3d.5} parent=31 // pred_check
        _
      $region34: #{double_conv3d.5} parent=31 // pred_check_branch
        %248 = sbr.rel (%p245) target = $region36
      $region35: #{double_conv3d.5} parent=31 // pred_region
        %v249 = vld [vmem:[%s224] sm:$0xff]
        %v250 = vld [vmem:[%s1] sm:$0x1]
        %v252 = vlaneseq
        %v253 = vshrl.u32 %v252, 7
        %v254 = vsub.s32 0, %v253
        %v255 = vrot.slane %v250, %v254
        %v257 = vmul.f32 %v249, %v255
        %v258 = vld [vmem:[%s2] sm:$0x1]
        %v260 = vlaneseq
        %v261 = vshrl.u32 %v260, 7
        %v262 = vsub.s32 0, %v261
        %v263 = vrot.slane %v258, %v262
        %v265 = vadd.f32 %v257, %v263
        %v266 = vmax.f32 %v265, 0.0
        %268 = vrot.lane.b32.xlu0 %v266, 8
        %v269 = vpop.permute.xlu0 %268
        %vm271 = vcmask 588864
        %272 = vst.msk [vmem:[%s238 + $0x1] sm:$0xff] %vm271, %v269
      $region36: #{double_conv3d.5} parent=31 // pred_fallthru
        _
      %p273 = scmp.lt.s32.totalorder %s18, 1
      %s274 = scalar_select %p273, %s18, 1
      %p275 = scmp.lt.s32.totalorder %s19, 9
      %s276 = scalar_select %p275, %s19, 9
      %s277 = smul.addr %s276, 2
      %s278 = smul.addr %s274, 20
      %s279 = sadd.s32 %s277, %s278
      %s280 = smul.addr %s279, 8
      %s281 = scalar_lea.vmem %s3, %s280
      // Predicated region
      $region37: #{double_conv3d.5} parent=31 // pred_check
        %p282 = pneg %p126
      $region38: #{double_conv3d.5} parent=31 // pred_check_branch
        %284 = sbr.rel (%p282) target = $region40
      $region39: #{double_conv3d.5} parent=31 // pred_region
        _
      $region40: #{double_conv3d.5} parent=31 // pred_fallthru
        _
    $region32: #{double_conv3d.5} parent=5 // pred_fallthru
      _
    %p285 = scmp.le.s32.totalorder 2, %s9
    // Predicated region
    $region41: #{double_conv3d.5} parent=5 // pred_check
      %p286 = pneg %p285
    $region42: #{double_conv3d.5} parent=5 // pred_check_branch
      %288 = sbr.rel (%p286) target = $region44
    $region43: #{double_conv3d.5} parent=5 // pred_region
      %s289 = ssub.s32 %s9, 2
      // Predicated region
      $region45: #{double_conv3d.5} parent=43 // pred_check
        %p290 = pneg %p132
      $region46: #{double_conv3d.5} parent=43 // pred_check_branch
        %292 = sbr.rel (%p290) target = $region48
      $region47: #{double_conv3d.5} parent=43 // pred_region
        %p293 = scmp.lt.s32.totalorder %s20, 1
        %s294 = scalar_select %p293, %s20, 1
        %p295 = scmp.lt.s32.totalorder %s21, 9
        %s296 = scalar_select %p295, %s21, 9
        %s297 = smul.addr %s296, 2
        %s298 = smul.addr %s294, 20
        %s299 = sadd.s32 %s297, %s298
        %s300 = smul.addr %s299, 8
        %s301 = scalar_lea.vmem %s3, %s300
      $region48: #{double_conv3d.5} parent=43 // pred_fallthru
        _
    $region44: #{double_conv3d.5} parent=5 // pred_fallthru
      _
  $region6: #{double_conv3d.5} parent=0 // loop_footer
    %s13 = sadd.s32 1, %s9
  $region7: #{double_conv3d.5} parent=0 // loop_footer_branch
    %8 = sbr.rel target = $region3
  $region8: #{double_conv3d.5} parent=0 // loop_exit
    _

// kernel: double_conv3d.4
$region0: #{double_conv3d.4}
  #allocation0 [shape = 'u32[]', space=smem, size = 0x4, offset = 0x4, fixed_abs, tag = 'smem constant byte address 0x4 - core index']
  #allocation1 [shape = 'u32[144,128]{1,0:T(1,128)}', space=vmem, size = 0x12000, scoped, tag = 'internal scratch']
  %s0 = inlined_call_operand.vmem [shape: f32[2,10,10,30], index: 0, kind: input, shape index: {}, may-alias: {0,1,2}]
  %s1 = inlined_call_operand.vmem [shape: f32[2,10,10,30], index: 1, kind: input, shape index: {}, may-alias: {0,1,2}]
  %s2 = inlined_call_operand.vmem [shape: f32[2,10,10,30], index: 2, kind: input, shape index: {}, may-alias: {0,1,2}]
  %s3 = inlined_call_operand.vmem [shape: f32[9,30,64], index: 3, kind: input, shape index: {}]
  %s4 = inlined_call_operand.vmem [shape: f32[2,8,8,64], index: 4, kind: output, shape index: {0}]
  %s5 = inlined_call_operand.vmem [shape: f32[2,8,2,64], index: 5, kind: output, shape index: {1}]
  %6 = xla_tuple %s4, %s5
  %s7 = sld [smem:[#allocation0]]
  $region57: #{double_conv3d.4} parent=0
    _
  %s9 = ssub.s32 1, %s7
  %s10 = scalar_select 0, %s9, %s7
  loop: start=0, step=1, limit=18
  $region2: #{double_conv3d.4} parent=0 // loop_pre_header
    _
  $region3: #{double_conv3d.4} parent=0 // loop_header
    %s12 = sphi 0, %s16
    %p13 = scmp.ge.s32.totalorder %s12, 18
    %s19 = sphi 0, %s31
    %s20 = sphi 0, %s27
    %s21 = sphi 0, %s19
    %s22 = sphi 0, %s20
    %s23 = sphi 0, %s21
    %s24 = sphi 0, %s22
    %s36 = sphi 0, %s38
    %s39 = sphi 0, %s36
    %s40 = sphi 0, %s39
    %s56 = sphi 0, %s40
    %s66 = sphi 0, %s68
    %s69 = sphi 0, %s66
    %s70 = sphi 0, %s69
    %s86 = sphi 0, %s70
    %s96 = sphi 0, %s98
    %s99 = sphi 0, %s96
    %s100 = sphi 0, %s99
    %s116 = sphi 0, %s100
    %s120 = sphi 0, %s120
    %s122 = sphi 0, %s120
    %s123 = sphi 0, %s122
    %s137 = sphi 0, %s123
    %s145 = sphi 0, %s147
    %s148 = sphi 0, %s145
    %s149 = sphi 0, %s148
    %s165 = sphi 0, %s149
    %s173 = sphi 0, %s175
    %s176 = sphi 0, %s173
    %s177 = sphi 0, %s176
    %s193 = sphi 0, %s177
  $region4: #{double_conv3d.4} parent=0 // loop_header_branch
    %15 = sbr.rel (%p13) target = $region8
  $region5: #{double_conv3d.4} parent=0 // loop_body
    %s17 = ssub.s32 %s12, 1
    %s18 = ssub.s32 %s12, 2
    %s25 = sadd.s32 1, %s20
    %p26 = scmp.ge.s32.totalorder %s25, 8
    %s27 = scalar_select %p26, 0, %s25
    %s28 = sadd.s32 1, %s19
    %s29 = scalar_select %p26, %s28, %s19
    %p30 = scmp.ge.s32.totalorder %s29, 2
    %s31 = scalar_select %p30, 0, %s29
    %s32 = ssub.s32 %s19, %s31
    %s33 = ssub.s32 %s20, %s27
    %s34 = sor.u32 %s32, %s33
    %p35 = scmp.eq.s32.totalorder %s34, 0
    %s37 = sadd.s32 %s36, 1
    %s38 = scalar_select %p35, %s36, %s37
    %p41 = pneg %p35
    %p42 = scmp.eq.s32.totalorder %s12, 15
    %p43 = por %p41, %p42
    %p44 = scmp.ne.s32.totalorder %s36, %s39
    %p45 = scmp.eq.s32.totalorder %s12, 0
    %p46 = por %p44, %p45
    %p47 = scmp.ne.s32.totalorder %s36, %s39
    %p48 = scmp.eq.s32.totalorder %s17, 15
    %p49 = por %p47, %p48
    %p50 = scmp.ne.s32.totalorder %s39, %s40
    %p51 = scmp.eq.s32.totalorder %s17, 0
    %p52 = por %p50, %p51
    %p53 = scmp.ne.s32.totalorder %s39, %s40
    %p54 = scmp.eq.s32.totalorder %s18, 15
    %p55 = por %p53, %p54
    %p57 = scmp.ne.s32.totalorder %s40, %s56
    %p58 = scmp.eq.s32.totalorder %s18, 0
    %p59 = por %p57, %p58
    %s60 = sadd.s32 %s20, 1
    %s61 = sadd.s32 %s27, 1
    %s62 = ssub.s32 %s19, %s31
    %s63 = ssub.s32 %s60, %s61
    %s64 = sor.u32 %s62, %s63
    %p65 = scmp.eq.s32.totalorder %s64, 0
    %s67 = sadd.s32 %s66, 1
    %s68 = scalar_select %p65, %s66, %s67
    %p71 = pneg %p65
    %p72 = scmp.eq.s32.totalorder %s12, 15
    %p73 = por %p71, %p72
    %p74 = scmp.ne.s32.totalorder %s66, %s69
    %p75 = scmp.eq.s32.totalorder %s12, 0
    %p76 = por %p74, %p75
    %p77 = scmp.ne.s32.totalorder %s66, %s69
    %p78 = scmp.eq.s32.totalorder %s17, 15
    %p79 = por %p77, %p78
    %p80 = scmp.ne.s32.totalorder %s69, %s70
    %p81 = scmp.eq.s32.totalorder %s17, 0
    %p82 = por %p80, %p81
    %p83 = scmp.ne.s32.totalorder %s69, %s70
    %p84 = scmp.eq.s32.totalorder %s18, 15
    %p85 = por %p83, %p84
    %p87 = scmp.ne.s32.totalorder %s70, %s86
    %p88 = scmp.eq.s32.totalorder %s18, 0
    %p89 = por %p87, %p88
    %s90 = sadd.s32 %s20, 2
    %s91 = sadd.s32 %s27, 2
    %s92 = ssub.s32 %s19, %s31
    %s93 = ssub.s32 %s90, %s91
    %s94 = sor.u32 %s92, %s93
    %p95 = scmp.eq.s32.totalorder %s94, 0
    %s97 = sadd.s32 %s96, 1
    %s98 = scalar_select %p95, %s96, %s97
    %p101 = pneg %p95
    %p102 = scmp.eq.s32.totalorder %s12, 15
    %p103 = por %p101, %p102
    %p104 = scmp.ne.s32.totalorder %s96, %s99
    %p105 = scmp.eq.s32.totalorder %s12, 0
    %p106 = por %p104, %p105
    %p107 = scmp.ne.s32.totalorder %s96, %s99
    %p108 = scmp.eq.s32.totalorder %s17, 15
    %p109 = por %p107, %p108
    %p110 = scmp.ne.s32.totalorder %s99, %s100
    %p111 = scmp.eq.s32.totalorder %s17, 0
    %p112 = por %p110, %p111
    %p113 = scmp.ne.s32.totalorder %s99, %s100
    %p114 = scmp.eq.s32.totalorder %s18, 15
    %p115 = por %p113, %p114
    %p117 = scmp.ne.s32.totalorder %s100, %s116
    %p118 = scmp.eq.s32.totalorder %s18, 0
    %p119 = por %p117, %p118
    %s121 = sadd.s32 %s120, 1
    %p124 = scmp.eq.s32.totalorder %s12, 15
    %p125 = scmp.ne.s32.totalorder %s120, %s122
    %p126 = scmp.eq.s32.totalorder %s12, 0
    %p127 = por %p125, %p126
    %p128 = scmp.ne.s32.totalorder %s120, %s122
    %p129 = scmp.eq.s32.totalorder %s17, 15
    %p130 = por %p128, %p129
    %p131 = scmp.ne.s32.totalorder %s122, %s123
    %p132 = scmp.eq.s32.totalorder %s17, 0
    %p133 = por %p131, %p132
    %p134 = scmp.ne.s32.totalorder %s122, %s123
    %p135 = scmp.eq.s32.totalorder %s18, 15
    %p136 = por %p134, %p135
    %p138 = scmp.ne.s32.totalorder %s123, %s137
    %p139 = scmp.eq.s32.totalorder %s18, 0
    %p140 = por %p138, %p139
    %s141 = ssub.s32 %s19, %s31
    %s142 = ssub.s32 %s20, %s27
    %s143 = sor.u32 %s141, %s142
    %p144 = scmp.eq.s32.totalorder %s143, 0
    %s146 = sadd.s32 %s145, 1
    %s147 = scalar_select %p144, %s145, %s146
    %p150 = pneg %p144
    %p151 = scmp.eq.s32.totalorder %s12, 15
    %p152 = por %p150, %p151
    %p153 = scmp.ne.s32.totalorder %s145, %s148
    %p154 = scmp.eq.s32.totalorder %s12, 0
    %p155 = por %p153, %p154
    %p156 = scmp.ne.s32.totalorder %s145, %s148
    %p157 = scmp.eq.s32.totalorder %s17, 15
    %p158 = por %p156, %p157
    %p159 = scmp.ne.s32.totalorder %s148, %s149
    %p160 = scmp.eq.s32.totalorder %s17, 0
    %p161 = por %p159, %p160
    %p162 = scmp.ne.s32.totalorder %s148, %s149
    %p163 = scmp.eq.s32.totalorder %s18, 15
    %p164 = por %p162, %p163
    %p166 = scmp.ne.s32.totalorder %s149, %s165
    %p167 = scmp.eq.s32.totalorder %s18, 0
    %p168 = por %p166, %p167
    %s169 = ssub.s32 %s19, %s31
    %s170 = ssub.s32 %s20, %s27
    %s171 = sor.u32 %s169, %s170
    %p172 = scmp.eq.s32.totalorder %s171, 0
    %s174 = sadd.s32 %s173, 1
    %s175 = scalar_select %p172, %s173, %s174
    %p178 = pneg %p172
    %p179 = scmp.eq.s32.totalorder %s12, 15
    %p180 = por %p178, %p179
    %p181 = scmp.ne.s32.totalorder %s173, %s176
    %p182 = scmp.eq.s32.totalorder %s12, 0
    %p183 = por %p181, %p182
    %p184 = scmp.ne.s32.totalorder %s173, %s176
    %p185 = scmp.eq.s32.totalorder %s17, 15
    %p186 = por %p184, %p185
    %p187 = scmp.ne.s32.totalorder %s176, %s177
    %p188 = scmp.eq.s32.totalorder %s17, 0
    %p189 = por %p187, %p188
    %p190 = scmp.ne.s32.totalorder %s176, %s177
    %p191 = scmp.eq.s32.totalorder %s18, 15
    %p192 = por %p190, %p191
    %p194 = scmp.ne.s32.totalorder %s177, %s193
    %p195 = scmp.eq.s32.totalorder %s18, 0
    %p196 = por %p194, %p195
    %p197 = scmp.le.s32.totalorder 1, %s12
    %p198 = scmp.lt.s32.totalorder %s12, 17
    %p199 = pnand %p197, %p198
    %p200 = pneg %p199
    // Predicated region
    $region9: #{double_conv3d.4} parent=5 // pred_check
      _
    $region10: #{double_conv3d.4} parent=5 // pred_check_branch
      %202 = sbr.rel (%p199) target = $region12
    $region11: #{double_conv3d.4} parent=5 // pred_region
      %s203 = ssub.s32 %s12, 1
      // Predicated region
      $region13: #{double_conv3d.4} parent=11 // pred_check
        %p204 = pneg %p133
      $region14: #{double_conv3d.4} parent=11 // pred_check_branch
        %206 = sbr.rel (%p204) target = $region16
      $region15: #{double_conv3d.4} parent=11 // pred_region
        _
      $region16: #{double_conv3d.4} parent=11 // pred_fallthru
        _
    $region12: #{double_conv3d.4} parent=5 // pred_fallthru
      _
    %p207 = scmp.lt.s32.totalorder %s12, 16
    // Predicated region
    $region17: #{double_conv3d.4} parent=5 // pred_check
      %p208 = pneg %p207
    $region18: #{double_conv3d.4} parent=5 // pred_check_branch
      %210 = sbr.rel (%p208) target = $region20
    $region19: #{double_conv3d.4} parent=5 // pred_region
      // Predicated region
      $region21: #{double_conv3d.4} parent=19 // pred_check
        %p211 = pneg %p46
      $region22: #{double_conv3d.4} parent=19 // pred_check_branch
        %213 = sbr.rel (%p211) target = $region24
      $region23: #{double_conv3d.4} parent=19 // pred_region
        %p214 = scmp.lt.s32.totalorder %s19, 1
        %s215 = scalar_select %p214, %s19, 1
        %p216 = scmp.lt.s32.totalorder %s20, 9
        %s217 = scalar_select %p216, %s20, 9
        %s218 = smul.addr %s217, 2
        %s219 = smul.addr %s215, 20
        %s220 = sadd.s32 %s218, %s219
        %s221 = smul.addr %s220, 8
        %s222 = scalar_lea.vmem %s0, %s221
      $region24: #{double_conv3d.4} parent=19 // pred_fallthru
        _
      // Predicated region
      $region25: #{double_conv3d.4} parent=19 // pred_check
        %p223 = pneg %p76
      $region26: #{double_conv3d.4} parent=19 // pred_check_branch
        %225 = sbr.rel (%p223) target = $region28
      $region27: #{double_conv3d.4} parent=19 // pred_region
        %s226 = sadd.s32 %s20, 1
        %p227 = scmp.lt.s32.totalorder %s19, 1
        %s228 = scalar_select %p227, %s19, 1
        %p229 = scmp.lt.s32.totalorder %s226, 9
        %s230 = scalar_select %p229, %s226, 9
        %s231 = smul.addr %s230, 2
        %s232 = smul.addr %s228, 20
        %s233 = sadd.s32 %s231, %s232
        %s234 = smul.addr %s233, 8
        %s235 = scalar_lea.vmem %s1, %s234
        %s236 = sadd.s32 %s20, 1
      $region28: #{double_conv3d.4} parent=19 // pred_fallthru
        _
      // Predicated region
      $region29: #{double_conv3d.4} parent=19 // pred_check
        %p237 = pneg %p106
      $region30: #{double_conv3d.4} parent=19 // pred_check_branch
        %239 = sbr.rel (%p237) target = $region32
      $region31: #{double_conv3d.4} parent=19 // pred_region
        %s240 = sadd.s32 %s20, 2
        %p241 = scmp.lt.s32.totalorder %s19, 1
        %s242 = scalar_select %p241, %s19, 1
        %p243 = scmp.lt.s32.totalorder %s240, 9
        %s244 = scalar_select %p243, %s240, 9
        %s245 = smul.addr %s244, 2
        %s246 = smul.addr %s242, 20
        %s247 = sadd.s32 %s245, %s246
        %s248 = smul.addr %s247, 8
        %s249 = scalar_lea.vmem %s2, %s248
        %s250 = sadd.s32 %s20, 2
      $region32: #{double_conv3d.4} parent=19 // pred_fallthru
        _
    $region20: #{double_conv3d.4} parent=5 // pred_fallthru
      _
    %p251 = scmp.le.s32.totalorder 1, %s12
    %p252 = scmp.lt.s32.totalorder %s12, 17
    %p253 = pnand %p251, %p252
    %p254 = pneg %p253
    // Predicated region
    $region33: #{double_conv3d.4} parent=5 // pred_check
      _
    $region34: #{double_conv3d.4} parent=5 // pred_check_branch
      %256 = sbr.rel (%p253) target = $region36
    $region35: #{double_conv3d.4} parent=5 // pred_region
      %s257 = ssub.s32 %s12, 1
      %p258 = scmp.lt.s32.totalorder %s21, 1
      %s259 = scalar_select %p258, %s21, 1
      %p260 = scmp.lt.s32.totalorder %s22, 9
      %s261 = scalar_select %p260, %s22, 9
      %s262 = smul.addr %s261, 2
      %s263 = smul.addr %s259, 20
      %s264 = sadd.s32 %s262, %s263
      %s265 = smul.addr %s264, 8
      %s266 = scalar_lea.vmem %s0, %s265
      %p267 = pneg %p52
      %p268 = pneg %p49
      %s269 = sadd.s32 %s22, 1
      %p270 = scmp.lt.s32.totalorder %s21, 1
      %s271 = scalar_select %p270, %s21, 1
      %p272 = scmp.lt.s32.totalorder %s269, 9
      %s273 = scalar_select %p272, %s269, 9
      %s274 = smul.addr %s273, 2
      %s275 = smul.addr %s271, 20
      %s276 = sadd.s32 %s274, %s275
      %s277 = smul.addr %s276, 8
      %s278 = scalar_lea.vmem %s1, %s277
      %p279 = pneg %p82
      %p280 = pneg %p79
      %s281 = sadd.s32 %s22, 2
      %p282 = scmp.lt.s32.totalorder %s21, 1
      %s283 = scalar_select %p282, %s21, 1
      %p284 = scmp.lt.s32.totalorder %s281, 9
      %s285 = scalar_select %p284, %s281, 9
      %s286 = smul.addr %s285, 2
      %s287 = smul.addr %s283, 20
      %s288 = sadd.s32 %s286, %s287
      %s289 = smul.addr %s288, 8
      %s290 = scalar_lea.vmem %s2, %s289
      %p291 = pneg %p112
      %p292 = pneg %p109
      %p293 = pneg %p133
      %p294 = pneg %p130
      %p295 = pneg %p161
      %p296 = pneg %p158
      %p297 = scmp.lt.s32.totalorder %s21, 1
      %s298 = scalar_select %p297, %s21, 1
      %p299 = scmp.lt.s32.totalorder %s22, 7
      %s300 = scalar_select %p299, %s22, 7
      %s301 = smul.addr %s298, 8
      %s302 = sadd.s32 %s300, %s301
      %s303 = smul.addr %s302, 8
      %s304 = scalar_lea.vmem %s4, %s303
      %p305 = pneg %p189
      %p306 = pneg %p186
      %p307 = scmp.lt.s32.totalorder %s21, 1
      %s308 = scalar_select %p307, %s21, 1
      %p309 = scmp.lt.s32.totalorder %s22, 7
      %s310 = scalar_select %p309, %s22, 7
      %s311 = smul.addr %s308, 8
      %s312 = sadd.s32 %s310, %s311
      %s313 = smul.addr %s312, 2
      %s314 = scalar_lea.vmem %s5, %s313
      %p315 = scmp.lt.s32.totalorder %s21, 1
      %s316 = scalar_select %p315, %s21, 1
      %p317 = scmp.lt.s32.totalorder %s22, 9
      %s318 = scalar_select %p317, %s22, 9
      %s319 = smul.addr %s318, 2
      %s320 = smul.addr %s316, 20
      %s321 = sadd.s32 %s319, %s320
      %s322 = smul.addr %s321, 8
      %s323 = scalar_lea.vmem %s0, %s322
      %s324 = sadd.s32 %s22, 1
      %p325 = scmp.lt.s32.totalorder %s21, 1
      %s326 = scalar_select %p325, %s21, 1
      %p327 = scmp.lt.s32.totalorder %s324, 9
      %s328 = scalar_select %p327, %s324, 9
      %s329 = smul.addr %s328, 2
      %s330 = smul.addr %s326, 20
      %s331 = sadd.s32 %s329, %s330
      %s332 = smul.addr %s331, 8
      %s333 = scalar_lea.vmem %s1, %s332
      %s334 = sadd.s32 %s22, 1
      %s335 = sadd.s32 %s22, 2
      %p336 = scmp.lt.s32.totalorder %s21, 1
      %s337 = scalar_select %p336, %s21, 1
      %p338 = scmp.lt.s32.totalorder %s335, 9
      %s339 = scalar_select %p338, %s335, 9
      %s340 = smul.addr %s339, 2
      %s341 = smul.addr %s337, 20
      %s342 = sadd.s32 %s340, %s341
      %s343 = smul.addr %s342, 8
      %s344 = scalar_lea.vmem %s2, %s343
      %s345 = sadd.s32 %s22, 2
      %p346 = scmp.lt.s32.totalorder %s21, 1
      %s347 = scalar_select %p346, %s21, 1
      %p348 = scmp.lt.s32.totalorder %s22, 7
      %s349 = scalar_select %p348, %s22, 7
      %s350 = smul.addr %s347, 8
      %s351 = sadd.s32 %s349, %s350
      %s352 = smul.addr %s351, 8
      %s353 = scalar_lea.vmem %s4, %s352
      %p354 = scmp.lt.s32.totalorder %s21, 1
      %s355 = scalar_select %p354, %s21, 1
      %p356 = scmp.lt.s32.totalorder %s22, 7
      %s357 = scalar_select %p356, %s22, 7
      %s358 = smul.addr %s355, 8
      %s359 = sadd.s32 %s357, %s358
      %s360 = smul.addr %s359, 2
      %s361 = scalar_lea.vmem %s5, %s360
      %v362 = vld [vmem:[%s323] sm:$0xff]
      %v363 = vld [vmem:[%s3] sm:$0xff]
      %v364 = vld [vmem:[%s3 + $0x8] sm:$0xff]
      %v365 = vld [vmem:[%s3 + $0x10] sm:$0xff]
      %v366 = vld [vmem:[%s3 + $0x18] sm:$0x3f]
      %v367 = vld [vmem:[%s323 + $0x1] sm:$0xff]
      %s368 = scalar_lea.vmem %s3, 32
      %v369 = vld [vmem:[%s368] sm:$0xff]
      %v370 = vld [vmem:[%s368 + $0x8] sm:$0xff]
      %v371 = vld [vmem:[%s368 + $0x10] sm:$0xff]
      %v372 = vld [vmem:[%s368 + $0x18] sm:$0x3f]
      %vm373 = vcmask 244736
      %v375 = vsel %vm373, %v367, 0
      %vm377 = vcmask 1045504
      %v379 = vsel %vm377, %v372, 0
      %381 = vmatprep.subr.mxu0 0.0
      %382 = vmatpush1.msra.mxu0 0.0
      %383 = vmatprep.subr.mxu0 0.0
      %384 = vmatpush1.msra.mxu0 0.0
      %385 = vmatprep.subr.mxu0 0.0
      %386 = vmatpush1.msra.mxu0 0.0
      %387 = vmatprep.subr.mxu0 0.0
      %388 = vmatpush1.msra.mxu0 0.0
      %389 = vmatprep.subr.mxu0 0.0
      %390 = vmatpush1.msra.mxu0 0.0
      %391 = vmatprep.subr.mxu0 0.0
      %392 = vmatpush1.msra.mxu0 0.0
      %393 = vmatprep.subr.mxu0 0.0
      %394 = vmatpush1.msra.mxu0 0.0
      %395 = vmatprep.subr.mxu0 0.0
      %396 = vmatpush1.msra.mxu0 0.0
      %397 = vmatprep.subr.mxu0 0.0
      %398 = vmatpush1.msra.mxu0 0.0
      %399 = vmatprep.subr.mxu0 0.0
      %400 = vmatpush1.msra.mxu0 0.0
      %401 = vmatprep.subr.mxu0 0.0
      %402 = vmatpush1.msra.mxu0 0.0
      %403 = vmatprep.subr.mxu0 0.0
      %404 = vmatpush1.msra.mxu0 0.0
      %405 = vmatprep.subr.mxu0 0.0
      %406 = vmatpush1.msra.mxu0 %v379
      %407 = vmatprep.subr.mxu0 0.0
      %408 = vmatpush1.msra.mxu0 %v371
      %409 = vmatprep.subr.mxu0 0.0
      %410 = vmatpush1.msra.mxu0 %v370
      %411 = vmatprep.subr.mxu0 0.0
      %412 = vmatpush1.msra.mxu0 %v369
      %413 = vmatprep.subr.mxu0 0.0
      %414 = vmatpush2.msra.mxu0 0.0
      %415 = vmatprep.subr.mxu0 0.0
      %416 = vmatpush2.msra.mxu0 0.0
      %417 = vmatprep.subr.mxu0 0.0
      %418 = vmatpush2.msra.mxu0 0.0
      %419 = vmatprep.subr.mxu0 0.0
      %420 = vmatpush2.msra.mxu0 0.0
      %421 = vmatprep.subr.mxu0 0.0
      %422 = vmatpush2.msra.mxu0 0.0
      %423 = vmatprep.subr.mxu0 0.0
      %424 = vmatpush2.msra.mxu0 0.0
      %425 = vmatprep.subr.mxu0 0.0
      %426 = vmatpush2.msra.mxu0 0.0
      %427 = vmatprep.subr.mxu0 0.0
      %428 = vmatpush2.msra.mxu0 0.0
      %429 = vmatprep.subr.mxu0 0.0
      %430 = vmatpush2.msra.mxu0 0.0
      %431 = vmatprep.subr.mxu0 0.0
      %432 = vmatpush2.msra.mxu0 0.0
      %433 = vmatprep.subr.mxu0 0.0
      %434 = vmatpush2.msra.mxu0 0.0
      %435 = vmatprep.subr.mxu0 0.0
      %436 = vmatpush2.msra.mxu0 0.0
      %437 = vmatprep.subr.mxu0 0.0
      %438 = vmatpush2.msra.mxu0 0.0
      %439 = vmatprep.subr.mxu0 0.0
      %440 = vmatpush2.msra.mxu0 0.0
      %441 = vmatprep.subr.mxu0 0.0
      %442 = vmatpush2.msra.mxu0 0.0
      %443 = vmatprep.subr.mxu0 0.0
      %444 = vmatpush2.msra.mxu0 0.0
      %445 = vmatprep.mubr.f32.mxu0 0.0
      %446 = vmatmul.mubr.f32.gmra.mxu0 %v375
      %v447 = vpop.f32.mrf.mxu0
      %v448 = vadd.f32 0.0, %v447
      %v449 = vpop.f32.mrf.mxu0
      %450 = vdwg.mxu0
      %v452 = vsel %vm373, %v362, 0
      %v455 = vsel %vm377, %v366, 0
      %457 = vmatprep.subr.mxu0 0.0
      %458 = vmatpush1.msra.mxu0 0.0
      %459 = vmatprep.subr.mxu0 0.0
      %460 = vmatpush1.msra.mxu0 0.0
      %461 = vmatprep.subr.mxu0 0.0
      %462 = vmatpush1.msra.mxu0 0.0
      %463 = vmatprep.subr.mxu0 0.0
      %464 = vmatpush1.msra.mxu0 0.0
      %465 = vmatprep.subr.mxu0 0.0
      %466 = vmatpush1.msra.mxu0 0.0
      %467 = vmatprep.subr.mxu0 0.0
      %468 = vmatpush1.msra.mxu0 0.0
      %469 = vmatprep.subr.mxu0 0.0
      %470 = vmatpush1.msra.mxu0 0.0
      %471 = vmatprep.subr.mxu0 0.0
      %472 = vmatpush1.msra.mxu0 0.0
      %473 = vmatprep.subr.mxu0 0.0
      %474 = vmatpush1.msra.mxu0 0.0
      %475 = vmatprep.subr.mxu0 0.0
      %476 = vmatpush1.msra.mxu0 0.0
      %477 = vmatprep.subr.mxu0 0.0
      %478 = vmatpush1.msra.mxu0 0.0
      %479 = vmatprep.subr.mxu0 0.0
      %480 = vmatpush1.msra.mxu0 0.0
      %481 = vmatprep.subr.mxu0 0.0
      %482 = vmatpush1.msra.mxu0 %v455
      %483 = vmatprep.subr.mxu0 0.0
      %484 = vmatpush1.msra.mxu0 %v365
      %485 = vmatprep.subr.mxu0 0.0
      %486 = vmatpush1.msra.mxu0 %v364
      %487 = vmatprep.subr.mxu0 0.0
      %488 = vmatpush1.msra.mxu0 %v363
      %489 = vmatprep.subr.mxu0 0.0
      %490 = vmatpush2.msra.mxu0 0.0
      %491 = vmatprep.subr.mxu0 0.0
      %492 = vmatpush2.msra.mxu0 0.0
      %493 = vmatprep.subr.mxu0 0.0
      %494 = vmatpush2.msra.mxu0 0.0
      %495 = vmatprep.subr.mxu0 0.0
      %496 = vmatpush2.msra.mxu0 0.0
      %497 = vmatprep.subr.mxu0 0.0
      %498 = vmatpush2.msra.mxu0 0.0
      %499 = vmatprep.subr.mxu0 0.0
      %500 = vmatpush2.msra.mxu0 0.0
      %501 = vmatprep.subr.mxu0 0.0
      %502 = vmatpush2.msra.mxu0 0.0
      %503 = vmatprep.subr.mxu0 0.0
      %504 = vmatpush2.msra.mxu0 0.0
      %505 = vmatprep.subr.mxu0 0.0
      %506 = vmatpush2.msra.mxu0 0.0
      %507 = vmatprep.subr.mxu0 0.0
      %508 = vmatpush2.msra.mxu0 0.0
      %509 = vmatprep.subr.mxu0 0.0
      %510 = vmatpush2.msra.mxu0 0.0
      %511 = vmatprep.subr.mxu0 0.0
      %512 = vmatpush2.msra.mxu0 0.0
      %513 = vmatprep.subr.mxu0 0.0
      %514 = vmatpush2.msra.mxu0 0.0
      %515 = vmatprep.subr.mxu0 0.0
      %516 = vmatpush2.msra.mxu0 0.0
      %517 = vmatprep.subr.mxu0 0.0
      %518 = vmatpush2.msra.mxu0 0.0
      %519 = vmatprep.subr.mxu0 0.0
      %520 = vmatpush2.msra.mxu0 0.0
      %521 = vmatprep.mubr.f32.mxu0 0.0
      %522 = vmatmul.mubr.f32.gmra.mxu0 %v452
      %v523 = vpop.f32.mrf.mxu0
      %v524 = vadd.f32 %v448, %v523
      %v525 = vpop.f32.mrf.mxu0
      %526 = vdwg.mxu0
      %v527 = vld [vmem:[%s323 + $0x2] sm:$0xff]
      %s528 = scalar_lea.vmem %s3, 64
      %v529 = vld [vmem:[%s528] sm:$0xff]
      %v530 = vld [vmem:[%s528 + $0x8] sm:$0xff]
      %v531 = vld [vmem:[%s528 + $0x10] sm:$0xff]
      %v532 = vld [vmem:[%s528 + $0x18] sm:$0x3f]
      %v534 = vsel %vm373, %v527, 0
      %v537 = vsel %vm377, %v532, 0
      %539 = vmatprep.subr.mxu0 0.0
      %540 = vmatpush1.msra.mxu0 0.0
      %541 = vmatprep.subr.mxu0 0.0
      %542 = vmatpush1.msra.mxu0 0.0
      %543 = vmatprep.subr.mxu0 0.0
      %544 = vmatpush1.msra.mxu0 0.0
      %545 = vmatprep.subr.mxu0 0.0
      %546 = vmatpush1.msra.mxu0 0.0
      %547 = vmatprep.subr.mxu0 0.0
      %548 = vmatpush1.msra.mxu0 0.0
      %549 = vmatprep.subr.mxu0 0.0
      %550 = vmatpush1.msra.mxu0 0.0
      %551 = vmatprep.subr.mxu0 0.0
      %552 = vmatpush1.msra.mxu0 0.0
      %553 = vmatprep.subr.mxu0 0.0
      %554 = vmatpush1.msra.mxu0 0.0
      %555 = vmatprep.subr.mxu0 0.0
      %556 = vmatpush1.msra.mxu0 0.0
      %557 = vmatprep.subr.mxu0 0.0
      %558 = vmatpush1.msra.mxu0 0.0
      %559 = vmatprep.subr.mxu0 0.0
      %560 = vmatpush1.msra.mxu0 0.0
      %561 = vmatprep.subr.mxu0 0.0
      %562 = vmatpush1.msra.mxu0 0.0
      %563 = vmatprep.subr.mxu0 0.0
      %564 = vmatpush1.msra.mxu0 %v537
      %565 = vmatprep.subr.mxu0 0.0
      %566 = vmatpush1.msra.mxu0 %v531
      %567 = vmatprep.subr.mxu0 0.0
      %568 = vmatpush1.msra.mxu0 %v530
      %569 = vmatprep.subr.mxu0 0.0
      %570 = vmatpush1.msra.mxu0 %v529
      %571 = vmatprep.subr.mxu0 0.0
      %572 = vmatpush2.msra.mxu0 0.0
      %573 = vmatprep.subr.mxu0 0.0
      %574 = vmatpush2.msra.mxu0 0.0
      %575 = vmatprep.subr.mxu0 0.0
      %576 = vmatpush2.msra.mxu0 0.0
      %577 = vmatprep.subr.mxu0 0.0
      %578 = vmatpush2.msra.mxu0 0.0
      %579 = vmatprep.subr.mxu0 0.0
      %580 = vmatpush2.msra.mxu0 0.0
      %581 = vmatprep.subr.mxu0 0.0
      %582 = vmatpush2.msra.mxu0 0.0
      %583 = vmatprep.subr.mxu0 0.0
      %584 = vmatpush2.msra.mxu0 0.0
      %585 = vmatprep.subr.mxu0 0.0
      %586 = vmatpush2.msra.mxu0 0.0
      %587 = vmatprep.subr.mxu0 0.0
      %588 = vmatpush2.msra.mxu0 0.0
      %589 = vmatprep.subr.mxu0 0.0
      %590 = vmatpush2.msra.mxu0 0.0
      %591 = vmatprep.subr.mxu0 0.0
      %592 = vmatpush2.msra.mxu0 0.0
      %593 = vmatprep.subr.mxu0 0.0
      %594 = vmatpush2.msra.mxu0 0.0
      %595 = vmatprep.subr.mxu0 0.0
      %596 = vmatpush2.msra.mxu0 0.0
      %597 = vmatprep.subr.mxu0 0.0
      %598 = vmatpush2.msra.mxu0 0.0
      %599 = vmatprep.subr.mxu0 0.0
      %600 = vmatpush2.msra.mxu0 0.0
      %601 = vmatprep.subr.mxu0 0.0
      %602 = vmatpush2.msra.mxu0 0.0
      %603 = vmatprep.mubr.f32.mxu0 0.0
      %604 = vmatmul.mubr.f32.gmra.mxu0 %v534
      %v605 = vpop.f32.mrf.mxu0
      %v606 = vadd.f32 0.0, %v605
      %v607 = vpop.f32.mrf.mxu0
      %608 = vdwg.mxu0
      %v609 = vadd.f32 %v524, %v606
      %v610 = vld [vmem:[%s333] sm:$0xff]
      %s611 = scalar_lea.vmem %s3, 96
      %v612 = vld [vmem:[%s611] sm:$0xff]
      %v613 = vld [vmem:[%s611 + $0x8] sm:$0xff]
      %v614 = vld [vmem:[%s611 + $0x10] sm:$0xff]
      %v615 = vld [vmem:[%s611 + $0x18] sm:$0x3f]
      %v617 = vsel %vm373, %v610, 0
      %v620 = vsel %vm377, %v615, 0
      %622 = vmatprep.subr.mxu0 0.0
      %623 = vmatpush1.msra.mxu0 0.0
      %624 = vmatprep.subr.mxu0 0.0
      %625 = vmatpush1.msra.mxu0 0.0
      %626 = vmatprep.subr.mxu0 0.0
      %627 = vmatpush1.msra.mxu0 0.0
      %628 = vmatprep.subr.mxu0 0.0
      %629 = vmatpush1.msra.mxu0 0.0
      %630 = vmatprep.subr.mxu0 0.0
      %631 = vmatpush1.msra.mxu0 0.0
      %632 = vmatprep.subr.mxu0 0.0
      %633 = vmatpush1.msra.mxu0 0.0
      %634 = vmatprep.subr.mxu0 0.0
      %635 = vmatpush1.msra.mxu0 0.0
      %636 = vmatprep.subr.mxu0 0.0
      %637 = vmatpush1.msra.mxu0 0.0
      %638 = vmatprep.subr.mxu0 0.0
      %639 = vmatpush1.msra.mxu0 0.0
      %640 = vmatprep.subr.mxu0 0.0
      %641 = vmatpush1.msra.mxu0 0.0
      %642 = vmatprep.subr.mxu0 0.0
      %643 = vmatpush1.msra.mxu0 0.0
      %644 = vmatprep.subr.mxu0 0.0
      %645 = vmatpush1.msra.mxu0 0.0
      %646 = vmatprep.subr.mxu0 0.0
      %647 = vmatpush1.msra.mxu0 %v620
      %648 = vmatprep.subr.mxu0 0.0
      %649 = vmatpush1.msra.mxu0 %v614
      %650 = vmatprep.subr.mxu0 0.0
      %651 = vmatpush1.msra.mxu0 %v613
      %652 = vmatprep.subr.mxu0 0.0
      %653 = vmatpush1.msra.mxu0 %v612
      %654 = vmatprep.subr.mxu0 0.0
      %655 = vmatpush2.msra.mxu0 0.0
      %656 = vmatprep.subr.mxu0 0.0
      %657 = vmatpush2.msra.mxu0 0.0
      %658 = vmatprep.subr.mxu0 0.0
      %659 = vmatpush2.msra.mxu0 0.0
      %660 = vmatprep.subr.mxu0 0.0
      %661 = vmatpush2.msra.mxu0 0.0
      %662 = vmatprep.subr.mxu0 0.0
      %663 = vmatpush2.msra.mxu0 0.0
      %664 = vmatprep.subr.mxu0 0.0
      %665 = vmatpush2.msra.mxu0 0.0
      %666 = vmatprep.subr.mxu0 0.0
      %667 = vmatpush2.msra.mxu0 0.0
      %668 = vmatprep.subr.mxu0 0.0
      %669 = vmatpush2.msra.mxu0 0.0
      %670 = vmatprep.subr.mxu0 0.0
      %671 = vmatpush2.msra.mxu0 0.0
      %672 = vmatprep.subr.mxu0 0.0
      %673 = vmatpush2.msra.mxu0 0.0
      %674 = vmatprep.subr.mxu0 0.0
      %675 = vmatpush2.msra.mxu0 0.0
      %676 = vmatprep.subr.mxu0 0.0
      %677 = vmatpush2.msra.mxu0 0.0
      %678 = vmatprep.subr.mxu0 0.0
      %679 = vmatpush2.msra.mxu0 0.0
      %680 = vmatprep.subr.mxu0 0.0
      %681 = vmatpush2.msra.mxu0 0.0
      %682 = vmatprep.subr.mxu0 0.0
      %683 = vmatpush2.msra.mxu0 0.0
      %684 = vmatprep.subr.mxu0 0.0
      %685 = vmatpush2.msra.mxu0 0.0
      %686 = vmatprep.mubr.f32.mxu0 0.0
      %687 = vmatmul.mubr.f32.gmra.mxu0 %v617
      %v688 = vpop.f32.mrf.mxu0
      %v689 = vadd.f32 0.0, %v688
      %v690 = vpop.f32.mrf.mxu0
      %691 = vdwg.mxu0
      %v692 = vadd.f32 %v609, %v689
      %v693 = vld [vmem:[%s333 + $0x1] sm:$0xff]
      %s694 = scalar_lea.vmem %s3, 128
      %v695 = vld [vmem:[%s694] sm:$0xff]
      %v696 = vld [vmem:[%s694 + $0x8] sm:$0xff]
      %v697 = vld [vmem:[%s694 + $0x10] sm:$0xff]
      %v698 = vld [vmem:[%s694 + $0x18] sm:$0x3f]
      %v700 = vsel %vm373, %v693, 0
      %v703 = vsel %vm377, %v698, 0
      %705 = vmatprep.subr.mxu0 0.0
      %706 = vmatpush1.msra.mxu0 0.0
      %707 = vmatprep.subr.mxu0 0.0
      %708 = vmatpush1.msra.mxu0 0.0
      %709 = vmatprep.subr.mxu0 0.0
      %710 = vmatpush1.msra.mxu0 0.0
      %711 = vmatprep.subr.mxu0 0.0
      %712 = vmatpush1.msra.mxu0 0.0
      %713 = vmatprep.subr.mxu0 0.0
      %714 = vmatpush1.msra.mxu0 0.0
      %715 = vmatprep.subr.mxu0 0.0
      %716 = vmatpush1.msra.mxu0 0.0
      %717 = vmatprep.subr.mxu0 0.0
      %718 = vmatpush1.msra.mxu0 0.0
      %719 = vmatprep.subr.mxu0 0.0
      %720 = vmatpush1.msra.mxu0 0.0
      %721 = vmatprep.subr.mxu0 0.0
      %722 = vmatpush1.msra.mxu0 0.0
      %723 = vmatprep.subr.mxu0 0.0
      %724 = vmatpush1.msra.mxu0 0.0
      %725 = vmatprep.subr.mxu0 0.0
      %726 = vmatpush1.msra.mxu0 0.0
      %727 = vmatprep.subr.mxu0 0.0
      %728 = vmatpush1.msra.mxu0 0.0
      %729 = vmatprep.subr.mxu0 0.0
      %730 = vmatpush1.msra.mxu0 %v703
      %731 = vmatprep.subr.mxu0 0.0
      %732 = vmatpush1.msra.mxu0 %v697
      %733 = vmatprep.subr.mxu0 0.0
      %734 = vmatpush1.msra.mxu0 %v696
      %735 = vmatprep.subr.mxu0 0.0
      %736 = vmatpush1.msra.mxu0 %v695
      %737 = vmatprep.subr.mxu0 0.0
      %738 = vmatpush2.msra.mxu0 0.0
      %739 = vmatprep.subr.mxu0 0.0
      %740 = vmatpush2.msra.mxu0 0.0
      %741 = vmatprep.subr.mxu0 0.0
      %742 = vmatpush2.msra.mxu0 0.0
      %743 = vmatprep.subr.mxu0 0.0
      %744 = vmatpush2.msra.mxu0 0.0
      %745 = vmatprep.subr.mxu0 0.0
      %746 = vmatpush2.msra.mxu0 0.0
      %747 = vmatprep.subr.mxu0 0.0
      %748 = vmatpush2.msra.mxu0 0.0
      %749 = vmatprep.subr.mxu0 0.0
      %750 = vmatpush2.msra.mxu0 0.0
      %751 = vmatprep.subr.mxu0 0.0
      %752 = vmatpush2.msra.mxu0 0.0
      %753 = vmatprep.subr.mxu0 0.0
      %754 = vmatpush2.msra.mxu0 0.0
      %755 = vmatprep.subr.mxu0 0.0
      %756 = vmatpush2.msra.mxu0 0.0
      %757 = vmatprep.subr.mxu0 0.0
      %758 = vmatpush2.msra.mxu0 0.0
      %759 = vmatprep.subr.mxu0 0.0
      %760 = vmatpush2.msra.mxu0 0.0
      %761 = vmatprep.subr.mxu0 0.0
      %762 = vmatpush2.msra.mxu0 0.0
      %763 = vmatprep.subr.mxu0 0.0
      %764 = vmatpush2.msra.mxu0 0.0
      %765 = vmatprep.subr.mxu0 0.0
      %766 = vmatpush2.msra.mxu0 0.0
      %767 = vmatprep.subr.mxu0 0.0
      %768 = vmatpush2.msra.mxu0 0.0
      %769 = vmatprep.mubr.f32.mxu0 0.0
      %770 = vmatmul.mubr.f32.gmra.mxu0 %v700
      %v771 = vpop.f32.mrf.mxu0
      %v772 = vadd.f32 0.0, %v771
      %v773 = vpop.f32.mrf.mxu0
      %774 = vdwg.mxu0
      %v775 = vadd.f32 %v692, %v772
      %v776 = vld [vmem:[%s333 + $0x2] sm:$0xff]
      %s777 = scalar_lea.vmem %s3, 160
      %v778 = vld [vmem:[%s777] sm:$0xff]
      %v779 = vld [vmem:[%s777 + $0x8] sm:$0xff]
      %v780 = vld [vmem:[%s777 + $0x10] sm:$0xff]
      %v781 = vld [vmem:[%s777 + $0x18] sm:$0x3f]
      %v783 = vsel %vm373, %v776, 0
      %v786 = vsel %vm377, %v781, 0
      %788 = vmatprep.subr.mxu0 0.0
      %789 = vmatpush1.msra.mxu0 0.0
      %790 = vmatprep.subr.mxu0 0.0
      %791 = vmatpush1.msra.mxu0 0.0
      %792 = vmatprep.subr.mxu0 0.0
      %793 = vmatpush1.msra.mxu0 0.0
      %794 = vmatprep.subr.mxu0 0.0
      %795 = vmatpush1.msra.mxu0 0.0
      %796 = vmatprep.subr.mxu0 0.0
      %797 = vmatpush1.msra.mxu0 0.0
      %798 = vmatprep.subr.mxu0 0.0
      %799 = vmatpush1.msra.mxu0 0.0
      %800 = vmatprep.subr.mxu0 0.0
      %801 = vmatpush1.msra.mxu0 0.0
      %802 = vmatprep.subr.mxu0 0.0
      %803 = vmatpush1.msra.mxu0 0.0
      %804 = vmatprep.subr.mxu0 0.0
      %805 = vmatpush1.msra.mxu0 0.0
      %806 = vmatprep.subr.mxu0 0.0
      %807 = vmatpush1.msra.mxu0 0.0
      %808 = vmatprep.subr.mxu0 0.0
      %809 = vmatpush1.msra.mxu0 0.0
      %810 = vmatprep.subr.mxu0 0.0
      %811 = vmatpush1.msra.mxu0 0.0
      %812 = vmatprep.subr.mxu0 0.0
      %813 = vmatpush1.msra.mxu0 %v786
      %814 = vmatprep.subr.mxu0 0.0
      %815 = vmatpush1.msra.mxu0 %v780
      %816 = vmatprep.subr.mxu0 0.0
      %817 = vmatpush1.msra.mxu0 %v779
      %818 = vmatprep.subr.mxu0 0.0
      %819 = vmatpush1.msra.mxu0 %v778
      %820 = vmatprep.subr.mxu0 0.0
      %821 = vmatpush2.msra.mxu0 0.0
      %822 = vmatprep.subr.mxu0 0.0
      %823 = vmatpush2.msra.mxu0 0.0
      %824 = vmatprep.subr.mxu0 0.0
      %825 = vmatpush2.msra.mxu0 0.0
      %826 = vmatprep.subr.mxu0 0.0
      %827 = vmatpush2.msra.mxu0 0.0
      %828 = vmatprep.subr.mxu0 0.0
      %829 = vmatpush2.msra.mxu0 0.0
      %830 = vmatprep.subr.mxu0 0.0
      %831 = vmatpush2.msra.mxu0 0.0
      %832 = vmatprep.subr.mxu0 0.0
      %833 = vmatpush2.msra.mxu0 0.0
      %834 = vmatprep.subr.mxu0 0.0
      %835 = vmatpush2.msra.mxu0 0.0
      %836 = vmatprep.subr.mxu0 0.0
      %837 = vmatpush2.msra.mxu0 0.0
      %838 = vmatprep.subr.mxu0 0.0
      %839 = vmatpush2.msra.mxu0 0.0
      %840 = vmatprep.subr.mxu0 0.0
      %841 = vmatpush2.msra.mxu0 0.0
      %842 = vmatprep.subr.mxu0 0.0
      %843 = vmatpush2.msra.mxu0 0.0
      %844 = vmatprep.subr.mxu0 0.0
      %845 = vmatpush2.msra.mxu0 0.0
      %846 = vmatprep.subr.mxu0 0.0
      %847 = vmatpush2.msra.mxu0 0.0
      %848 = vmatprep.subr.mxu0 0.0
      %849 = vmatpush2.msra.mxu0 0.0
      %850 = vmatprep.subr.mxu0 0.0
      %851 = vmatpush2.msra.mxu0 0.0
      %852 = vmatprep.mubr.f32.mxu0 0.0
      %853 = vmatmul.mubr.f32.gmra.mxu0 %v783
      %v854 = vpop.f32.mrf.mxu0
      %v855 = vadd.f32 0.0, %v854
      %v856 = vpop.f32.mrf.mxu0
      %857 = vdwg.mxu0
      %v858 = vadd.f32 %v775, %v855
      %v859 = vld [vmem:[%s344] sm:$0xff]
      %s860 = scalar_lea.vmem %s3, 192
      %v861 = vld [vmem:[%s860] sm:$0xff]
      %v862 = vld [vmem:[%s860 + $0x8] sm:$0xff]
      %v863 = vld [vmem:[%s860 + $0x10] sm:$0xff]
      %v864 = vld [vmem:[%s860 + $0x18] sm:$0x3f]
      %v866 = vsel %vm373, %v859, 0
      %v869 = vsel %vm377, %v864, 0
      %871 = vmatprep.subr.mxu0 0.0
      %872 = vmatpush1.msra.mxu0 0.0
      %873 = vmatprep.subr.mxu0 0.0
      %874 = vmatpush1.msra.mxu0 0.0
      %875 = vmatprep.subr.mxu0 0.0
      %876 = vmatpush1.msra.mxu0 0.0
      %877 = vmatprep.subr.mxu0 0.0
      %878 = vmatpush1.msra.mxu0 0.0
      %879 = vmatprep.subr.mxu0 0.0
      %880 = vmatpush1.msra.mxu0 0.0
      %881 = vmatprep.subr.mxu0 0.0
      %882 = vmatpush1.msra.mxu0 0.0
      %883 = vmatprep.subr.mxu0 0.0
      %884 = vmatpush1.msra.mxu0 0.0
      %885 = vmatprep.subr.mxu0 0.0
      %886 = vmatpush1.msra.mxu0 0.0
      %887 = vmatprep.subr.mxu0 0.0
      %888 = vmatpush1.msra.mxu0 0.0
      %889 = vmatprep.subr.mxu0 0.0
      %890 = vmatpush1.msra.mxu0 0.0
      %891 = vmatprep.subr.mxu0 0.0
      %892 = vmatpush1.msra.mxu0 0.0
      %893 = vmatprep.subr.mxu0 0.0
      %894 = vmatpush1.msra.mxu0 0.0
      %895 = vmatprep.subr.mxu0 0.0
      %896 = vmatpush1.msra.mxu0 %v869
      %897 = vmatprep.subr.mxu0 0.0
      %898 = vmatpush1.msra.mxu0 %v863
      %899 = vmatprep.subr.mxu0 0.0
      %900 = vmatpush1.msra.mxu0 %v862
      %901 = vmatprep.subr.mxu0 0.0
      %902 = vmatpush1.msra.mxu0 %v861
      %903 = vmatprep.subr.mxu0 0.0
      %904 = vmatpush2.msra.mxu0 0.0
      %905 = vmatprep.subr.mxu0 0.0
      %906 = vmatpush2.msra.mxu0 0.0
      %907 = vmatprep.subr.mxu0 0.0
      %908 = vmatpush2.msra.mxu0 0.0
      %909 = vmatprep.subr.mxu0 0.0
      %910 = vmatpush2.msra.mxu0 0.0
      %911 = vmatprep.subr.mxu0 0.0
      %912 = vmatpush2.msra.mxu0 0.0
      %913 = vmatprep.subr.mxu0 0.0
      %914 = vmatpush2.msra.mxu0 0.0
      %915 = vmatprep.subr.mxu0 0.0
      %916 = vmatpush2.msra.mxu0 0.0
      %917 = vmatprep.subr.mxu0 0.0
      %918 = vmatpush2.msra.mxu0 0.0
      %919 = vmatprep.subr.mxu0 0.0
      %920 = vmatpush2.msra.mxu0 0.0
      %921 = vmatprep.subr.mxu0 0.0
      %922 = vmatpush2.msra.mxu0 0.0
      %923 = vmatprep.subr.mxu0 0.0
      %924 = vmatpush2.msra.mxu0 0.0
      %925 = vmatprep.subr.mxu0 0.0
      %926 = vmatpush2.msra.mxu0 0.0
      %927 = vmatprep.subr.mxu0 0.0
      %928 = vmatpush2.msra.mxu0 0.0
      %929 = vmatprep.subr.mxu0 0.0
      %930 = vmatpush2.msra.mxu0 0.0
      %931 = vmatprep.subr.mxu0 0.0
      %932 = vmatpush2.msra.mxu0 0.0
      %933 = vmatprep.subr.mxu0 0.0
      %934 = vmatpush2.msra.mxu0 0.0
      %935 = vmatprep.mubr.f32.mxu0 0.0
      %936 = vmatmul.mubr.f32.gmra.mxu0 %v866
      %v937 = vpop.f32.mrf.mxu0
      %v938 = vadd.f32 0.0, %v937
      %v939 = vpop.f32.mrf.mxu0
      %940 = vdwg.mxu0
      %v941 = vadd.f32 %v858, %v938
      %v942 = vld [vmem:[%s344 + $0x1] sm:$0xff]
      %s943 = scalar_lea.vmem %s3, 224
      %v944 = vld [vmem:[%s943] sm:$0xff]
      %v945 = vld [vmem:[%s943 + $0x8] sm:$0xff]
      %v946 = vld [vmem:[%s943 + $0x10] sm:$0xff]
      %v947 = vld [vmem:[%s943 + $0x18] sm:$0x3f]
      %v949 = vsel %vm373, %v942, 0
      %v952 = vsel %vm377, %v947, 0
      %954 = vmatprep.subr.mxu0 0.0
      %955 = vmatpush1.msra.mxu0 0.0
      %956 = vmatprep.subr.mxu0 0.0
      %957 = vmatpush1.msra.mxu0 0.0
      %958 = vmatprep.subr.mxu0 0.0
      %959 = vmatpush1.msra.mxu0 0.0
      %960 = vmatprep.subr.mxu0 0.0
      %961 = vmatpush1.msra.mxu0 0.0
      %962 = vmatprep.subr.mxu0 0.0
      %963 = vmatpush1.msra.mxu0 0.0
      %964 = vmatprep.subr.mxu0 0.0
      %965 = vmatpush1.msra.mxu0 0.0
      %966 = vmatprep.subr.mxu0 0.0
      %967 = vmatpush1.msra.mxu0 0.0
      %968 = vmatprep.subr.mxu0 0.0
      %969 = vmatpush1.msra.mxu0 0.0
      %970 = vmatprep.subr.mxu0 0.0
      %971 = vmatpush1.msra.mxu0 0.0
      %972 = vmatprep.subr.mxu0 0.0
      %973 = vmatpush1.msra.mxu0 0.0
      %974 = vmatprep.subr.mxu0 0.0
      %975 = vmatpush1.msra.mxu0 0.0
      %976 = vmatprep.subr.mxu0 0.0
      %977 = vmatpush1.msra.mxu0 0.0
      %978 = vmatprep.subr.mxu0 0.0
      %979 = vmatpush1.msra.mxu0 %v952
      %980 = vmatprep.subr.mxu0 0.0
      %981 = vmatpush1.msra.mxu0 %v946
      %982 = vmatprep.subr.mxu0 0.0
      %983 = vmatpush1.msra.mxu0 %v945
      %984 = vmatprep.subr.mxu0 0.0
      %985 = vmatpush1.msra.mxu0 %v944
      %986 = vmatprep.subr.mxu0 0.0
      %987 = vmatpush2.msra.mxu0 0.0
      %988 = vmatprep.subr.mxu0 0.0
      %989 = vmatpush2.msra.mxu0 0.0
      %990 = vmatprep.subr.mxu0 0.0
      %991 = vmatpush2.msra.mxu0 0.0
      %992 = vmatprep.subr.mxu0 0.0
      %993 = vmatpush2.msra.mxu0 0.0
      %994 = vmatprep.subr.mxu0 0.0
      %995 = vmatpush2.msra.mxu0 0.0
      %996 = vmatprep.subr.mxu0 0.0
      %997 = vmatpush2.msra.mxu0 0.0
      %998 = vmatprep.subr.mxu0 0.0
      %999 = vmatpush2.msra.mxu0 0.0
      %1000 = vmatprep.subr.mxu0 0.0
      %1001 = vmatpush2.msra.mxu0 0.0
      %1002 = vmatprep.subr.mxu0 0.0
      %1003 = vmatpush2.msra.mxu0 0.0
      %1004 = vmatprep.subr.mxu0 0.0
      %1005 = vmatpush2.msra.mxu0 0.0
      %1006 = vmatprep.subr.mxu0 0.0
      %1007 = vmatpush2.msra.mxu0 0.0
      %1008 = vmatprep.subr.mxu0 0.0
      %1009 = vmatpush2.msra.mxu0 0.0
      %1010 = vmatprep.subr.mxu0 0.0
      %1011 = vmatpush2.msra.mxu0 0.0
      %1012 = vmatprep.subr.mxu0 0.0
      %1013 = vmatpush2.msra.mxu0 0.0
      %1014 = vmatprep.subr.mxu0 0.0
      %1015 = vmatpush2.msra.mxu0 0.0
      %1016 = vmatprep.subr.mxu0 0.0
      %1017 = vmatpush2.msra.mxu0 0.0
      %1018 = vmatprep.mubr.f32.mxu0 0.0
      %1019 = vmatmul.mubr.f32.gmra.mxu0 %v949
      %v1020 = vpop.f32.mrf.mxu0
      %v1021 = vadd.f32 0.0, %v1020
      %v1022 = vpop.f32.mrf.mxu0
      %1023 = vdwg.mxu0
      %v1024 = vadd.f32 %v941, %v1021
      %v1025 = vld [vmem:[%s344 + $0x2] sm:$0xff]
      %s1026 = scalar_lea.vmem %s3, 256
      %v1027 = vld [vmem:[%s1026] sm:$0xff]
      %v1028 = vld [vmem:[%s1026 + $0x8] sm:$0xff]
      %v1029 = vld [vmem:[%s1026 + $0x10] sm:$0xff]
      %v1030 = vld [vmem:[%s1026 + $0x18] sm:$0x3f]
      %v1032 = vsel %vm373, %v1025, 0
      %v1035 = vsel %vm377, %v1030, 0
      %1037 = vmatprep.subr.mxu0 0.0
      %1038 = vmatpush1.msra.mxu0 0.0
      %1039 = vmatprep.subr.mxu0 0.0
      %1040 = vmatpush1.msra.mxu0 0.0
      %1041 = vmatprep.subr.mxu0 0.0
      %1042 = vmatpush1.msra.mxu0 0.0
      %1043 = vmatprep.subr.mxu0 0.0
      %1044 = vmatpush1.msra.mxu0 0.0
      %1045 = vmatprep.subr.mxu0 0.0
      %1046 = vmatpush1.msra.mxu0 0.0
      %1047 = vmatprep.subr.mxu0 0.0
      %1048 = vmatpush1.msra.mxu0 0.0
      %1049 = vmatprep.subr.mxu0 0.0
      %1050 = vmatpush1.msra.mxu0 0.0
      %1051 = vmatprep.subr.mxu0 0.0
      %1052 = vmatpush1.msra.mxu0 0.0
      %1053 = vmatprep.subr.mxu0 0.0
      %1054 = vmatpush1.msra.mxu0 0.0
      %1055 = vmatprep.subr.mxu0 0.0
      %1056 = vmatpush1.msra.mxu0 0.0
      %1057 = vmatprep.subr.mxu0 0.0
      %1058 = vmatpush1.msra.mxu0 0.0
      %1059 = vmatprep.subr.mxu0 0.0
      %1060 = vmatpush1.msra.mxu0 0.0
      %1061 = vmatprep.subr.mxu0 0.0
      %1062 = vmatpush1.msra.mxu0 %v1035
      %1063 = vmatprep.subr.mxu0 0.0
      %1064 = vmatpush1.msra.mxu0 %v1029
      %1065 = vmatprep.subr.mxu0 0.0
      %1066 = vmatpush1.msra.mxu0 %v1028
      %1067 = vmatprep.subr.mxu0 0.0
      %1068 = vmatpush1.msra.mxu0 %v1027
      %1069 = vmatprep.subr.mxu0 0.0
      %1070 = vmatpush2.msra.mxu0 0.0
      %1071 = vmatprep.subr.mxu0 0.0
      %1072 = vmatpush2.msra.mxu0 0.0
      %1073 = vmatprep.subr.mxu0 0.0
      %1074 = vmatpush2.msra.mxu0 0.0
      %1075 = vmatprep.subr.mxu0 0.0
      %1076 = vmatpush2.msra.mxu0 0.0
      %1077 = vmatprep.subr.mxu0 0.0
      %1078 = vmatpush2.msra.mxu0 0.0
      %1079 = vmatprep.subr.mxu0 0.0
      %1080 = vmatpush2.msra.mxu0 0.0
      %1081 = vmatprep.subr.mxu0 0.0
      %1082 = vmatpush2.msra.mxu0 0.0
      %1083 = vmatprep.subr.mxu0 0.0
      %1084 = vmatpush2.msra.mxu0 0.0
      %1085 = vmatprep.subr.mxu0 0.0
      %1086 = vmatpush2.msra.mxu0 0.0
      %1087 = vmatprep.subr.mxu0 0.0
      %1088 = vmatpush2.msra.mxu0 0.0
      %1089 = vmatprep.subr.mxu0 0.0
      %1090 = vmatpush2.msra.mxu0 0.0
      %1091 = vmatprep.subr.mxu0 0.0
      %1092 = vmatpush2.msra.mxu0 0.0
      %1093 = vmatprep.subr.mxu0 0.0
      %1094 = vmatpush2.msra.mxu0 0.0
      %1095 = vmatprep.subr.mxu0 0.0
      %1096 = vmatpush2.msra.mxu0 0.0
      %1097 = vmatprep.subr.mxu0 0.0
      %1098 = vmatpush2.msra.mxu0 0.0
      %1099 = vmatprep.subr.mxu0 0.0
      %1100 = vmatpush2.msra.mxu0 0.0
      %1101 = vmatprep.mubr.f32.mxu0 0.0
      %1102 = vmatmul.mubr.f32.gmra.mxu0 %v1032
      %v1103 = vpop.f32.mrf.mxu0
      %v1104 = vadd.f32 0.0, %v1103
      %v1105 = vpop.f32.mrf.mxu0
      %1106 = vdwg.mxu0
      %v1107 = vadd.f32 %v1024, %v1104
      %vm1108 = vcmask 523264
      %1109 = vst.msk [vmem:[%s353] sm:$0xff] %vm1108, %v1107
      %v1110 = vsel %vm1108, %v1107, 0.0
      %v1111 = vrot.slane %v1110, 4
      %v1112 = vadd.f32 %v1110, %v1111
      %v1113 = vrot.slane %v1112, 2
      %v1114 = vadd.f32 %v1112, %v1113
      %v1115 = vrot.slane %v1114, 1
      %v1116 = vadd.f32 %v1114, %v1115
      %v1117 = vmul.f32 %v1107, %v1107
      %v1118 = vsel %vm1108, %v1117, 0.0
      %v1119 = vrot.slane %v1118, 4
      %v1120 = vadd.f32 %v1118, %v1119
      %v1121 = vrot.slane %v1120, 2
      %v1122 = vadd.f32 %v1120, %v1121
      %v1123 = vrot.slane %v1122, 1
      %v1124 = vadd.f32 %v1122, %v1123
      %vm1125 = vcmask 1040384
      %v1126 = vsel %vm1125, %v1116, %v1124
      %vm1127 = vcmask 517120
      %1128 = vst.msk [vmem:[%s361] sm:$0x3] %vm1127, %v1126
      %p1129 = scmp.lt.s32.totalorder %s21, 1
      %s1130 = scalar_select %p1129, %s21, 1
      %p1131 = scmp.lt.s32.totalorder %s22, 7
      %s1132 = scalar_select %p1131, %s22, 7
      %s1133 = smul.addr %s1130, 8
      %s1134 = sadd.s32 %s1132, %s1133
      %s1135 = smul.addr %s1134, 8
      %s1136 = scalar_lea.vmem %s4, %s1135
      %p1137 = scmp.lt.s32.totalorder %s21, 1
      %s1138 = scalar_select %p1137, %s21, 1
      %p1139 = scmp.lt.s32.totalorder %s22, 7
      %s1140 = scalar_select %p1139, %s22, 7
      %s1141 = smul.addr %s1138, 8
      %s1142 = sadd.s32 %s1140, %s1141
      %s1143 = smul.addr %s1142, 2
      %s1144 = scalar_lea.vmem %s5, %s1143
      // Predicated region
      $region37: #{double_conv3d.4} parent=35 // pred_check
        %p1145 = pneg %p158
      $region38: #{double_conv3d.4} parent=35 // pred_check_branch
        %1147 = sbr.rel (%p1145) target = $region40
      $region39: #{double_conv3d.4} parent=35 // pred_region
        _
      $region40: #{double_conv3d.4} parent=35 // pred_fallthru
        _
      // Predicated region
      $region41: #{double_conv3d.4} parent=35 // pred_check
        %p1148 = pneg %p186
      $region42: #{double_conv3d.4} parent=35 // pred_check_branch
        %1150 = sbr.rel (%p1148) target = $region44
      $region43: #{double_conv3d.4} parent=35 // pred_region
        _
      $region44: #{double_conv3d.4} parent=35 // pred_fallthru
        _
    $region36: #{double_conv3d.4} parent=5 // pred_fallthru
      _
    %p1151 = scmp.le.s32.totalorder 2, %s12
    // Predicated region
    $region45: #{double_conv3d.4} parent=5 // pred_check
      %p1152 = pneg %p1151
    $region46: #{double_conv3d.4} parent=5 // pred_check_branch
      %1154 = sbr.rel (%p1152) target = $region48
    $region47: #{double_conv3d.4} parent=5 // pred_region
      %s1155 = ssub.s32 %s12, 2
      // Predicated region
      $region49: #{double_conv3d.4} parent=47 // pred_check
        %p1156 = pneg %p164
      $region50: #{double_conv3d.4} parent=47 // pred_check_branch
        %1158 = sbr.rel (%p1156) target = $region52
      $region51: #{double_conv3d.4} parent=47 // pred_region
        %p1159 = scmp.lt.s32.totalorder %s23, 1
        %s1160 = scalar_select %p1159, %s23, 1
        %p1161 = scmp.lt.s32.totalorder %s24, 7
        %s1162 = scalar_select %p1161, %s24, 7
        %s1163 = smul.addr %s1160, 8
        %s1164 = sadd.s32 %s1162, %s1163
        %s1165 = smul.addr %s1164, 8
        %s1166 = scalar_lea.vmem %s4, %s1165
      $region52: #{double_conv3d.4} parent=47 // pred_fallthru
        _
      // Predicated region
      $region53: #{double_conv3d.4} parent=47 // pred_check
        %p1167 = pneg %p192
      $region54: #{double_conv3d.4} parent=47 // pred_check_branch
        %1169 = sbr.rel (%p1167) target = $region56
      $region55: #{double_conv3d.4} parent=47 // pred_region
        %p1170 = scmp.lt.s32.totalorder %s23, 1
        %s1171 = scalar_select %p1170, %s23, 1
        %p1172 = scmp.lt.s32.totalorder %s24, 7
        %s1173 = scalar_select %p1172, %s24, 7
        %s1174 = smul.addr %s1171, 8
        %s1175 = sadd.s32 %s1173, %s1174
        %s1176 = smul.addr %s1175, 2
        %s1177 = scalar_lea.vmem %s5, %s1176
      $region56: #{double_conv3d.4} parent=47 // pred_fallthru
        _
    $region48: #{double_conv3d.4} parent=5 // pred_fallthru
      _
  $region6: #{double_conv3d.4} parent=0 // loop_footer
    %s16 = sadd.s32 1, %s12
  $region7: #{double_conv3d.4} parent=0 // loop_footer_branch
    %11 = sbr.rel target = $region3
  $region8: #{double_conv3d.4} parent=0 // loop_exit
    _

// kernel: double_conv3d.7
$region0: #{double_conv3d.7}
  #allocation0 [shape = 'u32[]', space=smem, size = 0x4, offset = 0x4, fixed_abs, tag = 'smem constant byte address 0x4 - core index']
  #allocation1 [shape = 'u32[144,128]{1,0:T(1,128)}', space=vmem, size = 0x12000, scoped, tag = 'internal scratch']
  %s0 = inlined_call_operand.vmem [shape: f32[2,8,8,64], index: 0, kind: input, shape index: {}]
  %s1 = inlined_call_operand.vmem [shape: f32[1,64], index: 1, kind: input, shape index: {}]
  %s2 = inlined_call_operand.vmem [shape: f32[1,64], index: 2, kind: input, shape index: {}]
  %s3 = inlined_call_operand.vmem [shape: f32[2,8,8,64], index: 3, kind: output, shape index: {}]
  %s4 = sld [smem:[#allocation0]]
  $region45: #{double_conv3d.7} parent=0
    _
  %s6 = ssub.s32 1, %s4
  %s7 = scalar_select 0, %s6, %s4
  loop: start=0, step=1, limit=18
  $region2: #{double_conv3d.7} parent=0 // loop_pre_header
    _
  $region3: #{double_conv3d.7} parent=0 // loop_header
    %s9 = sphi 0, %s13
    %p10 = scmp.ge.s32.totalorder %s9, 18
    %s16 = sphi 0, %s28
    %s17 = sphi 0, %s24
    %s18 = sphi 0, %s16
    %s19 = sphi 0, %s17
    %s20 = sphi 0, %s18
    %s21 = sphi 0, %s19
    %s33 = sphi 0, %s35
    %s36 = sphi 0, %s33
    %s37 = sphi 0, %s36
    %s53 = sphi 0, %s37
    %s57 = sphi 0, %s57
    %s59 = sphi 0, %s57
    %s60 = sphi 0, %s59
    %s74 = sphi 0, %s60
    %s78 = sphi 0, %s78
    %s80 = sphi 0, %s78
    %s81 = sphi 0, %s80
    %s95 = sphi 0, %s81
    %s103 = sphi 0, %s105
    %s106 = sphi 0, %s103
    %s107 = sphi 0, %s106
    %s123 = sphi 0, %s107
  $region4: #{double_conv3d.7} parent=0 // loop_header_branch
    %12 = sbr.rel (%p10) target = $region8
  $region5: #{double_conv3d.7} parent=0 // loop_body
    %s14 = ssub.s32 %s9, 1
    %s15 = ssub.s32 %s9, 2
    %s22 = sadd.s32 1, %s17
    %p23 = scmp.ge.s32.totalorder %s22, 8
    %s24 = scalar_select %p23, 0, %s22
    %s25 = sadd.s32 1, %s16
    %s26 = scalar_select %p23, %s25, %s16
    %p27 = scmp.ge.s32.totalorder %s26, 2
    %s28 = scalar_select %p27, 0, %s26
    %s29 = ssub.s32 %s16, %s28
    %s30 = ssub.s32 %s17, %s24
    %s31 = sor.u32 %s29, %s30
    %p32 = scmp.eq.s32.totalorder %s31, 0
    %s34 = sadd.s32 %s33, 1
    %s35 = scalar_select %p32, %s33, %s34
    %p38 = pneg %p32
    %p39 = scmp.eq.s32.totalorder %s9, 15
    %p40 = por %p38, %p39
    %p41 = scmp.ne.s32.totalorder %s33, %s36
    %p42 = scmp.eq.s32.totalorder %s9, 0
    %p43 = por %p41, %p42
    %p44 = scmp.ne.s32.totalorder %s33, %s36
    %p45 = scmp.eq.s32.totalorder %s14, 15
    %p46 = por %p44, %p45
    %p47 = scmp.ne.s32.totalorder %s36, %s37
    %p48 = scmp.eq.s32.totalorder %s14, 0
    %p49 = por %p47, %p48
    %p50 = scmp.ne.s32.totalorder %s36, %s37
    %p51 = scmp.eq.s32.totalorder %s15, 15
    %p52 = por %p50, %p51
    %p54 = scmp.ne.s32.totalorder %s37, %s53
    %p55 = scmp.eq.s32.totalorder %s15, 0
    %p56 = por %p54, %p55
    %s58 = sadd.s32 %s57, 1
    %p61 = scmp.eq.s32.totalorder %s9, 15
    %p62 = scmp.ne.s32.totalorder %s57, %s59
    %p63 = scmp.eq.s32.totalorder %s9, 0
    %p64 = por %p62, %p63
    %p65 = scmp.ne.s32.totalorder %s57, %s59
    %p66 = scmp.eq.s32.totalorder %s14, 15
    %p67 = por %p65, %p66
    %p68 = scmp.ne.s32.totalorder %s59, %s60
    %p69 = scmp.eq.s32.totalorder %s14, 0
    %p70 = por %p68, %p69
    %p71 = scmp.ne.s32.totalorder %s59, %s60
    %p72 = scmp.eq.s32.totalorder %s15, 15
    %p73 = por %p71, %p72
    %p75 = scmp.ne.s32.totalorder %s60, %s74
    %p76 = scmp.eq.s32.totalorder %s15, 0
    %p77 = por %p75, %p76
    %s79 = sadd.s32 %s78, 1
    %p82 = scmp.eq.s32.totalorder %s9, 15
    %p83 = scmp.ne.s32.totalorder %s78, %s80
    %p84 = scmp.eq.s32.totalorder %s9, 0
    %p85 = por %p83, %p84
    %p86 = scmp.ne.s32.totalorder %s78, %s80
    %p87 = scmp.eq.s32.totalorder %s14, 15
    %p88 = por %p86, %p87
    %p89 = scmp.ne.s32.totalorder %s80, %s81
    %p90 = scmp.eq.s32.totalorder %s14, 0
    %p91 = por %p89, %p90
    %p92 = scmp.ne.s32.totalorder %s80, %s81
    %p93 = scmp.eq.s32.totalorder %s15, 15
    %p94 = por %p92, %p93
    %p96 = scmp.ne.s32.totalorder %s81, %s95
    %p97 = scmp.eq.s32.totalorder %s15, 0
    %p98 = por %p96, %p97
    %s99 = ssub.s32 %s16, %s28
    %s100 = ssub.s32 %s17, %s24
    %s101 = sor.u32 %s99, %s100
    %p102 = scmp.eq.s32.totalorder %s101, 0
    %s104 = sadd.s32 %s103, 1
    %s105 = scalar_select %p102, %s103, %s104
    %p108 = pneg %p102
    %p109 = scmp.eq.s32.totalorder %s9, 15
    %p110 = por %p108, %p109
    %p111 = scmp.ne.s32.totalorder %s103, %s106
    %p112 = scmp.eq.s32.totalorder %s9, 0
    %p113 = por %p111, %p112
    %p114 = scmp.ne.s32.totalorder %s103, %s106
    %p115 = scmp.eq.s32.totalorder %s14, 15
    %p116 = por %p114, %p115
    %p117 = scmp.ne.s32.totalorder %s106, %s107
    %p118 = scmp.eq.s32.totalorder %s14, 0
    %p119 = por %p117, %p118
    %p120 = scmp.ne.s32.totalorder %s106, %s107
    %p121 = scmp.eq.s32.totalorder %s15, 15
    %p122 = por %p120, %p121
    %p124 = scmp.ne.s32.totalorder %s107, %s123
    %p125 = scmp.eq.s32.totalorder %s15, 0
    %p126 = por %p124, %p125
    %p127 = scmp.le.s32.totalorder 1, %s9
    %p128 = scmp.lt.s32.totalorder %s9, 17
    %p129 = pnand %p127, %p128
    %p130 = pneg %p129
    // Predicated region
    $region9: #{double_conv3d.7} parent=5 // pred_check
      _
    $region10: #{double_conv3d.7} parent=5 // pred_check_branch
      %132 = sbr.rel (%p129) target = $region12
    $region11: #{double_conv3d.7} parent=5 // pred_region
      %s133 = ssub.s32 %s9, 1
      // Predicated region
      $region13: #{double_conv3d.7} parent=11 // pred_check
        %p134 = pneg %p70
      $region14: #{double_conv3d.7} parent=11 // pred_check_branch
        %136 = sbr.rel (%p134) target = $region16
      $region15: #{double_conv3d.7} parent=11 // pred_region
        _
      $region16: #{double_conv3d.7} parent=11 // pred_fallthru
        _
      // Predicated region
      $region17: #{double_conv3d.7} parent=11 // pred_check
        %p137 = pneg %p91
      $region18: #{double_conv3d.7} parent=11 // pred_check_branch
        %139 = sbr.rel (%p137) target = $region20
      $region19: #{double_conv3d.7} parent=11 // pred_region
        _
      $region20: #{double_conv3d.7} parent=11 // pred_fallthru
        _
    $region12: #{double_conv3d.7} parent=5 // pred_fallthru
      _
    %p140 = scmp.lt.s32.totalorder %s9, 16
    // Predicated region
    $region21: #{double_conv3d.7} parent=5 // pred_check
      %p141 = pneg %p140
    $region22: #{double_conv3d.7} parent=5 // pred_check_branch
      %143 = sbr.rel (%p141) target = $region24
    $region23: #{double_conv3d.7} parent=5 // pred_region
      // Predicated region
      $region25: #{double_conv3d.7} parent=23 // pred_check
        %p144 = pneg %p43
      $region26: #{double_conv3d.7} parent=23 // pred_check_branch
        %146 = sbr.rel (%p144) target = $region28
      $region27: #{double_conv3d.7} parent=23 // pred_region
        %p147 = scmp.lt.s32.totalorder %s16, 1
        %s148 = scalar_select %p147, %s16, 1
        %p149 = scmp.lt.s32.totalorder %s17, 7
        %s150 = scalar_select %p149, %s17, 7
        %s151 = smul.addr %s148, 8
        %s152 = sadd.s32 %s150, %s151
        %s153 = smul.addr %s152, 8
        %s154 = scalar_lea.vmem %s0, %s153
      $region28: #{double_conv3d.7} parent=23 // pred_fallthru
        _
    $region24: #{double_conv3d.7} parent=5 // pred_fallthru
      _
    %p155 = scmp.le.s32.totalorder 1, %s9
    %p156 = scmp.lt.s32.totalorder %s9, 17
    %p157 = pnand %p155, %p156
    %p158 = pneg %p157
    // Predicated region
    $region29: #{double_conv3d.7} parent=5 // pred_check
      _
    $region30: #{double_conv3d.7} parent=5 // pred_check_branch
      %160 = sbr.rel (%p157) target = $region32
    $region31: #{double_conv3d.7} parent=5 // pred_region
      %s161 = ssub.s32 %s9, 1
      %p162 = scmp.lt.s32.totalorder %s18, 1
      %s163 = scalar_select %p162, %s18, 1
      %p164 = scmp.lt.s32.totalorder %s19, 7
      %s165 = scalar_select %p164, %s19, 7
      %s166 = smul.addr %s163, 8
      %s167 = sadd.s32 %s165, %s166
      %s168 = smul.addr %s167, 8
      %s169 = scalar_lea.vmem %s0, %s168
      %p170 = pneg %p49
      %p171 = pneg %p46
      %p172 = pneg %p70
      %p173 = pneg %p67
      %p174 = pneg %p91
      %p175 = pneg %p88
      %p176 = pneg %p119
      %p177 = pneg %p116
      %p178 = scmp.lt.s32.totalorder %s18, 1
      %s179 = scalar_select %p178, %s18, 1
      %p180 = scmp.lt.s32.totalorder %s19, 7
      %s181 = scalar_select %p180, %s19, 7
      %s182 = smul.addr %s179, 8
      %s183 = sadd.s32 %s181, %s182
      %s184 = smul.addr %s183, 8
      %s185 = scalar_lea.vmem %s3, %s184
      %p186 = scmp.lt.s32.totalorder %s18, 1
      %s187 = scalar_select %p186, %s18, 1
      %p188 = scmp.lt.s32.totalorder %s19, 7
      %s189 = scalar_select %p188, %s19, 7
      %s190 = smul.addr %s187, 8
      %s191 = sadd.s32 %s189, %s190
      %s192 = smul.addr %s191, 8
      %s193 = scalar_lea.vmem %s0, %s192
      %p194 = scmp.lt.s32.totalorder %s18, 1
      %s195 = scalar_select %p194, %s18, 1
      %p196 = scmp.lt.s32.totalorder %s19, 7
      %s197 = scalar_select %p196, %s19, 7
      %s198 = smul.addr %s195, 8
      %s199 = sadd.s32 %s197, %s198
      %s200 = smul.addr %s199, 8
      %s201 = scalar_lea.vmem %s3, %s200
      %v202 = vld [vmem:[%s193] sm:$0xff]
      %v203 = vld [vmem:[%s1] sm:$0x1]
      %v205 = vlaneseq
      %v206 = vshrl.u32 %v205, 7
      %v207 = vsub.s32 0, %v206
      %v208 = vrot.slane %v203, %v207
      %v210 = vmul.f32 %v202, %v208
      %v211 = vld [vmem:[%s2] sm:$0x1]
      %v213 = vlaneseq
      %v214 = vshrl.u32 %v213, 7
      %v215 = vsub.s32 0, %v214
      %v216 = vrot.slane %v211, %v215
      %v218 = vadd.f32 %v210, %v216
      %v219 = vmax.f32 %v218, 0.0
      %vm220 = vcmask 523264
      %221 = vst.msk [vmem:[%s201] sm:$0xff] %vm220, %v219
      %p222 = scmp.lt.s32.totalorder %s18, 1
      %s223 = scalar_select %p222, %s18, 1
      %p224 = scmp.lt.s32.totalorder %s19, 7
      %s225 = scalar_select %p224, %s19, 7
      %s226 = smul.addr %s223, 8
      %s227 = sadd.s32 %s225, %s226
      %s228 = smul.addr %s227, 8
      %s229 = scalar_lea.vmem %s3, %s228
      // Predicated region
      $region33: #{double_conv3d.7} parent=31 // pred_check
        %p230 = pneg %p116
      $region34: #{double_conv3d.7} parent=31 // pred_check_branch
        %232 = sbr.rel (%p230) target = $region36
      $region35: #{double_conv3d.7} parent=31 // pred_region
        _
      $region36: #{double_conv3d.7} parent=31 // pred_fallthru
        _
    $region32: #{double_conv3d.7} parent=5 // pred_fallthru
      _
    %p233 = scmp.le.s32.totalorder 2, %s9
    // Predicated region
    $region37: #{double_conv3d.7} parent=5 // pred_check
      %p234 = pneg %p233
    $region38: #{double_conv3d.7} parent=5 // pred_check_branch
      %236 = sbr.rel (%p234) target = $region40
    $region39: #{double_conv3d.7} parent=5 // pred_region
      %s237 = ssub.s32 %s9, 2
      // Predicated region
      $region41: #{double_conv3d.7} parent=39 // pred_check
        %p238 = pneg %p122
      $region42: #{double_conv3d.7} parent=39 // pred_check_branch
        %240 = sbr.rel (%p238) target = $region44
      $region43: #{double_conv3d.7} parent=39 // pred_region
        %p241 = scmp.lt.s32.totalorder %s20, 1
        %s242 = scalar_select %p241, %s20, 1
        %p243 = scmp.lt.s32.totalorder %s21, 7
        %s244 = scalar_select %p243, %s21, 7
        %s245 = smul.addr %s242, 8
        %s246 = sadd.s32 %s244, %s245
        %s247 = smul.addr %s246, 8
        %s248 = scalar_lea.vmem %s3, %s247
      $region44: #{double_conv3d.7} parent=39 // pred_fallthru
        _
    $region40: #{double_conv3d.7} parent=5 // pred_fallthru
      _
  $region6: #{double_conv3d.7} parent=0 // loop_footer
    %s13 = sadd.s32 1, %s9
  $region7: #{double_conv3d.7} parent=0 // loop_footer_branch
    %8 = sbr.rel target = $region3
  $region8: #{double_conv3d.7} parent=0 // loop_exit
    _

// kernel: double_conv3d.6
$region0: #{double_conv3d.6}
  #allocation0 [shape = 'u32[]', space=smem, size = 0x4, offset = 0x4, fixed_abs, tag = 'smem constant byte address 0x4 - core index']
  #allocation1 [shape = 'u32[144,128]{1,0:T(1,128)}', space=vmem, size = 0x12000, scoped, tag = 'internal scratch']
  %s0 = inlined_call_operand.vmem [shape: f32[2,10,10,80], index: 0, kind: input, shape index: {}, may-alias: {0,1,2}]
  %s1 = inlined_call_operand.vmem [shape: f32[2,10,10,80], index: 1, kind: input, shape index: {}, may-alias: {0,1,2}]
  %s2 = inlined_call_operand.vmem [shape: f32[2,10,10,80], index: 2, kind: input, shape index: {}, may-alias: {0,1,2}]
  %s3 = inlined_call_operand.vmem [shape: f32[9,80,64], index: 3, kind: input, shape index: {}]
  %s4 = inlined_call_operand.vmem [shape: f32[2,8,8,64], index: 4, kind: output, shape index: {0}]
  %s5 = inlined_call_operand.vmem [shape: f32[2,8,2,64], index: 5, kind: output, shape index: {1}]
  %6 = xla_tuple %s4, %s5
  %s7 = sld [smem:[#allocation0]]
  $region57: #{double_conv3d.6} parent=0
    _
  %s9 = ssub.s32 1, %s7
  %s10 = scalar_select 0, %s9, %s7
  loop: start=0, step=1, limit=18
  $region2: #{double_conv3d.6} parent=0 // loop_pre_header
    _
  $region3: #{double_conv3d.6} parent=0 // loop_header
    %s12 = sphi 0, %s16
    %p13 = scmp.ge.s32.totalorder %s12, 18
    %s19 = sphi 0, %s31
    %s20 = sphi 0, %s27
    %s21 = sphi 0, %s19
    %s22 = sphi 0, %s20
    %s23 = sphi 0, %s21
    %s24 = sphi 0, %s22
    %s36 = sphi 0, %s38
    %s39 = sphi 0, %s36
    %s40 = sphi 0, %s39
    %s56 = sphi 0, %s40
    %s66 = sphi 0, %s68
    %s69 = sphi 0, %s66
    %s70 = sphi 0, %s69
    %s86 = sphi 0, %s70
    %s96 = sphi 0, %s98
    %s99 = sphi 0, %s96
    %s100 = sphi 0, %s99
    %s116 = sphi 0, %s100
    %s120 = sphi 0, %s120
    %s122 = sphi 0, %s120
    %s123 = sphi 0, %s122
    %s137 = sphi 0, %s123
    %s145 = sphi 0, %s147
    %s148 = sphi 0, %s145
    %s149 = sphi 0, %s148
    %s165 = sphi 0, %s149
    %s173 = sphi 0, %s175
    %s176 = sphi 0, %s173
    %s177 = sphi 0, %s176
    %s193 = sphi 0, %s177
  $region4: #{double_conv3d.6} parent=0 // loop_header_branch
    %15 = sbr.rel (%p13) target = $region8
  $region5: #{double_conv3d.6} parent=0 // loop_body
    %s17 = ssub.s32 %s12, 1
    %s18 = ssub.s32 %s12, 2
    %s25 = sadd.s32 1, %s20
    %p26 = scmp.ge.s32.totalorder %s25, 8
    %s27 = scalar_select %p26, 0, %s25
    %s28 = sadd.s32 1, %s19
    %s29 = scalar_select %p26, %s28, %s19
    %p30 = scmp.ge.s32.totalorder %s29, 2
    %s31 = scalar_select %p30, 0, %s29
    %s32 = ssub.s32 %s19, %s31
    %s33 = ssub.s32 %s20, %s27
    %s34 = sor.u32 %s32, %s33
    %p35 = scmp.eq.s32.totalorder %s34, 0
    %s37 = sadd.s32 %s36, 1
    %s38 = scalar_select %p35, %s36, %s37
    %p41 = pneg %p35
    %p42 = scmp.eq.s32.totalorder %s12, 15
    %p43 = por %p41, %p42
    %p44 = scmp.ne.s32.totalorder %s36, %s39
    %p45 = scmp.eq.s32.totalorder %s12, 0
    %p46 = por %p44, %p45
    %p47 = scmp.ne.s32.totalorder %s36, %s39
    %p48 = scmp.eq.s32.totalorder %s17, 15
    %p49 = por %p47, %p48
    %p50 = scmp.ne.s32.totalorder %s39, %s40
    %p51 = scmp.eq.s32.totalorder %s17, 0
    %p52 = por %p50, %p51
    %p53 = scmp.ne.s32.totalorder %s39, %s40
    %p54 = scmp.eq.s32.totalorder %s18, 15
    %p55 = por %p53, %p54
    %p57 = scmp.ne.s32.totalorder %s40, %s56
    %p58 = scmp.eq.s32.totalorder %s18, 0
    %p59 = por %p57, %p58
    %s60 = sadd.s32 %s20, 1
    %s61 = sadd.s32 %s27, 1
    %s62 = ssub.s32 %s19, %s31
    %s63 = ssub.s32 %s60, %s61
    %s64 = sor.u32 %s62, %s63
    %p65 = scmp.eq.s32.totalorder %s64, 0
    %s67 = sadd.s32 %s66, 1
    %s68 = scalar_select %p65, %s66, %s67
    %p71 = pneg %p65
    %p72 = scmp.eq.s32.totalorder %s12, 15
    %p73 = por %p71, %p72
    %p74 = scmp.ne.s32.totalorder %s66, %s69
    %p75 = scmp.eq.s32.totalorder %s12, 0
    %p76 = por %p74, %p75
    %p77 = scmp.ne.s32.totalorder %s66, %s69
    %p78 = scmp.eq.s32.totalorder %s17, 15
    %p79 = por %p77, %p78
    %p80 = scmp.ne.s32.totalorder %s69, %s70
    %p81 = scmp.eq.s32.totalorder %s17, 0
    %p82 = por %p80, %p81
    %p83 = scmp.ne.s32.totalorder %s69, %s70
    %p84 = scmp.eq.s32.totalorder %s18, 15
    %p85 = por %p83, %p84
    %p87 = scmp.ne.s32.totalorder %s70, %s86
    %p88 = scmp.eq.s32.totalorder %s18, 0
    %p89 = por %p87, %p88
    %s90 = sadd.s32 %s20, 2
    %s91 = sadd.s32 %s27, 2
    %s92 = ssub.s32 %s19, %s31
    %s93 = ssub.s32 %s90, %s91
    %s94 = sor.u32 %s92, %s93
    %p95 = scmp.eq.s32.totalorder %s94, 0
    %s97 = sadd.s32 %s96, 1
    %s98 = scalar_select %p95, %s96, %s97
    %p101 = pneg %p95
    %p102 = scmp.eq.s32.totalorder %s12, 15
    %p103 = por %p101, %p102
    %p104 = scmp.ne.s32.totalorder %s96, %s99
    %p105 = scmp.eq.s32.totalorder %s12, 0
    %p106 = por %p104, %p105
    %p107 = scmp.ne.s32.totalorder %s96, %s99
    %p108 = scmp.eq.s32.totalorder %s17, 15
    %p109 = por %p107, %p108
    %p110 = scmp.ne.s32.totalorder %s99, %s100
    %p111 = scmp.eq.s32.totalorder %s17, 0
    %p112 = por %p110, %p111
    %p113 = scmp.ne.s32.totalorder %s99, %s100
    %p114 = scmp.eq.s32.totalorder %s18, 15
    %p115 = por %p113, %p114
    %p117 = scmp.ne.s32.totalorder %s100, %s116
    %p118 = scmp.eq.s32.totalorder %s18, 0
    %p119 = por %p117, %p118
    %s121 = sadd.s32 %s120, 1
    %p124 = scmp.eq.s32.totalorder %s12, 15
    %p125 = scmp.ne.s32.totalorder %s120, %s122
    %p126 = scmp.eq.s32.totalorder %s12, 0
    %p127 = por %p125, %p126
    %p128 = scmp.ne.s32.totalorder %s120, %s122
    %p129 = scmp.eq.s32.totalorder %s17, 15
    %p130 = por %p128, %p129
    %p131 = scmp.ne.s32.totalorder %s122, %s123
    %p132 = scmp.eq.s32.totalorder %s17, 0
    %p133 = por %p131, %p132
    %p134 = scmp.ne.s32.totalorder %s122, %s123
    %p135 = scmp.eq.s32.totalorder %s18, 15
    %p136 = por %p134, %p135
    %p138 = scmp.ne.s32.totalorder %s123, %s137
    %p139 = scmp.eq.s32.totalorder %s18, 0
    %p140 = por %p138, %p139
    %s141 = ssub.s32 %s19, %s31
    %s142 = ssub.s32 %s20, %s27
    %s143 = sor.u32 %s141, %s142
    %p144 = scmp.eq.s32.totalorder %s143, 0
    %s146 = sadd.s32 %s145, 1
    %s147 = scalar_select %p144, %s145, %s146
    %p150 = pneg %p144
    %p151 = scmp.eq.s32.totalorder %s12, 15
    %p152 = por %p150, %p151
    %p153 = scmp.ne.s32.totalorder %s145, %s148
    %p154 = scmp.eq.s32.totalorder %s12, 0
    %p155 = por %p153, %p154
    %p156 = scmp.ne.s32.totalorder %s145, %s148
    %p157 = scmp.eq.s32.totalorder %s17, 15
    %p158 = por %p156, %p157
    %p159 = scmp.ne.s32.totalorder %s148, %s149
    %p160 = scmp.eq.s32.totalorder %s17, 0
    %p161 = por %p159, %p160
    %p162 = scmp.ne.s32.totalorder %s148, %s149
    %p163 = scmp.eq.s32.totalorder %s18, 15
    %p164 = por %p162, %p163
    %p166 = scmp.ne.s32.totalorder %s149, %s165
    %p167 = scmp.eq.s32.totalorder %s18, 0
    %p168 = por %p166, %p167
    %s169 = ssub.s32 %s19, %s31
    %s170 = ssub.s32 %s20, %s27
    %s171 = sor.u32 %s169, %s170
    %p172 = scmp.eq.s32.totalorder %s171, 0
    %s174 = sadd.s32 %s173, 1
    %s175 = scalar_select %p172, %s173, %s174
    %p178 = pneg %p172
    %p179 = scmp.eq.s32.totalorder %s12, 15
    %p180 = por %p178, %p179
    %p181 = scmp.ne.s32.totalorder %s173, %s176
    %p182 = scmp.eq.s32.totalorder %s12, 0
    %p183 = por %p181, %p182
    %p184 = scmp.ne.s32.totalorder %s173, %s176
    %p185 = scmp.eq.s32.totalorder %s17, 15
    %p186 = por %p184, %p185
    %p187 = scmp.ne.s32.totalorder %s176, %s177
    %p188 = scmp.eq.s32.totalorder %s17, 0
    %p189 = por %p187, %p188
    %p190 = scmp.ne.s32.totalorder %s176, %s177
    %p191 = scmp.eq.s32.totalorder %s18, 15
    %p192 = por %p190, %p191
    %p194 = scmp.ne.s32.totalorder %s177, %s193
    %p195 = scmp.eq.s32.totalorder %s18, 0
    %p196 = por %p194, %p195
    %p197 = scmp.le.s32.totalorder 1, %s12
    %p198 = scmp.lt.s32.totalorder %s12, 17
    %p199 = pnand %p197, %p198
    %p200 = pneg %p199
    // Predicated region
    $region9: #{double_conv3d.6} parent=5 // pred_check
      _
    $region10: #{double_conv3d.6} parent=5 // pred_check_branch
      %202 = sbr.rel (%p199) target = $region12
    $region11: #{double_conv3d.6} parent=5 // pred_region
      %s203 = ssub.s32 %s12, 1
      // Predicated region
      $region13: #{double_conv3d.6} parent=11 // pred_check
        %p204 = pneg %p133
      $region14: #{double_conv3d.6} parent=11 // pred_check_branch
        %206 = sbr.rel (%p204) target = $region16
      $region15: #{double_conv3d.6} parent=11 // pred_region
        _
      $region16: #{double_conv3d.6} parent=11 // pred_fallthru
        _
    $region12: #{double_conv3d.6} parent=5 // pred_fallthru
      _
    %p207 = scmp.lt.s32.totalorder %s12, 16
    // Predicated region
    $region17: #{double_conv3d.6} parent=5 // pred_check
      %p208 = pneg %p207
    $region18: #{double_conv3d.6} parent=5 // pred_check_branch
      %210 = sbr.rel (%p208) target = $region20
    $region19: #{double_conv3d.6} parent=5 // pred_region
      // Predicated region
      $region21: #{double_conv3d.6} parent=19 // pred_check
        %p211 = pneg %p46
      $region22: #{double_conv3d.6} parent=19 // pred_check_branch
        %213 = sbr.rel (%p211) target = $region24
      $region23: #{double_conv3d.6} parent=19 // pred_region
        %p214 = scmp.lt.s32.totalorder %s19, 1
        %s215 = scalar_select %p214, %s19, 1
        %p216 = scmp.lt.s32.totalorder %s20, 9
        %s217 = scalar_select %p216, %s20, 9
        %s218 = smul.addr %s217, 2
        %s219 = smul.addr %s215, 20
        %s220 = sadd.s32 %s218, %s219
        %s221 = smul.addr %s220, 8
        %s222 = scalar_lea.vmem %s0, %s221
      $region24: #{double_conv3d.6} parent=19 // pred_fallthru
        _
      // Predicated region
      $region25: #{double_conv3d.6} parent=19 // pred_check
        %p223 = pneg %p76
      $region26: #{double_conv3d.6} parent=19 // pred_check_branch
        %225 = sbr.rel (%p223) target = $region28
      $region27: #{double_conv3d.6} parent=19 // pred_region
        %s226 = sadd.s32 %s20, 1
        %p227 = scmp.lt.s32.totalorder %s19, 1
        %s228 = scalar_select %p227, %s19, 1
        %p229 = scmp.lt.s32.totalorder %s226, 9
        %s230 = scalar_select %p229, %s226, 9
        %s231 = smul.addr %s230, 2
        %s232 = smul.addr %s228, 20
        %s233 = sadd.s32 %s231, %s232
        %s234 = smul.addr %s233, 8
        %s235 = scalar_lea.vmem %s1, %s234
        %s236 = sadd.s32 %s20, 1
      $region28: #{double_conv3d.6} parent=19 // pred_fallthru
        _
      // Predicated region
      $region29: #{double_conv3d.6} parent=19 // pred_check
        %p237 = pneg %p106
      $region30: #{double_conv3d.6} parent=19 // pred_check_branch
        %239 = sbr.rel (%p237) target = $region32
      $region31: #{double_conv3d.6} parent=19 // pred_region
        %s240 = sadd.s32 %s20, 2
        %p241 = scmp.lt.s32.totalorder %s19, 1
        %s242 = scalar_select %p241, %s19, 1
        %p243 = scmp.lt.s32.totalorder %s240, 9
        %s244 = scalar_select %p243, %s240, 9
        %s245 = smul.addr %s244, 2
        %s246 = smul.addr %s242, 20
        %s247 = sadd.s32 %s245, %s246
        %s248 = smul.addr %s247, 8
        %s249 = scalar_lea.vmem %s2, %s248
        %s250 = sadd.s32 %s20, 2
      $region32: #{double_conv3d.6} parent=19 // pred_fallthru
        _
    $region20: #{double_conv3d.6} parent=5 // pred_fallthru
      _
    %p251 = scmp.le.s32.totalorder 1, %s12
    %p252 = scmp.lt.s32.totalorder %s12, 17
    %p253 = pnand %p251, %p252
    %p254 = pneg %p253
    // Predicated region
    $region33: #{double_conv3d.6} parent=5 // pred_check
      _
    $region34: #{double_conv3d.6} parent=5 // pred_check_branch
      %256 = sbr.rel (%p253) target = $region36
    $region35: #{double_conv3d.6} parent=5 // pred_region
      %s257 = ssub.s32 %s12, 1
      %p258 = scmp.lt.s32.totalorder %s21, 1
      %s259 = scalar_select %p258, %s21, 1
      %p260 = scmp.lt.s32.totalorder %s22, 9
      %s261 = scalar_select %p260, %s22, 9
      %s262 = smul.addr %s261, 2
      %s263 = smul.addr %s259, 20
      %s264 = sadd.s32 %s262, %s263
      %s265 = smul.addr %s264, 8
      %s266 = scalar_lea.vmem %s0, %s265
      %p267 = pneg %p52
      %p268 = pneg %p49
      %s269 = sadd.s32 %s22, 1
      %p270 = scmp.lt.s32.totalorder %s21, 1
      %s271 = scalar_select %p270, %s21, 1
      %p272 = scmp.lt.s32.totalorder %s269, 9
      %s273 = scalar_select %p272, %s269, 9
      %s274 = smul.addr %s273, 2
      %s275 = smul.addr %s271, 20
      %s276 = sadd.s32 %s274, %s275
      %s277 = smul.addr %s276, 8
      %s278 = scalar_lea.vmem %s1, %s277
      %p279 = pneg %p82
      %p280 = pneg %p79
      %s281 = sadd.s32 %s22, 2
      %p282 = scmp.lt.s32.totalorder %s21, 1
      %s283 = scalar_select %p282, %s21, 1
      %p284 = scmp.lt.s32.totalorder %s281, 9
      %s285 = scalar_select %p284, %s281, 9
      %s286 = smul.addr %s285, 2
      %s287 = smul.addr %s283, 20
      %s288 = sadd.s32 %s286, %s287
      %s289 = smul.addr %s288, 8
      %s290 = scalar_lea.vmem %s2, %s289
      %p291 = pneg %p112
      %p292 = pneg %p109
      %p293 = pneg %p133
      %p294 = pneg %p130
      %p295 = pneg %p161
      %p296 = pneg %p158
      %p297 = scmp.lt.s32.totalorder %s21, 1
      %s298 = scalar_select %p297, %s21, 1
      %p299 = scmp.lt.s32.totalorder %s22, 7
      %s300 = scalar_select %p299, %s22, 7
      %s301 = smul.addr %s298, 8
      %s302 = sadd.s32 %s300, %s301
      %s303 = smul.addr %s302, 8
      %s304 = scalar_lea.vmem %s4, %s303
      %p305 = pneg %p189
      %p306 = pneg %p186
      %p307 = scmp.lt.s32.totalorder %s21, 1
      %s308 = scalar_select %p307, %s21, 1
      %p309 = scmp.lt.s32.totalorder %s22, 7
      %s310 = scalar_select %p309, %s22, 7
      %s311 = smul.addr %s308, 8
      %s312 = sadd.s32 %s310, %s311
      %s313 = smul.addr %s312, 2
      %s314 = scalar_lea.vmem %s5, %s313
      %p315 = scmp.lt.s32.totalorder %s21, 1
      %s316 = scalar_select %p315, %s21, 1
      %p317 = scmp.lt.s32.totalorder %s22, 9
      %s318 = scalar_select %p317, %s22, 9
      %s319 = smul.addr %s318, 2
      %s320 = smul.addr %s316, 20
      %s321 = sadd.s32 %s319, %s320
      %s322 = smul.addr %s321, 8
      %s323 = scalar_lea.vmem %s0, %s322
      %s324 = sadd.s32 %s22, 1
      %p325 = scmp.lt.s32.totalorder %s21, 1
      %s326 = scalar_select %p325, %s21, 1
      %p327 = scmp.lt.s32.totalorder %s324, 9
      %s328 = scalar_select %p327, %s324, 9
      %s329 = smul.addr %s328, 2
      %s330 = smul.addr %s326, 20
      %s331 = sadd.s32 %s329, %s330
      %s332 = smul.addr %s331, 8
      %s333 = scalar_lea.vmem %s1, %s332
      %s334 = sadd.s32 %s22, 1
      %s335 = sadd.s32 %s22, 2
      %p336 = scmp.lt.s32.totalorder %s21, 1
      %s337 = scalar_select %p336, %s21, 1
      %p338 = scmp.lt.s32.totalorder %s335, 9
      %s339 = scalar_select %p338, %s335, 9
      %s340 = smul.addr %s339, 2
      %s341 = smul.addr %s337, 20
      %s342 = sadd.s32 %s340, %s341
      %s343 = smul.addr %s342, 8
      %s344 = scalar_lea.vmem %s2, %s343
      %s345 = sadd.s32 %s22, 2
      %p346 = scmp.lt.s32.totalorder %s21, 1
      %s347 = scalar_select %p346, %s21, 1
      %p348 = scmp.lt.s32.totalorder %s22, 7
      %s349 = scalar_select %p348, %s22, 7
      %s350 = smul.addr %s347, 8
      %s351 = sadd.s32 %s349, %s350
      %s352 = smul.addr %s351, 8
      %s353 = scalar_lea.vmem %s4, %s352
      %p354 = scmp.lt.s32.totalorder %s21, 1
      %s355 = scalar_select %p354, %s21, 1
      %p356 = scmp.lt.s32.totalorder %s22, 7
      %s357 = scalar_select %p356, %s22, 7
      %s358 = smul.addr %s355, 8
      %s359 = sadd.s32 %s357, %s358
      %s360 = smul.addr %s359, 2
      %s361 = scalar_lea.vmem %s5, %s360
      %v362 = vld [vmem:[%s323] sm:$0xff]
      %v363 = vld [vmem:[%s3] sm:$0xff]
      %v364 = vld [vmem:[%s3 + $0x8] sm:$0xff]
      %v365 = vld [vmem:[%s3 + $0x10] sm:$0xff]
      %v366 = vld [vmem:[%s3 + $0x18] sm:$0xff]
      %v367 = vld [vmem:[%s3 + $0x20] sm:$0xff]
      %v368 = vld [vmem:[%s3 + $0x28] sm:$0xff]
      %v369 = vld [vmem:[%s3 + $0x30] sm:$0xff]
      %v370 = vld [vmem:[%s3 + $0x38] sm:$0xff]
      %v371 = vld [vmem:[%s3 + $0x40] sm:$0xff]
      %v372 = vld [vmem:[%s3 + $0x48] sm:$0xff]
      %v373 = vld [vmem:[%s323 + $0x1] sm:$0xff]
      %s374 = scalar_lea.vmem %s3, 80
      %v375 = vld [vmem:[%s374] sm:$0xff]
      %v376 = vld [vmem:[%s374 + $0x8] sm:$0xff]
      %v377 = vld [vmem:[%s374 + $0x10] sm:$0xff]
      %v378 = vld [vmem:[%s374 + $0x18] sm:$0xff]
      %v379 = vld [vmem:[%s374 + $0x20] sm:$0xff]
      %v380 = vld [vmem:[%s374 + $0x28] sm:$0xff]
      %v381 = vld [vmem:[%s374 + $0x30] sm:$0xff]
      %v382 = vld [vmem:[%s374 + $0x38] sm:$0xff]
      %v383 = vld [vmem:[%s374 + $0x40] sm:$0xff]
      %v384 = vld [vmem:[%s374 + $0x48] sm:$0xff]
      %vm385 = vcmask 654336
      %v387 = vsel %vm385, %v373, 0
      %389 = vmatprep.subr.mxu0 0.0
      %390 = vmatpush1.msra.mxu0 0.0
      %391 = vmatprep.subr.mxu0 0.0
      %392 = vmatpush1.msra.mxu0 0.0
      %393 = vmatprep.subr.mxu0 0.0
      %394 = vmatpush1.msra.mxu0 0.0
      %395 = vmatprep.subr.mxu0 0.0
      %396 = vmatpush1.msra.mxu0 0.0
      %397 = vmatprep.subr.mxu0 0.0
      %398 = vmatpush1.msra.mxu0 0.0
      %399 = vmatprep.subr.mxu0 0.0
      %400 = vmatpush1.msra.mxu0 0.0
      %401 = vmatprep.subr.mxu0 0.0
      %402 = vmatpush1.msra.mxu0 %v384
      %403 = vmatprep.subr.mxu0 0.0
      %404 = vmatpush1.msra.mxu0 %v383
      %405 = vmatprep.subr.mxu0 0.0
      %406 = vmatpush1.msra.mxu0 %v382
      %407 = vmatprep.subr.mxu0 0.0
      %408 = vmatpush1.msra.mxu0 %v381
      %409 = vmatprep.subr.mxu0 0.0
      %410 = vmatpush1.msra.mxu0 %v380
      %411 = vmatprep.subr.mxu0 0.0
      %412 = vmatpush1.msra.mxu0 %v379
      %413 = vmatprep.subr.mxu0 0.0
      %414 = vmatpush1.msra.mxu0 %v378
      %415 = vmatprep.subr.mxu0 0.0
      %416 = vmatpush1.msra.mxu0 %v377
      %417 = vmatprep.subr.mxu0 0.0
      %418 = vmatpush1.msra.mxu0 %v376
      %419 = vmatprep.subr.mxu0 0.0
      %420 = vmatpush1.msra.mxu0 %v375
      %421 = vmatprep.subr.mxu0 0.0
      %422 = vmatpush2.msra.mxu0 0.0
      %423 = vmatprep.subr.mxu0 0.0
      %424 = vmatpush2.msra.mxu0 0.0
      %425 = vmatprep.subr.mxu0 0.0
      %426 = vmatpush2.msra.mxu0 0.0
      %427 = vmatprep.subr.mxu0 0.0
      %428 = vmatpush2.msra.mxu0 0.0
      %429 = vmatprep.subr.mxu0 0.0
      %430 = vmatpush2.msra.mxu0 0.0
      %431 = vmatprep.subr.mxu0 0.0
      %432 = vmatpush2.msra.mxu0 0.0
      %433 = vmatprep.subr.mxu0 0.0
      %434 = vmatpush2.msra.mxu0 0.0
      %435 = vmatprep.subr.mxu0 0.0
      %436 = vmatpush2.msra.mxu0 0.0
      %437 = vmatprep.subr.mxu0 0.0
      %438 = vmatpush2.msra.mxu0 0.0
      %439 = vmatprep.subr.mxu0 0.0
      %440 = vmatpush2.msra.mxu0 0.0
      %441 = vmatprep.subr.mxu0 0.0
      %442 = vmatpush2.msra.mxu0 0.0
      %443 = vmatprep.subr.mxu0 0.0
      %444 = vmatpush2.msra.mxu0 0.0
      %445 = vmatprep.subr.mxu0 0.0
      %446 = vmatpush2.msra.mxu0 0.0
      %447 = vmatprep.subr.mxu0 0.0
      %448 = vmatpush2.msra.mxu0 0.0
      %449 = vmatprep.subr.mxu0 0.0
      %450 = vmatpush2.msra.mxu0 0.0
      %451 = vmatprep.subr.mxu0 0.0
      %452 = vmatpush2.msra.mxu0 0.0
      %453 = vmatprep.mubr.f32.mxu0 0.0
      %454 = vmatmul.mubr.f32.gmra.mxu0 %v387
      %v455 = vpop.f32.mrf.mxu0
      %v456 = vadd.f32 0.0, %v455
      %v457 = vpop.f32.mrf.mxu0
      %458 = vdwg.mxu0
      %v460 = vsel %vm385, %v362, 0
      %462 = vmatprep.subr.mxu0 0.0
      %463 = vmatpush1.msra.mxu0 0.0
      %464 = vmatprep.subr.mxu0 0.0
      %465 = vmatpush1.msra.mxu0 0.0
      %466 = vmatprep.subr.mxu0 0.0
      %467 = vmatpush1.msra.mxu0 0.0
      %468 = vmatprep.subr.mxu0 0.0
      %469 = vmatpush1.msra.mxu0 0.0
      %470 = vmatprep.subr.mxu0 0.0
      %471 = vmatpush1.msra.mxu0 0.0
      %472 = vmatprep.subr.mxu0 0.0
      %473 = vmatpush1.msra.mxu0 0.0
      %474 = vmatprep.subr.mxu0 0.0
      %475 = vmatpush1.msra.mxu0 %v372
      %476 = vmatprep.subr.mxu0 0.0
      %477 = vmatpush1.msra.mxu0 %v371
      %478 = vmatprep.subr.mxu0 0.0
      %479 = vmatpush1.msra.mxu0 %v370
      %480 = vmatprep.subr.mxu0 0.0
      %481 = vmatpush1.msra.mxu0 %v369
      %482 = vmatprep.subr.mxu0 0.0
      %483 = vmatpush1.msra.mxu0 %v368
      %484 = vmatprep.subr.mxu0 0.0
      %485 = vmatpush1.msra.mxu0 %v367
      %486 = vmatprep.subr.mxu0 0.0
      %487 = vmatpush1.msra.mxu0 %v366
      %488 = vmatprep.subr.mxu0 0.0
      %489 = vmatpush1.msra.mxu0 %v365
      %490 = vmatprep.subr.mxu0 0.0
      %491 = vmatpush1.msra.mxu0 %v364
      %492 = vmatprep.subr.mxu0 0.0
      %493 = vmatpush1.msra.mxu0 %v363
      %494 = vmatprep.subr.mxu0 0.0
      %495 = vmatpush2.msra.mxu0 0.0
      %496 = vmatprep.subr.mxu0 0.0
      %497 = vmatpush2.msra.mxu0 0.0
      %498 = vmatprep.subr.mxu0 0.0
      %499 = vmatpush2.msra.mxu0 0.0
      %500 = vmatprep.subr.mxu0 0.0
      %501 = vmatpush2.msra.mxu0 0.0
      %502 = vmatprep.subr.mxu0 0.0
      %503 = vmatpush2.msra.mxu0 0.0
      %504 = vmatprep.subr.mxu0 0.0
      %505 = vmatpush2.msra.mxu0 0.0
      %506 = vmatprep.subr.mxu0 0.0
      %507 = vmatpush2.msra.mxu0 0.0
      %508 = vmatprep.subr.mxu0 0.0
      %509 = vmatpush2.msra.mxu0 0.0
      %510 = vmatprep.subr.mxu0 0.0
      %511 = vmatpush2.msra.mxu0 0.0
      %512 = vmatprep.subr.mxu0 0.0
      %513 = vmatpush2.msra.mxu0 0.0
      %514 = vmatprep.subr.mxu0 0.0
      %515 = vmatpush2.msra.mxu0 0.0
      %516 = vmatprep.subr.mxu0 0.0
      %517 = vmatpush2.msra.mxu0 0.0
      %518 = vmatprep.subr.mxu0 0.0
      %519 = vmatpush2.msra.mxu0 0.0
      %520 = vmatprep.subr.mxu0 0.0
      %521 = vmatpush2.msra.mxu0 0.0
      %522 = vmatprep.subr.mxu0 0.0
      %523 = vmatpush2.msra.mxu0 0.0
      %524 = vmatprep.subr.mxu0 0.0
      %525 = vmatpush2.msra.mxu0 0.0
      %526 = vmatprep.mubr.f32.mxu0 0.0
      %527 = vmatmul.mubr.f32.gmra.mxu0 %v460
      %v528 = vpop.f32.mrf.mxu0
      %v529 = vadd.f32 %v456, %v528
      %v530 = vpop.f32.mrf.mxu0
      %531 = vdwg.mxu0
      %v532 = vld [vmem:[%s323 + $0x2] sm:$0xff]
      %s533 = scalar_lea.vmem %s3, 160
      %v534 = vld [vmem:[%s533] sm:$0xff]
      %v535 = vld [vmem:[%s533 + $0x8] sm:$0xff]
      %v536 = vld [vmem:[%s533 + $0x10] sm:$0xff]
      %v537 = vld [vmem:[%s533 + $0x18] sm:$0xff]
      %v538 = vld [vmem:[%s533 + $0x20] sm:$0xff]
      %v539 = vld [vmem:[%s533 + $0x28] sm:$0xff]
      %v540 = vld [vmem:[%s533 + $0x30] sm:$0xff]
      %v541 = vld [vmem:[%s533 + $0x38] sm:$0xff]
      %v542 = vld [vmem:[%s533 + $0x40] sm:$0xff]
      %v543 = vld [vmem:[%s533 + $0x48] sm:$0xff]
      %v545 = vsel %vm385, %v532, 0
      %547 = vmatprep.subr.mxu0 0.0
      %548 = vmatpush1.msra.mxu0 0.0
      %549 = vmatprep.subr.mxu0 0.0
      %550 = vmatpush1.msra.mxu0 0.0
      %551 = vmatprep.subr.mxu0 0.0
      %552 = vmatpush1.msra.mxu0 0.0
      %553 = vmatprep.subr.mxu0 0.0
      %554 = vmatpush1.msra.mxu0 0.0
      %555 = vmatprep.subr.mxu0 0.0
      %556 = vmatpush1.msra.mxu0 0.0
      %557 = vmatprep.subr.mxu0 0.0
      %558 = vmatpush1.msra.mxu0 0.0
      %559 = vmatprep.subr.mxu0 0.0
      %560 = vmatpush1.msra.mxu0 %v543
      %561 = vmatprep.subr.mxu0 0.0
      %562 = vmatpush1.msra.mxu0 %v542
      %563 = vmatprep.subr.mxu0 0.0
      %564 = vmatpush1.msra.mxu0 %v541
      %565 = vmatprep.subr.mxu0 0.0
      %566 = vmatpush1.msra.mxu0 %v540
      %567 = vmatprep.subr.mxu0 0.0
      %568 = vmatpush1.msra.mxu0 %v539
      %569 = vmatprep.subr.mxu0 0.0
      %570 = vmatpush1.msra.mxu0 %v538
      %571 = vmatprep.subr.mxu0 0.0
      %572 = vmatpush1.msra.mxu0 %v537
      %573 = vmatprep.subr.mxu0 0.0
      %574 = vmatpush1.msra.mxu0 %v536
      %575 = vmatprep.subr.mxu0 0.0
      %576 = vmatpush1.msra.mxu0 %v535
      %577 = vmatprep.subr.mxu0 0.0
      %578 = vmatpush1.msra.mxu0 %v534
      %579 = vmatprep.subr.mxu0 0.0
      %580 = vmatpush2.msra.mxu0 0.0
      %581 = vmatprep.subr.mxu0 0.0
      %582 = vmatpush2.msra.mxu0 0.0
      %583 = vmatprep.subr.mxu0 0.0
      %584 = vmatpush2.msra.mxu0 0.0
      %585 = vmatprep.subr.mxu0 0.0
      %586 = vmatpush2.msra.mxu0 0.0
      %587 = vmatprep.subr.mxu0 0.0
      %588 = vmatpush2.msra.mxu0 0.0
      %589 = vmatprep.subr.mxu0 0.0
      %590 = vmatpush2.msra.mxu0 0.0
      %591 = vmatprep.subr.mxu0 0.0
      %592 = vmatpush2.msra.mxu0 0.0
      %593 = vmatprep.subr.mxu0 0.0
      %594 = vmatpush2.msra.mxu0 0.0
      %595 = vmatprep.subr.mxu0 0.0
      %596 = vmatpush2.msra.mxu0 0.0
      %597 = vmatprep.subr.mxu0 0.0
      %598 = vmatpush2.msra.mxu0 0.0
      %599 = vmatprep.subr.mxu0 0.0
      %600 = vmatpush2.msra.mxu0 0.0
      %601 = vmatprep.subr.mxu0 0.0
      %602 = vmatpush2.msra.mxu0 0.0
      %603 = vmatprep.subr.mxu0 0.0
      %604 = vmatpush2.msra.mxu0 0.0
      %605 = vmatprep.subr.mxu0 0.0
      %606 = vmatpush2.msra.mxu0 0.0
      %607 = vmatprep.subr.mxu0 0.0
      %608 = vmatpush2.msra.mxu0 0.0
      %609 = vmatprep.subr.mxu0 0.0
      %610 = vmatpush2.msra.mxu0 0.0
      %611 = vmatprep.mubr.f32.mxu0 0.0
      %612 = vmatmul.mubr.f32.gmra.mxu0 %v545
      %v613 = vpop.f32.mrf.mxu0
      %v614 = vadd.f32 0.0, %v613
      %v615 = vpop.f32.mrf.mxu0
      %616 = vdwg.mxu0
      %v617 = vadd.f32 %v529, %v614
      %v618 = vld [vmem:[%s333] sm:$0xff]
      %s619 = scalar_lea.vmem %s3, 240
      %v620 = vld [vmem:[%s619] sm:$0xff]
      %v621 = vld [vmem:[%s619 + $0x8] sm:$0xff]
      %v622 = vld [vmem:[%s619 + $0x10] sm:$0xff]
      %v623 = vld [vmem:[%s619 + $0x18] sm:$0xff]
      %v624 = vld [vmem:[%s619 + $0x20] sm:$0xff]
      %v625 = vld [vmem:[%s619 + $0x28] sm:$0xff]
      %v626 = vld [vmem:[%s619 + $0x30] sm:$0xff]
      %v627 = vld [vmem:[%s619 + $0x38] sm:$0xff]
      %v628 = vld [vmem:[%s619 + $0x40] sm:$0xff]
      %v629 = vld [vmem:[%s619 + $0x48] sm:$0xff]
      %v631 = vsel %vm385, %v618, 0
      %633 = vmatprep.subr.mxu0 0.0
      %634 = vmatpush1.msra.mxu0 0.0
      %635 = vmatprep.subr.mxu0 0.0
      %636 = vmatpush1.msra.mxu0 0.0
      %637 = vmatprep.subr.mxu0 0.0
      %638 = vmatpush1.msra.mxu0 0.0
      %639 = vmatprep.subr.mxu0 0.0
      %640 = vmatpush1.msra.mxu0 0.0
      %641 = vmatprep.subr.mxu0 0.0
      %642 = vmatpush1.msra.mxu0 0.0
      %643 = vmatprep.subr.mxu0 0.0
      %644 = vmatpush1.msra.mxu0 0.0
      %645 = vmatprep.subr.mxu0 0.0
      %646 = vmatpush1.msra.mxu0 %v629
      %647 = vmatprep.subr.mxu0 0.0
      %648 = vmatpush1.msra.mxu0 %v628
      %649 = vmatprep.subr.mxu0 0.0
      %650 = vmatpush1.msra.mxu0 %v627
      %651 = vmatprep.subr.mxu0 0.0
      %652 = vmatpush1.msra.mxu0 %v626
      %653 = vmatprep.subr.mxu0 0.0
      %654 = vmatpush1.msra.mxu0 %v625
      %655 = vmatprep.subr.mxu0 0.0
      %656 = vmatpush1.msra.mxu0 %v624
      %657 = vmatprep.subr.mxu0 0.0
      %658 = vmatpush1.msra.mxu0 %v623
      %659 = vmatprep.subr.mxu0 0.0
      %660 = vmatpush1.msra.mxu0 %v622
      %661 = vmatprep.subr.mxu0 0.0
      %662 = vmatpush1.msra.mxu0 %v621
      %663 = vmatprep.subr.mxu0 0.0
      %664 = vmatpush1.msra.mxu0 %v620
      %665 = vmatprep.subr.mxu0 0.0
      %666 = vmatpush2.msra.mxu0 0.0
      %667 = vmatprep.subr.mxu0 0.0
      %668 = vmatpush2.msra.mxu0 0.0
      %669 = vmatprep.subr.mxu0 0.0
      %670 = vmatpush2.msra.mxu0 0.0
      %671 = vmatprep.subr.mxu0 0.0
      %672 = vmatpush2.msra.mxu0 0.0
      %673 = vmatprep.subr.mxu0 0.0
      %674 = vmatpush2.msra.mxu0 0.0
      %675 = vmatprep.subr.mxu0 0.0
      %676 = vmatpush2.msra.mxu0 0.0
      %677 = vmatprep.subr.mxu0 0.0
      %678 = vmatpush2.msra.mxu0 0.0
      %679 = vmatprep.subr.mxu0 0.0
      %680 = vmatpush2.msra.mxu0 0.0
      %681 = vmatprep.subr.mxu0 0.0
      %682 = vmatpush2.msra.mxu0 0.0
      %683 = vmatprep.subr.mxu0 0.0
      %684 = vmatpush2.msra.mxu0 0.0
      %685 = vmatprep.subr.mxu0 0.0
      %686 = vmatpush2.msra.mxu0 0.0
      %687 = vmatprep.subr.mxu0 0.0
      %688 = vmatpush2.msra.mxu0 0.0
      %689 = vmatprep.subr.mxu0 0.0
      %690 = vmatpush2.msra.mxu0 0.0
      %691 = vmatprep.subr.mxu0 0.0
      %692 = vmatpush2.msra.mxu0 0.0
      %693 = vmatprep.subr.mxu0 0.0
      %694 = vmatpush2.msra.mxu0 0.0
      %695 = vmatprep.subr.mxu0 0.0
      %696 = vmatpush2.msra.mxu0 0.0
      %697 = vmatprep.mubr.f32.mxu0 0.0
      %698 = vmatmul.mubr.f32.gmra.mxu0 %v631
      %v699 = vpop.f32.mrf.mxu0
      %v700 = vadd.f32 0.0, %v699
      %v701 = vpop.f32.mrf.mxu0
      %702 = vdwg.mxu0
      %v703 = vadd.f32 %v617, %v700
      %v704 = vld [vmem:[%s333 + $0x1] sm:$0xff]
      %s705 = scalar_lea.vmem %s3, 320
      %v706 = vld [vmem:[%s705] sm:$0xff]
      %v707 = vld [vmem:[%s705 + $0x8] sm:$0xff]
      %v708 = vld [vmem:[%s705 + $0x10] sm:$0xff]
      %v709 = vld [vmem:[%s705 + $0x18] sm:$0xff]
      %v710 = vld [vmem:[%s705 + $0x20] sm:$0xff]
      %v711 = vld [vmem:[%s705 + $0x28] sm:$0xff]
      %v712 = vld [vmem:[%s705 + $0x30] sm:$0xff]
      %v713 = vld [vmem:[%s705 + $0x38] sm:$0xff]
      %v714 = vld [vmem:[%s705 + $0x40] sm:$0xff]
      %v715 = vld [vmem:[%s705 + $0x48] sm:$0xff]
      %v717 = vsel %vm385, %v704, 0
      %719 = vmatprep.subr.mxu0 0.0
      %720 = vmatpush1.msra.mxu0 0.0
      %721 = vmatprep.subr.mxu0 0.0
      %722 = vmatpush1.msra.mxu0 0.0
      %723 = vmatprep.subr.mxu0 0.0
      %724 = vmatpush1.msra.mxu0 0.0
      %725 = vmatprep.subr.mxu0 0.0
      %726 = vmatpush1.msra.mxu0 0.0
      %727 = vmatprep.subr.mxu0 0.0
      %728 = vmatpush1.msra.mxu0 0.0
      %729 = vmatprep.subr.mxu0 0.0
      %730 = vmatpush1.msra.mxu0 0.0
      %731 = vmatprep.subr.mxu0 0.0
      %732 = vmatpush1.msra.mxu0 %v715
      %733 = vmatprep.subr.mxu0 0.0
      %734 = vmatpush1.msra.mxu0 %v714
      %735 = vmatprep.subr.mxu0 0.0
      %736 = vmatpush1.msra.mxu0 %v713
      %737 = vmatprep.subr.mxu0 0.0
      %738 = vmatpush1.msra.mxu0 %v712
      %739 = vmatprep.subr.mxu0 0.0
      %740 = vmatpush1.msra.mxu0 %v711
      %741 = vmatprep.subr.mxu0 0.0
      %742 = vmatpush1.msra.mxu0 %v710
      %743 = vmatprep.subr.mxu0 0.0
      %744 = vmatpush1.msra.mxu0 %v709
      %745 = vmatprep.subr.mxu0 0.0
      %746 = vmatpush1.msra.mxu0 %v708
      %747 = vmatprep.subr.mxu0 0.0
      %748 = vmatpush1.msra.mxu0 %v707
      %749 = vmatprep.subr.mxu0 0.0
      %750 = vmatpush1.msra.mxu0 %v706
      %751 = vmatprep.subr.mxu0 0.0
      %752 = vmatpush2.msra.mxu0 0.0
      %753 = vmatprep.subr.mxu0 0.0
      %754 = vmatpush2.msra.mxu0 0.0
      %755 = vmatprep.subr.mxu0 0.0
      %756 = vmatpush2.msra.mxu0 0.0
      %757 = vmatprep.subr.mxu0 0.0
      %758 = vmatpush2.msra.mxu0 0.0
      %759 = vmatprep.subr.mxu0 0.0
      %760 = vmatpush2.msra.mxu0 0.0
      %761 = vmatprep.subr.mxu0 0.0
      %762 = vmatpush2.msra.mxu0 0.0
      %763 = vmatprep.subr.mxu0 0.0
      %764 = vmatpush2.msra.mxu0 0.0
      %765 = vmatprep.subr.mxu0 0.0
      %766 = vmatpush2.msra.mxu0 0.0
      %767 = vmatprep.subr.mxu0 0.0
      %768 = vmatpush2.msra.mxu0 0.0
      %769 = vmatprep.subr.mxu0 0.0
      %770 = vmatpush2.msra.mxu0 0.0
      %771 = vmatprep.subr.mxu0 0.0
      %772 = vmatpush2.msra.mxu0 0.0
      %773 = vmatprep.subr.mxu0 0.0
      %774 = vmatpush2.msra.mxu0 0.0
      %775 = vmatprep.subr.mxu0 0.0
      %776 = vmatpush2.msra.mxu0 0.0
      %777 = vmatprep.subr.mxu0 0.0
      %778 = vmatpush2.msra.mxu0 0.0
      %779 = vmatprep.subr.mxu0 0.0
      %780 = vmatpush2.msra.mxu0 0.0
      %781 = vmatprep.subr.mxu0 0.0
      %782 = vmatpush2.msra.mxu0 0.0
      %783 = vmatprep.mubr.f32.mxu0 0.0
      %784 = vmatmul.mubr.f32.gmra.mxu0 %v717
      %v785 = vpop.f32.mrf.mxu0
      %v786 = vadd.f32 0.0, %v785
      %v787 = vpop.f32.mrf.mxu0
      %788 = vdwg.mxu0
      %v789 = vadd.f32 %v703, %v786
      %v790 = vld [vmem:[%s333 + $0x2] sm:$0xff]
      %s791 = scalar_lea.vmem %s3, 400
      %v792 = vld [vmem:[%s791] sm:$0xff]
      %v793 = vld [vmem:[%s791 + $0x8] sm:$0xff]
      %v794 = vld [vmem:[%s791 + $0x10] sm:$0xff]
      %v795 = vld [vmem:[%s791 + $0x18] sm:$0xff]
      %v796 = vld [vmem:[%s791 + $0x20] sm:$0xff]
      %v797 = vld [vmem:[%s791 + $0x28] sm:$0xff]
      %v798 = vld [vmem:[%s791 + $0x30] sm:$0xff]
      %v799 = vld [vmem:[%s791 + $0x38] sm:$0xff]
      %v800 = vld [vmem:[%s791 + $0x40] sm:$0xff]
      %v801 = vld [vmem:[%s791 + $0x48] sm:$0xff]
      %v803 = vsel %vm385, %v790, 0
      %805 = vmatprep.subr.mxu0 0.0
      %806 = vmatpush1.msra.mxu0 0.0
      %807 = vmatprep.subr.mxu0 0.0
      %808 = vmatpush1.msra.mxu0 0.0
      %809 = vmatprep.subr.mxu0 0.0
      %810 = vmatpush1.msra.mxu0 0.0
      %811 = vmatprep.subr.mxu0 0.0
      %812 = vmatpush1.msra.mxu0 0.0
      %813 = vmatprep.subr.mxu0 0.0
      %814 = vmatpush1.msra.mxu0 0.0
      %815 = vmatprep.subr.mxu0 0.0
      %816 = vmatpush1.msra.mxu0 0.0
      %817 = vmatprep.subr.mxu0 0.0
      %818 = vmatpush1.msra.mxu0 %v801
      %819 = vmatprep.subr.mxu0 0.0
      %820 = vmatpush1.msra.mxu0 %v800
      %821 = vmatprep.subr.mxu0 0.0
      %822 = vmatpush1.msra.mxu0 %v799
      %823 = vmatprep.subr.mxu0 0.0
      %824 = vmatpush1.msra.mxu0 %v798
      %825 = vmatprep.subr.mxu0 0.0
      %826 = vmatpush1.msra.mxu0 %v797
      %827 = vmatprep.subr.mxu0 0.0
      %828 = vmatpush1.msra.mxu0 %v796
      %829 = vmatprep.subr.mxu0 0.0
      %830 = vmatpush1.msra.mxu0 %v795
      %831 = vmatprep.subr.mxu0 0.0
      %832 = vmatpush1.msra.mxu0 %v794
      %833 = vmatprep.subr.mxu0 0.0
      %834 = vmatpush1.msra.mxu0 %v793
      %835 = vmatprep.subr.mxu0 0.0
      %836 = vmatpush1.msra.mxu0 %v792
      %837 = vmatprep.subr.mxu0 0.0
      %838 = vmatpush2.msra.mxu0 0.0
      %839 = vmatprep.subr.mxu0 0.0
      %840 = vmatpush2.msra.mxu0 0.0
      %841 = vmatprep.subr.mxu0 0.0
      %842 = vmatpush2.msra.mxu0 0.0
      %843 = vmatprep.subr.mxu0 0.0
      %844 = vmatpush2.msra.mxu0 0.0
      %845 = vmatprep.subr.mxu0 0.0
      %846 = vmatpush2.msra.mxu0 0.0
      %847 = vmatprep.subr.mxu0 0.0
      %848 = vmatpush2.msra.mxu0 0.0
      %849 = vmatprep.subr.mxu0 0.0
      %850 = vmatpush2.msra.mxu0 0.0
      %851 = vmatprep.subr.mxu0 0.0
      %852 = vmatpush2.msra.mxu0 0.0
      %853 = vmatprep.subr.mxu0 0.0
      %854 = vmatpush2.msra.mxu0 0.0
      %855 = vmatprep.subr.mxu0 0.0
      %856 = vmatpush2.msra.mxu0 0.0
      %857 = vmatprep.subr.mxu0 0.0
      %858 = vmatpush2.msra.mxu0 0.0
      %859 = vmatprep.subr.mxu0 0.0
      %860 = vmatpush2.msra.mxu0 0.0
      %861 = vmatprep.subr.mxu0 0.0
      %862 = vmatpush2.msra.mxu0 0.0
      %863 = vmatprep.subr.mxu0 0.0
      %864 = vmatpush2.msra.mxu0 0.0
      %865 = vmatprep.subr.mxu0 0.0
      %866 = vmatpush2.msra.mxu0 0.0
      %867 = vmatprep.subr.mxu0 0.0
      %868 = vmatpush2.msra.mxu0 0.0
      %869 = vmatprep.mubr.f32.mxu0 0.0
      %870 = vmatmul.mubr.f32.gmra.mxu0 %v803
      %v871 = vpop.f32.mrf.mxu0
      %v872 = vadd.f32 0.0, %v871
      %v873 = vpop.f32.mrf.mxu0
      %874 = vdwg.mxu0
      %v875 = vadd.f32 %v789, %v872
      %v876 = vld [vmem:[%s344] sm:$0xff]
      %s877 = scalar_lea.vmem %s3, 480
      %v878 = vld [vmem:[%s877] sm:$0xff]
      %v879 = vld [vmem:[%s877 + $0x8] sm:$0xff]
      %v880 = vld [vmem:[%s877 + $0x10] sm:$0xff]
      %v881 = vld [vmem:[%s877 + $0x18] sm:$0xff]
      %v882 = vld [vmem:[%s877 + $0x20] sm:$0xff]
      %v883 = vld [vmem:[%s877 + $0x28] sm:$0xff]
      %v884 = vld [vmem:[%s877 + $0x30] sm:$0xff]
      %v885 = vld [vmem:[%s877 + $0x38] sm:$0xff]
      %v886 = vld [vmem:[%s877 + $0x40] sm:$0xff]
      %v887 = vld [vmem:[%s877 + $0x48] sm:$0xff]
      %v889 = vsel %vm385, %v876, 0
      %891 = vmatprep.subr.mxu0 0.0
      %892 = vmatpush1.msra.mxu0 0.0
      %893 = vmatprep.subr.mxu0 0.0
      %894 = vmatpush1.msra.mxu0 0.0
      %895 = vmatprep.subr.mxu0 0.0
      %896 = vmatpush1.msra.mxu0 0.0
      %897 = vmatprep.subr.mxu0 0.0
      %898 = vmatpush1.msra.mxu0 0.0
      %899 = vmatprep.subr.mxu0 0.0
      %900 = vmatpush1.msra.mxu0 0.0
      %901 = vmatprep.subr.mxu0 0.0
      %902 = vmatpush1.msra.mxu0 0.0
      %903 = vmatprep.subr.mxu0 0.0
      %904 = vmatpush1.msra.mxu0 %v887
      %905 = vmatprep.subr.mxu0 0.0
      %906 = vmatpush1.msra.mxu0 %v886
      %907 = vmatprep.subr.mxu0 0.0
      %908 = vmatpush1.msra.mxu0 %v885
      %909 = vmatprep.subr.mxu0 0.0
      %910 = vmatpush1.msra.mxu0 %v884
      %911 = vmatprep.subr.mxu0 0.0
      %912 = vmatpush1.msra.mxu0 %v883
      %913 = vmatprep.subr.mxu0 0.0
      %914 = vmatpush1.msra.mxu0 %v882
      %915 = vmatprep.subr.mxu0 0.0
      %916 = vmatpush1.msra.mxu0 %v881
      %917 = vmatprep.subr.mxu0 0.0
      %918 = vmatpush1.msra.mxu0 %v880
      %919 = vmatprep.subr.mxu0 0.0
      %920 = vmatpush1.msra.mxu0 %v879
      %921 = vmatprep.subr.mxu0 0.0
      %922 = vmatpush1.msra.mxu0 %v878
      %923 = vmatprep.subr.mxu0 0.0
      %924 = vmatpush2.msra.mxu0 0.0
      %925 = vmatprep.subr.mxu0 0.0
      %926 = vmatpush2.msra.mxu0 0.0
      %927 = vmatprep.subr.mxu0 0.0
      %928 = vmatpush2.msra.mxu0 0.0
      %929 = vmatprep.subr.mxu0 0.0
      %930 = vmatpush2.msra.mxu0 0.0
      %931 = vmatprep.subr.mxu0 0.0
      %932 = vmatpush2.msra.mxu0 0.0
      %933 = vmatprep.subr.mxu0 0.0
      %934 = vmatpush2.msra.mxu0 0.0
      %935 = vmatprep.subr.mxu0 0.0
      %936 = vmatpush2.msra.mxu0 0.0
      %937 = vmatprep.subr.mxu0 0.0
      %938 = vmatpush2.msra.mxu0 0.0
      %939 = vmatprep.subr.mxu0 0.0
      %940 = vmatpush2.msra.mxu0 0.0
      %941 = vmatprep.subr.mxu0 0.0
      %942 = vmatpush2.msra.mxu0 0.0
      %943 = vmatprep.subr.mxu0 0.0
      %944 = vmatpush2.msra.mxu0 0.0
      %945 = vmatprep.subr.mxu0 0.0
      %946 = vmatpush2.msra.mxu0 0.0
      %947 = vmatprep.subr.mxu0 0.0
      %948 = vmatpush2.msra.mxu0 0.0
      %949 = vmatprep.subr.mxu0 0.0
      %950 = vmatpush2.msra.mxu0 0.0
      %951 = vmatprep.subr.mxu0 0.0
      %952 = vmatpush2.msra.mxu0 0.0
      %953 = vmatprep.subr.mxu0 0.0
      %954 = vmatpush2.msra.mxu0 0.0
      %955 = vmatprep.mubr.f32.mxu0 0.0
      %956 = vmatmul.mubr.f32.gmra.mxu0 %v889
      %v957 = vpop.f32.mrf.mxu0
      %v958 = vadd.f32 0.0, %v957
      %v959 = vpop.f32.mrf.mxu0
      %960 = vdwg.mxu0
      %v961 = vadd.f32 %v875, %v958
      %v962 = vld [vmem:[%s344 + $0x1] sm:$0xff]
      %s963 = scalar_lea.vmem %s3, 560
      %v964 = vld [vmem:[%s963] sm:$0xff]
      %v965 = vld [vmem:[%s963 + $0x8] sm:$0xff]
      %v966 = vld [vmem:[%s963 + $0x10] sm:$0xff]
      %v967 = vld [vmem:[%s963 + $0x18] sm:$0xff]
      %v968 = vld [vmem:[%s963 + $0x20] sm:$0xff]
      %v969 = vld [vmem:[%s963 + $0x28] sm:$0xff]
      %v970 = vld [vmem:[%s963 + $0x30] sm:$0xff]
      %v971 = vld [vmem:[%s963 + $0x38] sm:$0xff]
      %v972 = vld [vmem:[%s963 + $0x40] sm:$0xff]
      %v973 = vld [vmem:[%s963 + $0x48] sm:$0xff]
      %v975 = vsel %vm385, %v962, 0
      %977 = vmatprep.subr.mxu0 0.0
      %978 = vmatpush1.msra.mxu0 0.0
      %979 = vmatprep.subr.mxu0 0.0
      %980 = vmatpush1.msra.mxu0 0.0
      %981 = vmatprep.subr.mxu0 0.0
      %982 = vmatpush1.msra.mxu0 0.0
      %983 = vmatprep.subr.mxu0 0.0
      %984 = vmatpush1.msra.mxu0 0.0
      %985 = vmatprep.subr.mxu0 0.0
      %986 = vmatpush1.msra.mxu0 0.0
      %987 = vmatprep.subr.mxu0 0.0
      %988 = vmatpush1.msra.mxu0 0.0
      %989 = vmatprep.subr.mxu0 0.0
      %990 = vmatpush1.msra.mxu0 %v973
      %991 = vmatprep.subr.mxu0 0.0
      %992 = vmatpush1.msra.mxu0 %v972
      %993 = vmatprep.subr.mxu0 0.0
      %994 = vmatpush1.msra.mxu0 %v971
      %995 = vmatprep.subr.mxu0 0.0
      %996 = vmatpush1.msra.mxu0 %v970
      %997 = vmatprep.subr.mxu0 0.0
      %998 = vmatpush1.msra.mxu0 %v969
      %999 = vmatprep.subr.mxu0 0.0
      %1000 = vmatpush1.msra.mxu0 %v968
      %1001 = vmatprep.subr.mxu0 0.0
      %1002 = vmatpush1.msra.mxu0 %v967
      %1003 = vmatprep.subr.mxu0 0.0
      %1004 = vmatpush1.msra.mxu0 %v966
      %1005 = vmatprep.subr.mxu0 0.0
      %1006 = vmatpush1.msra.mxu0 %v965
      %1007 = vmatprep.subr.mxu0 0.0
      %1008 = vmatpush1.msra.mxu0 %v964
      %1009 = vmatprep.subr.mxu0 0.0
      %1010 = vmatpush2.msra.mxu0 0.0
      %1011 = vmatprep.subr.mxu0 0.0
      %1012 = vmatpush2.msra.mxu0 0.0
      %1013 = vmatprep.subr.mxu0 0.0
      %1014 = vmatpush2.msra.mxu0 0.0
      %1015 = vmatprep.subr.mxu0 0.0
      %1016 = vmatpush2.msra.mxu0 0.0
      %1017 = vmatprep.subr.mxu0 0.0
      %1018 = vmatpush2.msra.mxu0 0.0
      %1019 = vmatprep.subr.mxu0 0.0
      %1020 = vmatpush2.msra.mxu0 0.0
      %1021 = vmatprep.subr.mxu0 0.0
      %1022 = vmatpush2.msra.mxu0 0.0
      %1023 = vmatprep.subr.mxu0 0.0
      %1024 = vmatpush2.msra.mxu0 0.0
      %1025 = vmatprep.subr.mxu0 0.0
      %1026 = vmatpush2.msra.mxu0 0.0
      %1027 = vmatprep.subr.mxu0 0.0
      %1028 = vmatpush2.msra.mxu0 0.0
      %1029 = vmatprep.subr.mxu0 0.0
      %1030 = vmatpush2.msra.mxu0 0.0
      %1031 = vmatprep.subr.mxu0 0.0
      %1032 = vmatpush2.msra.mxu0 0.0
      %1033 = vmatprep.subr.mxu0 0.0
      %1034 = vmatpush2.msra.mxu0 0.0
      %1035 = vmatprep.subr.mxu0 0.0
      %1036 = vmatpush2.msra.mxu0 0.0
      %1037 = vmatprep.subr.mxu0 0.0
      %1038 = vmatpush2.msra.mxu0 0.0
      %1039 = vmatprep.subr.mxu0 0.0
      %1040 = vmatpush2.msra.mxu0 0.0
      %1041 = vmatprep.mubr.f32.mxu0 0.0
      %1042 = vmatmul.mubr.f32.gmra.mxu0 %v975
      %v1043 = vpop.f32.mrf.mxu0
      %v1044 = vadd.f32 0.0, %v1043
      %v1045 = vpop.f32.mrf.mxu0
      %1046 = vdwg.mxu0
      %v1047 = vadd.f32 %v961, %v1044
      %v1048 = vld [vmem:[%s344 + $0x2] sm:$0xff]
      %s1049 = scalar_lea.vmem %s3, 640
      %v1050 = vld [vmem:[%s1049] sm:$0xff]
      %v1051 = vld [vmem:[%s1049 + $0x8] sm:$0xff]
      %v1052 = vld [vmem:[%s1049 + $0x10] sm:$0xff]
      %v1053 = vld [vmem:[%s1049 + $0x18] sm:$0xff]
      %v1054 = vld [vmem:[%s1049 + $0x20] sm:$0xff]
      %v1055 = vld [vmem:[%s1049 + $0x28] sm:$0xff]
      %v1056 = vld [vmem:[%s1049 + $0x30] sm:$0xff]
      %v1057 = vld [vmem:[%s1049 + $0x38] sm:$0xff]
      %v1058 = vld [vmem:[%s1049 + $0x40] sm:$0xff]
      %v1059 = vld [vmem:[%s1049 + $0x48] sm:$0xff]
      %v1061 = vsel %vm385, %v1048, 0
      %1063 = vmatprep.subr.mxu0 0.0
      %1064 = vmatpush1.msra.mxu0 0.0
      %1065 = vmatprep.subr.mxu0 0.0
      %1066 = vmatpush1.msra.mxu0 0.0
      %1067 = vmatprep.subr.mxu0 0.0
      %1068 = vmatpush1.msra.mxu0 0.0
      %1069 = vmatprep.subr.mxu0 0.0
      %1070 = vmatpush1.msra.mxu0 0.0
      %1071 = vmatprep.subr.mxu0 0.0
      %1072 = vmatpush1.msra.mxu0 0.0
      %1073 = vmatprep.subr.mxu0 0.0
      %1074 = vmatpush1.msra.mxu0 0.0
      %1075 = vmatprep.subr.mxu0 0.0
      %1076 = vmatpush1.msra.mxu0 %v1059
      %1077 = vmatprep.subr.mxu0 0.0
      %1078 = vmatpush1.msra.mxu0 %v1058
      %1079 = vmatprep.subr.mxu0 0.0
      %1080 = vmatpush1.msra.mxu0 %v1057
      %1081 = vmatprep.subr.mxu0 0.0
      %1082 = vmatpush1.msra.mxu0 %v1056
      %1083 = vmatprep.subr.mxu0 0.0
      %1084 = vmatpush1.msra.mxu0 %v1055
      %1085 = vmatprep.subr.mxu0 0.0
      %1086 = vmatpush1.msra.mxu0 %v1054
      %1087 = vmatprep.subr.mxu0 0.0
      %1088 = vmatpush1.msra.mxu0 %v1053
      %1089 = vmatprep.subr.mxu0 0.0
      %1090 = vmatpush1.msra.mxu0 %v1052
      %1091 = vmatprep.subr.mxu0 0.0
      %1092 = vmatpush1.msra.mxu0 %v1051
      %1093 = vmatprep.subr.mxu0 0.0
      %1094 = vmatpush1.msra.mxu0 %v1050
      %1095 = vmatprep.subr.mxu0 0.0
      %1096 = vmatpush2.msra.mxu0 0.0
      %1097 = vmatprep.subr.mxu0 0.0
      %1098 = vmatpush2.msra.mxu0 0.0
      %1099 = vmatprep.subr.mxu0 0.0
      %1100 = vmatpush2.msra.mxu0 0.0
      %1101 = vmatprep.subr.mxu0 0.0
      %1102 = vmatpush2.msra.mxu0 0.0
      %1103 = vmatprep.subr.mxu0 0.0
      %1104 = vmatpush2.msra.mxu0 0.0
      %1105 = vmatprep.subr.mxu0 0.0
      %1106 = vmatpush2.msra.mxu0 0.0
      %1107 = vmatprep.subr.mxu0 0.0
      %1108 = vmatpush2.msra.mxu0 0.0
      %1109 = vmatprep.subr.mxu0 0.0
      %1110 = vmatpush2.msra.mxu0 0.0
      %1111 = vmatprep.subr.mxu0 0.0
      %1112 = vmatpush2.msra.mxu0 0.0
      %1113 = vmatprep.subr.mxu0 0.0
      %1114 = vmatpush2.msra.mxu0 0.0
      %1115 = vmatprep.subr.mxu0 0.0
      %1116 = vmatpush2.msra.mxu0 0.0
      %1117 = vmatprep.subr.mxu0 0.0
      %1118 = vmatpush2.msra.mxu0 0.0
      %1119 = vmatprep.subr.mxu0 0.0
      %1120 = vmatpush2.msra.mxu0 0.0
      %1121 = vmatprep.subr.mxu0 0.0
      %1122 = vmatpush2.msra.mxu0 0.0
      %1123 = vmatprep.subr.mxu0 0.0
      %1124 = vmatpush2.msra.mxu0 0.0
      %1125 = vmatprep.subr.mxu0 0.0
      %1126 = vmatpush2.msra.mxu0 0.0
      %1127 = vmatprep.mubr.f32.mxu0 0.0
      %1128 = vmatmul.mubr.f32.gmra.mxu0 %v1061
      %v1129 = vpop.f32.mrf.mxu0
      %v1130 = vadd.f32 0.0, %v1129
      %v1131 = vpop.f32.mrf.mxu0
      %1132 = vdwg.mxu0
      %v1133 = vadd.f32 %v1047, %v1130
      %vm1134 = vcmask 523264
      %1135 = vst.msk [vmem:[%s353] sm:$0xff] %vm1134, %v1133
      %v1136 = vsel %vm1134, %v1133, 0.0
      %v1137 = vrot.slane %v1136, 4
      %v1138 = vadd.f32 %v1136, %v1137
      %v1139 = vrot.slane %v1138, 2
      %v1140 = vadd.f32 %v1138, %v1139
      %v1141 = vrot.slane %v1140, 1
      %v1142 = vadd.f32 %v1140, %v1141
      %v1143 = vmul.f32 %v1133, %v1133
      %v1144 = vsel %vm1134, %v1143, 0.0
      %v1145 = vrot.slane %v1144, 4
      %v1146 = vadd.f32 %v1144, %v1145
      %v1147 = vrot.slane %v1146, 2
      %v1148 = vadd.f32 %v1146, %v1147
      %v1149 = vrot.slane %v1148, 1
      %v1150 = vadd.f32 %v1148, %v1149
      %vm1151 = vcmask 1040384
      %v1152 = vsel %vm1151, %v1142, %v1150
      %vm1153 = vcmask 517120
      %1154 = vst.msk [vmem:[%s361] sm:$0x3] %vm1153, %v1152
      %p1155 = scmp.lt.s32.totalorder %s21, 1
      %s1156 = scalar_select %p1155, %s21, 1
      %p1157 = scmp.lt.s32.totalorder %s22, 7
      %s1158 = scalar_select %p1157, %s22, 7
      %s1159 = smul.addr %s1156, 8
      %s1160 = sadd.s32 %s1158, %s1159
      %s1161 = smul.addr %s1160, 8
      %s1162 = scalar_lea.vmem %s4, %s1161
      %p1163 = scmp.lt.s32.totalorder %s21, 1
      %s1164 = scalar_select %p1163, %s21, 1
      %p1165 = scmp.lt.s32.totalorder %s22, 7
      %s1166 = scalar_select %p1165, %s22, 7
      %s1167 = smul.addr %s1164, 8
      %s1168 = sadd.s32 %s1166, %s1167
      %s1169 = smul.addr %s1168, 2
      %s1170 = scalar_lea.vmem %s5, %s1169
      // Predicated region
      $region37: #{double_conv3d.6} parent=35 // pred_check
        %p1171 = pneg %p158
      $region38: #{double_conv3d.6} parent=35 // pred_check_branch
        %1173 = sbr.rel (%p1171) target = $region40
      $region39: #{double_conv3d.6} parent=35 // pred_region
        _
      $region40: #{double_conv3d.6} parent=35 // pred_fallthru
        _
      // Predicated region
      $region41: #{double_conv3d.6} parent=35 // pred_check
        %p1174 = pneg %p186
      $region42: #{double_conv3d.6} parent=35 // pred_check_branch
        %1176 = sbr.rel (%p1174) target = $region44
      $region43: #{double_conv3d.6} parent=35 // pred_region
        _
      $region44: #{double_conv3d.6} parent=35 // pred_fallthru
        _
    $region36: #{double_conv3d.6} parent=5 // pred_fallthru
      _
    %p1177 = scmp.le.s32.totalorder 2, %s12
    // Predicated region
    $region45: #{double_conv3d.6} parent=5 // pred_check
      %p1178 = pneg %p1177
    $region46: #{double_conv3d.6} parent=5 // pred_check_branch
      %1180 = sbr.rel (%p1178) target = $region48
    $region47: #{double_conv3d.6} parent=5 // pred_region
      %s1181 = ssub.s32 %s12, 2
      // Predicated region
      $region49: #{double_conv3d.6} parent=47 // pred_check
        %p1182 = pneg %p164
      $region50: #{double_conv3d.6} parent=47 // pred_check_branch
        %1184 = sbr.rel (%p1182) target = $region52
      $region51: #{double_conv3d.6} parent=47 // pred_region
        %p1185 = scmp.lt.s32.totalorder %s23, 1
        %s1186 = scalar_select %p1185, %s23, 1
        %p1187 = scmp.lt.s32.totalorder %s24, 7
        %s1188 = scalar_select %p1187, %s24, 7
        %s1189 = smul.addr %s1186, 8
        %s1190 = sadd.s32 %s1188, %s1189
        %s1191 = smul.addr %s1190, 8
        %s1192 = scalar_lea.vmem %s4, %s1191
      $region52: #{double_conv3d.6} parent=47 // pred_fallthru
        _
      // Predicated region
      $region53: #{double_conv3d.6} parent=47 // pred_check
        %p1193 = pneg %p192
      $region54: #{double_conv3d.6} parent=47 // pred_check_branch
        %1195 = sbr.rel (%p1193) target = $region56
      $region55: #{double_conv3d.6} parent=47 // pred_region
        %p1196 = scmp.lt.s32.totalorder %s23, 1
        %s1197 = scalar_select %p1196, %s23, 1
        %p1198 = scmp.lt.s32.totalorder %s24, 7
        %s1199 = scalar_select %p1198, %s24, 7
        %s1200 = smul.addr %s1197, 8
        %s1201 = sadd.s32 %s1199, %s1200
        %s1202 = smul.addr %s1201, 2
        %s1203 = scalar_lea.vmem %s5, %s1202
      $region56: #{double_conv3d.6} parent=47 // pred_fallthru
        _
    $region48: #{double_conv3d.6} parent=5 // pred_fallthru
      _
  $region6: #{double_conv3d.6} parent=0 // loop_footer
    %s16 = sadd.s32 1, %s12
  $region7: #{double_conv3d.6} parent=0 // loop_footer_branch
    %11 = sbr.rel target = $region3
  $region8: #{double_conv3d.6} parent=0 // loop_exit
    _

</llo_original>
